<compile_context>
chip_gen: v6e
topology: v6e:2x2x1
jax: 0.10.0
libtpu: 0.0.40
codegen_flags: <defaults>
</compile_context>

<pallas_src>
import functools
import math

import numpy as np
import jax
import jax.numpy as jnp
from jax.experimental import pallas as pl
from jax.experimental.pallas import tpu as pltpu

# ----------------------------- config ---------------------------------------
H = 128           # hidden size (module uses 768)
NH = 2            # attention heads
HD = H // NH      # head dim
INTER = 512       # FFN intermediate size (4*H)
LAYERS = 2        # encoder layers (module uses 12)
MAX_LEN = 128     # max_length / sequence length
VOCAB = 256       # synthetic vocab
LN_EPS = 1e-12
SEP_ID = 102
N_PROMPT = 4      # HuffPost soft prompt length


def _gelu(x):
    # exact erf-gelu, matching the reference `gelu`
    return x * 0.5 * (1.0 + jax.lax.erf(x / jnp.sqrt(2.0).astype(x.dtype)))


def _layernorm(h, g, b):
    mu = jnp.mean(h, axis=-1, keepdims=True)
    var = jnp.mean(jnp.square(h - mu), axis=-1, keepdims=True)
    return (h - mu) * jax.lax.rsqrt(var + LN_EPS) * g + b


# --------------------------- Pallas kernels ----------------------------------
def _emb_ln_kernel(x_ref, add_ref, g_ref, b_ref, o_ref):
    """LayerNorm(inputs_embeds + (pos+type) addend) for one batch element."""
    h = x_ref[0].astype(jnp.float32) + add_ref[...]
    o_ref[0] = _layernorm(h, g_ref[...], b_ref[...]).astype(o_ref.dtype)


def bert_embeddings(inputs_embeds, addend, gamma, beta):
    B, S, _ = inputs_embeds.shape
    return pl.pallas_call(
        _emb_ln_kernel,
        out_shape=jax.ShapeDtypeStruct((B, S, H), jnp.float32),
        grid_spec=pltpu.PrefetchScalarGridSpec(
            num_scalar_prefetch=0,
            grid=(B,),
            in_specs=[
                pl.BlockSpec((1, S, H), lambda b: (b, 0, 0)),
                pl.BlockSpec((S, H), lambda b: (0, 0)),
                pl.BlockSpec((1, H), lambda b: (0, 0)),
                pl.BlockSpec((1, H), lambda b: (0, 0)),
            ],
            out_specs=pl.BlockSpec((1, S, H), lambda b: (b, 0, 0)),
        ),
        compiler_params=pltpu.CompilerParams(
            dimension_semantics=("parallel",)),
    )(inputs_embeds, addend, gamma.reshape(1, H), beta.reshape(1, H))


def _encoder_stack_kernel(hid_ref, mask_ref, wqkv_ref, bqkv_ref, wo_ref, bo_ref,
                          ln1g_ref, ln1b_ref, w1_ref, b1_ref, w2_ref, b2_ref,
                          ln2g_ref, ln2b_ref, out_ref, h_scr, *, scale):
    """One grid step = one (batch, layer) pair; hidden state lives in VMEM."""
    layer = pl.program_id(1)

    @pl.when(layer == 0)
    def _():
        h_scr[...] = hid_ref[0]

    x = h_scr[...]                        # (S, H) f32
    mask = mask_ref[0]                    # (1, S) additive mask

    # ---- fused QKV projection (bf16 operands, f32 accumulate) ----
    qkv = jnp.dot(x.astype(jnp.bfloat16), wqkv_ref[0],
                  preferred_element_type=jnp.float32) + bqkv_ref[0]
    q, k, v = qkv[:, :H], qkv[:, H:2 * H], qkv[:, 2 * H:]

    # ---- per-head attention, lane-dense (S, H) context ----
    ctx_heads = []
    for hh in range(NH):
        sl = slice(hh * HD, (hh + 1) * HD)
        qh = q[:, sl].astype(jnp.bfloat16)
        kh = k[:, sl].astype(jnp.bfloat16)
        vh = v[:, sl].astype(jnp.bfloat16)
        s = jax.lax.dot_general(qh, kh, (((1,), (1,)), ((), ())),
                                preferred_element_type=jnp.float32)
        s = s * scale + mask
        s = s - jnp.max(s, axis=-1, keepdims=True)
        pr = jnp.exp(s)
        pr = pr * pl.reciprocal(jnp.sum(pr, axis=-1, keepdims=True), approx=True)
        ctx_heads.append(jnp.dot(pr.astype(jnp.bfloat16), vh,
                                 preferred_element_type=jnp.float32))
    ctx = jnp.concatenate(ctx_heads, axis=-1)          # (S, H)

    # ---- attention output projection + residual LayerNorm ----
    attn_out = jnp.dot(ctx.astype(jnp.bfloat16), wo_ref[0],
                       preferred_element_type=jnp.float32) + bo_ref[0]
    h1 = _layernorm(attn_out + x, ln1g_ref[0], ln1b_ref[0])

    # ---- FFN (intermediate stays in VMEM) + residual LayerNorm ----
    ffn = jnp.dot(h1.astype(jnp.bfloat16), w1_ref[0],
                  preferred_element_type=jnp.float32) + b1_ref[0]
    ffn = _gelu(ffn)
    ffn = jnp.dot(ffn.astype(jnp.bfloat16), w2_ref[0],
                  preferred_element_type=jnp.float32) + b2_ref[0]
    h2 = _layernorm(ffn + h1, ln2g_ref[0], ln2b_ref[0])

    h_scr[...] = h2

    @pl.when(layer == pl.num_programs(1) - 1)
    def _():
        out_ref[0] = h2.astype(out_ref.dtype)


def encoder_stack(hidden, ext_mask, p):
    B, S, _ = hidden.shape

    def wspec(d1, d2):
        return pl.BlockSpec((1, d1, d2), lambda b, l: (l, 0, 0))

    return pl.pallas_call(
        functools.partial(_encoder_stack_kernel, scale=1.0 / math.sqrt(HD)),
        out_shape=jax.ShapeDtypeStruct((B, S, H), jnp.float32),
        grid_spec=pltpu.PrefetchScalarGridSpec(
            num_scalar_prefetch=0,
            grid=(B, LAYERS),
            in_specs=[
                pl.BlockSpec((1, S, H), lambda b, l: (b, 0, 0)),   # hidden
                pl.BlockSpec((1, 1, S), lambda b, l: (b, 0, 0)),   # additive mask
                wspec(H, 3 * H),       # wqkv
                wspec(1, 3 * H),       # bqkv
                wspec(H, H),           # wo
                wspec(1, H),           # bo
                wspec(1, H),           # ln1_g
                wspec(1, H),           # ln1_b
                wspec(H, INTER),       # w1
                wspec(1, INTER),       # b1
                wspec(INTER, H),       # w2
                wspec(1, H),           # b2
                wspec(1, H),           # ln2_g
                wspec(1, H),           # ln2_b
            ],
            out_specs=pl.BlockSpec((1, S, H), lambda b, l: (b, 0, 0)),
            scratch_shapes=[pltpu.VMEM((S, H), jnp.float32)],
        ),
        compiler_params=pltpu.CompilerParams(
            dimension_semantics=("parallel", "arbitrary")),
    )(hidden, ext_mask, p["wqkv"], p["bqkv"], p["wo"], p["bo"],
      p["ln1_g"], p["ln1_b"], p["w1"], p["b1"], p["w2"], p["b2"],
      p["ln2_g"], p["ln2_b"])


def _head_kernel(x_ref, w_ref, b_ref, g_ref, beta_ref, o_ref):
    """entity_start_state: LayerNorm(gelu(dense(x)))."""
    y = jnp.dot(x_ref[...].astype(jnp.bfloat16), w_ref[...],
                preferred_element_type=jnp.float32) + b_ref[...]
    y = _gelu(y)
    o_ref[...] = _layernorm(y, g_ref[...], beta_ref[...]).astype(o_ref.dtype)


def mlm_head(rows, p):
    B = rows.shape[0]
    return pl.pallas_call(
        _head_kernel,
        out_shape=jax.ShapeDtypeStruct((B, H), jnp.float32),
        grid_spec=pltpu.PrefetchScalarGridSpec(
            num_scalar_prefetch=0,
            grid=(1,),
            in_specs=[
                pl.BlockSpec((B, H), lambda i: (0, 0)),
                pl.BlockSpec((H, H), lambda i: (0, 0)),
                pl.BlockSpec((1, H), lambda i: (0, 0)),
                pl.BlockSpec((1, H), lambda i: (0, 0)),
                pl.BlockSpec((1, H), lambda i: (0, 0)),
            ],
            out_specs=pl.BlockSpec((B, H), lambda i: (0, 0)),
        ),
        compiler_params=pltpu.CompilerParams(
            dimension_semantics=("arbitrary",)),
    )(rows, p["tf_dense_w"], p["tf_dense_b"].reshape(1, H),
      p["ln_g"].reshape(1, H), p["ln_b"].reshape(1, H))


# --------------------------- model pieces ------------------------------------
def build_inputs_embeds(ids, lens, p):
    """Vectorized glue: word gather + soft prompt / SEP splice + pad + masks."""
    pos = jnp.arange(MAX_LEN, dtype=jnp.int32)[None, :]          # (1, S)
    L = lens[:, None]                                            # (B, 1)
    word = p["word_emb"]
    base = jnp.take(word, ids, axis=0)                           # (B, S, H)
    sp = jnp.take(p["soft_prompt"],
                  jnp.clip(pos - L, 0, N_PROMPT - 1), axis=0)    # (B, S, H)
    sep = word[SEP_ID][None, None, :]                            # (1, 1, H)
    in_prompt = (pos >= L) & (pos < L + N_PROMPT)
    is_sep = pos == (L + N_PROMPT)
    # positions >= L+N_PROMPT+1 keep base = word[0] (padded ids are 0)
    emb = jnp.where(in_prompt[..., None], sp,
                    jnp.where(is_sep[..., None], sep, base))
    att = (pos < L + N_PROMPT + 1).astype(jnp.float32)           # (B, S)
    ext_mask = ((1.0 - att) * -10000.0)[:, None, :]              # (B, 1, S)
    mask_ind = jnp.where(lens + 2 >= MAX_LEN, 0, lens + 2).astype(jnp.int32)
    return emb, ext_mask, mask_ind


def forward_huffpost(ids, lens, p):
    """HuffPost branch of BERT.forward.  ids: (B, MAX_LEN) padded, lens: (B,)."""
    emb, ext_mask, mask_ind = build_inputs_embeds(ids, lens, p)
    addend = p["pos_emb"][:MAX_LEN] + p["type_emb"][0][None, :]   # (S, H)

    hidden = bert_embeddings(emb, addend, p["emb_ln_g"], p["emb_ln_b"])
    hidden = encoder_stack(hidden, ext_mask, p)

    rows = jnp.take_along_axis(hidden, mask_ind[:, None, None], axis=1)[:, 0, :]
    # dropout: identity in eval mode
    return mlm_head(rows, p)


# --------------------------- pure-JAX reference -------------------------------
def reference_forward(ids, lens, p):
    emb, ext_mask, mask_ind = build_inputs_embeds(ids, lens, p)
    addend = p["pos_emb"][:MAX_LEN] + p["type_emb"][0][None, :]
    h = _layernorm(emb + addend[None], p["emb_ln_g"], p["emb_ln_b"])
    scale = 1.0 / math.sqrt(HD)
    for l in range(LAYERS):
        xb = h.astype(jnp.bfloat16)
        qkv = jnp.einsum("bsh,hk->bsk", xb, p["wqkv"][l],
                         preferred_element_type=jnp.float32) + p["bqkv"][l, 0]
        q, k, v = qkv[..., :H], qkv[..., H:2 * H], qkv[..., 2 * H:]
        ctxs = []
        for hh in range(NH):
            sl = slice(hh * HD, (hh + 1) * HD)
            qh = q[..., sl].astype(jnp.bfloat16)
            kh = k[..., sl].astype(jnp.bfloat16)
            vh = v[..., sl].astype(jnp.bfloat16)
            s = jnp.einsum("bqd,bkd->bqk", qh, kh,
                           preferred_element_type=jnp.float32) * scale + ext_mask
            s = s - jnp.max(s, axis=-1, keepdims=True)
            pr = jnp.exp(s)
            pr = pr / jnp.sum(pr, axis=-1, keepdims=True)
            ctxs.append(jnp.einsum("bqk,bkd->bqd", pr.astype(jnp.bfloat16), vh,
                                   preferred_element_type=jnp.float32))
        ctx = jnp.concatenate(ctxs, axis=-1)
        attn_out = jnp.einsum("bsh,hk->bsk", ctx.astype(jnp.bfloat16), p["wo"][l],
                              preferred_element_type=jnp.float32) + p["bo"][l, 0]
        h1 = _layernorm(attn_out + h, p["ln1_g"][l, 0], p["ln1_b"][l, 0])
        ffn = jnp.einsum("bsh,hk->bsk", h1.astype(jnp.bfloat16), p["w1"][l],
                         preferred_element_type=jnp.float32) + p["b1"][l, 0]
        ffn = _gelu(ffn)
        ffn = jnp.einsum("bsh,hk->bsk", ffn.astype(jnp.bfloat16), p["w2"][l],
                         preferred_element_type=jnp.float32) + p["b2"][l, 0]
        h = _layernorm(ffn + h1, p["ln2_g"][l, 0], p["ln2_b"][l, 0])
    rows = jnp.take_along_axis(h, mask_ind[:, None, None], axis=1)[:, 0, :]
    y = jnp.dot(rows.astype(jnp.bfloat16), p["tf_dense_w"],
                preferred_element_type=jnp.float32) + p["tf_dense_b"]
    return _layernorm(_gelu(y), p["ln_g"], p["ln_b"])


# ------------------------------- params --------------------------------------
def init_params(key):
    ks = iter(jax.random.split(key, 128))

    def rnd(shape, scale=0.02):
        return scale * jax.random.normal(next(ks), shape, dtype=jnp.float32)

    p = {
        "word_emb": rnd((VOCAB, H)),
        "pos_emb": rnd((MAX_LEN, H)),
        "type_emb": rnd((2, H)),
        "emb_ln_g": 1.0 + rnd((H,)),
        "emb_ln_b": rnd((H,)),
        "tf_dense_w": rnd((H, H)).astype(jnp.bfloat16),
        "tf_dense_b": rnd((H,)),
        "ln_g": 1.0 + rnd((H,)),
        "ln_b": rnd((H,)),
    }
    # soft prompt initialized from word embeddings of the 4 prompt tokens
    p["soft_prompt"] = p["word_emb"][jnp.array([5, 6, 103, 7], jnp.int32)]

    wqkv, bqkv, wo, bo, ln1g, ln1b = [], [], [], [], [], []
    w1, b1, w2, b2, ln2g, ln2b = [], [], [], [], [], []
    for _ in range(LAYERS):
        wqkv.append(jnp.concatenate([rnd((H, H)), rnd((H, H)), rnd((H, H))], 1))
        bqkv.append(rnd((1, 3 * H)))
        wo.append(rnd((H, H)))
        bo.append(rnd((1, H)))
        ln1g.append(1.0 + rnd((1, H)))
        ln1b.append(rnd((1, H)))
        w1.append(rnd((H, INTER)))
        b1.append(rnd((1, INTER)))
        w2.append(rnd((INTER, H)))
        b2.append(rnd((1, H)))
        ln2g.append(1.0 + rnd((1, H)))
        ln2b.append(rnd((1, H)))
    p["wqkv"] = jnp.stack(wqkv).astype(jnp.bfloat16)   # (L, H, 3H)
    p["bqkv"] = jnp.stack(bqkv)                         # (L, 1, 3H)
    p["wo"] = jnp.stack(wo).astype(jnp.bfloat16)
    p["bo"] = jnp.stack(bo)
    p["ln1_g"] = jnp.stack(ln1g)
    p["ln1_b"] = jnp.stack(ln1b)
    p["w1"] = jnp.stack(w1).astype(jnp.bfloat16)
    p["b1"] = jnp.stack(b1)
    p["w2"] = jnp.stack(w2).astype(jnp.bfloat16)
    p["b2"] = jnp.stack(b2)
    p["ln2_g"] = jnp.stack(ln2g)
    p["ln2_b"] = jnp.stack(ln2b)
    return p


def pack_token_lists(token_lists):
    """Host-side padding of variable-length id lists into (B, MAX_LEN) + lens."""
    B = len(token_lists)
    ids = np.zeros((B, MAX_LEN), np.int32)
    lens = np.zeros((B,), np.int32)
    for i, t in enumerate(token_lists):
        t = np.asarray(t, dtype=np.int32)[:MAX_LEN]
        ids[i, : t.shape[0]] = t
        lens[i] = t.shape[0]
    return jnp.asarray(ids), jnp.asarray(lens)


# -------------------------------- main ----------------------------------------
if __name__ == "__main__":
    key = jax.random.PRNGKey(0)
    pkey, tkey0, tkey1 = jax.random.split(key, 3)
    params = init_params(pkey)

    # synthetic "tokenized" inputs (two sequences of different lengths)
    toks0 = jax.random.randint(tkey0, (10,), 1, VOCAB, dtype=jnp.int32)
    toks1 = jax.random.randint(tkey1, (20,), 1, VOCAB, dtype=jnp.int32)
    ids, lens = pack_token_lists([toks0, toks1])

    fwd = jax.jit(forward_huffpost)
    out = jax.block_until_ready(fwd(ids, lens, params))

    ref = jax.block_until_ready(jax.jit(reference_forward)(ids, lens, params))

    assert out.shape == (2, H) and out.dtype == jnp.float32
    assert bool(jnp.all(jnp.isfinite(out)))
    assert bool(jnp.allclose(out, ref, atol=5e-2, rtol=5e-2))
    print("KERNEL_OK")
</pallas_src>

<mosaic_0001>
module attributes {stable_mosaic.version = 11 : i64} {
  func.func @_emb_ln_kernel(%arg0: i32, %arg1: memref<1x128x128xf32, #tpu.memory_space<vmem>>, %arg2: memref<128x128xf32, #tpu.memory_space<vmem>>, %arg3: memref<1x128xf32, #tpu.memory_space<vmem>>, %arg4: memref<1x128xf32, #tpu.memory_space<vmem>>, %arg5: memref<1x128x128xf32, #tpu.memory_space<vmem>>) attributes {dimension_semantics = [#tpu.dimension_semantics<parallel>], iteration_bounds = array<i64: 2>, scalar_prefetch = 0 : i64, scratch_operands = 0 : i64, tpu.core_type = #tpu.core_type<tc>, window_params = [{transform_indices = @transform_0, window_bounds = array<i64: 1, 128, 128>}, {pipeline_mode = #tpu.pipeline_mode<synchronous>, transform_indices = @transform_1, window_bounds = array<i64: 128, 128>}, {pipeline_mode = #tpu.pipeline_mode<synchronous>, transform_indices = @transform_2, window_bounds = array<i64: 1, 128>}, {pipeline_mode = #tpu.pipeline_mode<synchronous>, transform_indices = @transform_3, window_bounds = array<i64: 1, 128>}, {transform_indices = @transform_4, window_bounds = array<i64: 1, 128, 128>}]} {
    %c0 = arith.constant 0 : index
    %c0_0 = arith.constant 0 : index
    %c0_1 = arith.constant 0 : index
    %0 = vector.load %arg1[%c0, %c0_0, %c0_1] : memref<1x128x128xf32, #tpu.memory_space<vmem>>, vector<1x128x128xf32>
    %1 = vector.shape_cast %0 : vector<1x128x128xf32> to vector<128x128xf32>
    %c0_2 = arith.constant 0 : index
    %c0_3 = arith.constant 0 : index
    %2 = vector.load %arg2[%c0_2, %c0_3] : memref<128x128xf32, #tpu.memory_space<vmem>>, vector<128x128xf32>
    %3 = arith.addf %1, %2 : vector<128x128xf32>
    %c0_4 = arith.constant 0 : index
    %c0_5 = arith.constant 0 : index
    %4 = vector.load %arg3[%c0_4, %c0_5] : memref<1x128xf32, #tpu.memory_space<vmem>>, vector<1x128xf32>
    %c0_6 = arith.constant 0 : index
    %c0_7 = arith.constant 0 : index
    %5 = vector.load %arg4[%c0_6, %c0_7] : memref<1x128xf32, #tpu.memory_space<vmem>>, vector<1x128xf32>
    %cst = arith.constant dense<0.000000e+00> : vector<128xf32>
    %6 = vector.multi_reduction <add>, %3, %cst [1] : vector<128x128xf32> to vector<128xf32>
    %7 = vector.shape_cast %6 : vector<128xf32> to vector<128x1xf32>
    %cst_8 = arith.constant 1.280000e+02 : f32
    %8 = vector.broadcast %cst_8 : f32 to vector<128x1xf32>
    %9 = arith.divf %7, %8 : vector<128x1xf32>
    %10 = vector.broadcast %9 : vector<128x1xf32> to vector<128x128xf32>
    %11 = arith.subf %3, %10 : vector<128x128xf32>
    %12 = arith.mulf %11, %11 : vector<128x128xf32>
    %cst_9 = arith.constant dense<0.000000e+00> : vector<128xf32>
    %13 = vector.multi_reduction <add>, %12, %cst_9 [1] : vector<128x128xf32> to vector<128xf32>
    %14 = vector.shape_cast %13 : vector<128xf32> to vector<128x1xf32>
    %cst_10 = arith.constant 1.280000e+02 : f32
    %15 = vector.broadcast %cst_10 : f32 to vector<128x1xf32>
    %16 = arith.divf %14, %15 : vector<128x1xf32>
    %17 = vector.broadcast %9 : vector<128x1xf32> to vector<128x128xf32>
    %18 = arith.subf %3, %17 : vector<128x128xf32>
    %cst_11 = arith.constant 9.99999996E-13 : f32
    %19 = vector.broadcast %cst_11 : f32 to vector<128x1xf32>
    %20 = arith.addf %16, %19 : vector<128x1xf32>
    %21 = math.rsqrt %20 : vector<128x1xf32>
    %22 = vector.broadcast %21 : vector<128x1xf32> to vector<128x128xf32>
    %23 = arith.mulf %18, %22 : vector<128x128xf32>
    %24 = vector.broadcast %4 : vector<1x128xf32> to vector<128x128xf32>
    %25 = arith.mulf %23, %24 : vector<128x128xf32>
    %26 = vector.broadcast %5 : vector<1x128xf32> to vector<128x128xf32>
    %27 = arith.addf %25, %26 : vector<128x128xf32>
    %c0_12 = arith.constant 0 : index
    %c0_13 = arith.constant 0 : index
    %c0_14 = arith.constant 0 : index
    %28 = vector.load %arg5[%c0_12, %c0_13, %c0_14] : memref<1x128x128xf32, #tpu.memory_space<vmem>>, vector<1x128x128xf32>
    %29 = vector.shape_cast %28 : vector<1x128x128xf32> to vector<128x128xf32>
    %30 = vector.shape_cast %27 : vector<128x128xf32> to vector<1x128x128xf32>
    tpu.vector_store %arg5[%c0_12, %c0_13, %c0_14], %30 {strides = array<i32>} : memref<1x128x128xf32, #tpu.memory_space<vmem>>, vector<1x128x128xf32>,
    return
  }
  func.func @transform_0(%arg0: i32) -> (i32, i32, i32) {
    %c0_i32 = arith.constant 0 : i32
    %c0_i32_0 = arith.constant 0 : i32
    %c0_i32_1 = arith.constant 0 : i32
    return %arg0, %c0_i32, %c0_i32_0 : i32, i32, i32
  }
  func.func @transform_1(%arg0: i32) -> (i32, i32) {
    %c0_i32 = arith.constant 0 : i32
    %c0_i32_0 = arith.constant 0 : i32
    %c0_i32_1 = arith.constant 0 : i32
    return %c0_i32, %c0_i32_0 : i32, i32
  }
  func.func @transform_2(%arg0: i32) -> (i32, i32) {
    %c0_i32 = arith.constant 0 : i32
    %c0_i32_0 = arith.constant 0 : i32
    %c0_i32_1 = arith.constant 0 : i32
    return %c0_i32, %c0_i32_0 : i32, i32
  }
  func.func @transform_3(%arg0: i32) -> (i32, i32) {
    %c0_i32 = arith.constant 0 : i32
    %c0_i32_0 = arith.constant 0 : i32
    %c0_i32_1 = arith.constant 0 : i32
    return %c0_i32, %c0_i32_0 : i32, i32
  }
  func.func @transform_4(%arg0: i32) -> (i32, i32, i32) {
    %c0_i32 = arith.constant 0 : i32
    %c0_i32_0 = arith.constant 0 : i32
    %c0_i32_1 = arith.constant 0 : i32
    return %arg0, %c0_i32, %c0_i32_0 : i32, i32, i32
  }
}

module attributes {stable_mosaic.version = 11 : i64} {
  func.func @_encoder_stack_kernel(%arg0: i32, %arg1: i32, %arg2: memref<1x128x128xf32, #tpu.memory_space<vmem>>, %arg3: memref<1x1x128xf32, #tpu.memory_space<vmem>>, %arg4: memref<1x128x384xbf16, #tpu.memory_space<vmem>>, %arg5: memref<1x1x384xf32, #tpu.memory_space<vmem>>, %arg6: memref<1x128x128xbf16, #tpu.memory_space<vmem>>, %arg7: memref<1x1x128xf32, #tpu.memory_space<vmem>>, %arg8: memref<1x1x128xf32, #tpu.memory_space<vmem>>, %arg9: memref<1x1x128xf32, #tpu.memory_space<vmem>>, %arg10: memref<1x128x512xbf16, #tpu.memory_space<vmem>>, %arg11: memref<1x1x512xf32, #tpu.memory_space<vmem>>, %arg12: memref<1x512x128xbf16, #tpu.memory_space<vmem>>, %arg13: memref<1x1x128xf32, #tpu.memory_space<vmem>>, %arg14: memref<1x1x128xf32, #tpu.memory_space<vmem>>, %arg15: memref<1x1x128xf32, #tpu.memory_space<vmem>>, %arg16: memref<1x128x128xf32, #tpu.memory_space<vmem>>, %arg17: memref<128x128xf32, #tpu.memory_space<vmem>>) attributes {dimension_semantics = [#tpu.dimension_semantics<parallel>, #tpu.dimension_semantics<arbitrary>], iteration_bounds = array<i64: 2, 2>, scalar_prefetch = 0 : i64, scratch_operands = 1 : i64, tpu.core_type = #tpu.core_type<tc>, window_params = [{transform_indices = @transform_0, window_bounds = array<i64: 1, 128, 128>}, {transform_indices = @transform_1, window_bounds = array<i64: 1, 1, 128>}, {transform_indices = @transform_2, window_bounds = array<i64: 1, 128, 384>}, {transform_indices = @transform_3, window_bounds = array<i64: 1, 1, 384>}, {transform_indices = @transform_4, window_bounds = array<i64: 1, 128, 128>}, {transform_indices = @transform_5, window_bounds = array<i64: 1, 1, 128>}, {transform_indices = @transform_6, window_bounds = array<i64: 1, 1, 128>}, {transform_indices = @transform_7, window_bounds = array<i64: 1, 1, 128>}, {transform_indices = @transform_8, window_bounds = array<i64: 1, 128, 512>}, {transform_indices = @transform_9, window_bounds = array<i64: 1, 1, 512>}, {transform_indices = @transform_10, window_bounds = array<i64: 1, 512, 128>}, {transform_indices = @transform_11, window_bounds = array<i64: 1, 1, 128>}, {transform_indices = @transform_12, window_bounds = array<i64: 1, 1, 128>}, {transform_indices = @transform_13, window_bounds = array<i64: 1, 1, 128>}, {transform_indices = @transform_14, window_bounds = array<i64: 1, 128, 128>}]} {
    %c0_i32 = arith.constant 0 : i32
    %0 = arith.cmpi eq, %arg1, %c0_i32 : i32
    %1 = arith.extui %0 : i1 to i32
    %c0_i32_0 = arith.constant 0 : i32
    %2 = arith.cmpi ne, %1, %c0_i32_0 : i32
    scf.if %2 {
      %c0_70 = arith.constant 0 : index
      %c0_71 = arith.constant 0 : index
      %c0_72 = arith.constant 0 : index
      %155 = vector.load %arg2[%c0_70, %c0_71, %c0_72] : memref<1x128x128xf32, #tpu.memory_space<vmem>>, vector<1x128x128xf32>
      %156 = vector.shape_cast %155 : vector<1x128x128xf32> to vector<128x128xf32>
      %c0_73 = arith.constant 0 : index
      %c0_74 = arith.constant 0 : index
      %157 = vector.load %arg17[%c0_73, %c0_74] : memref<128x128xf32, #tpu.memory_space<vmem>>, vector<128x128xf32>
      tpu.vector_store %arg17[%c0_73, %c0_74], %156 {strides = array<i32>} : memref<128x128xf32, #tpu.memory_space<vmem>>, vector<128x128xf32>,
    } else {
    }
    %c0 = arith.constant 0 : index
    %c0_1 = arith.constant 0 : index
    %3 = vector.load %arg17[%c0, %c0_1] : memref<128x128xf32, #tpu.memory_space<vmem>>, vector<128x128xf32>
    %c0_2 = arith.constant 0 : index
    %c0_3 = arith.constant 0 : index
    %c0_4 = arith.constant 0 : index
    %4 = vector.load %arg3[%c0_2, %c0_3, %c0_4] : memref<1x1x128xf32, #tpu.memory_space<vmem>>, vector<1x1x128xf32>
    %5 = vector.shape_cast %4 : vector<1x1x128xf32> to vector<1x128xf32>
    %6 = arith.truncf %3 : vector<128x128xf32> to vector<128x128xbf16>
    %c0_5 = arith.constant 0 : index
    %c0_6 = arith.constant 0 : index
    %c0_7 = arith.constant 0 : index
    %7 = vector.load %arg4[%c0_5, %c0_6, %c0_7] : memref<1x128x384xbf16, #tpu.memory_space<vmem>>, vector<1x128x384xbf16>
    %8 = vector.shape_cast %7 : vector<1x128x384xbf16> to vector<128x384xbf16>
    %cst = arith.constant dense<0.000000e+00> : vector<128x384xf32>
    %9 = tpu.matmul %6, %8, %cst {dimension_numbers = #tpu.dot_dimension_numbers<[1], [0], [0], [1], [0, 0, 1, 1], [], []>} : vector<128x128xbf16>, vector<128x384xbf16>, vector<128x384xf32> -> vector<128x384xf32>
    %c0_8 = arith.constant 0 : index
    %c0_9 = arith.constant 0 : index
    %c0_10 = arith.constant 0 : index
    %10 = vector.load %arg5[%c0_8, %c0_9, %c0_10] : memref<1x1x384xf32, #tpu.memory_space<vmem>>, vector<1x1x384xf32>
    %11 = vector.shape_cast %10 : vector<1x1x384xf32> to vector<1x384xf32>
    %12 = vector.broadcast %11 : vector<1x384xf32> to vector<128x384xf32>
    %13 = arith.addf %9, %12 : vector<128x384xf32>
    %14 = vector.extract_strided_slice %13 {offsets = [0, 0], sizes = [128, 128], strides = [1, 1]} : vector<128x384xf32> to vector<128x128xf32>
    %15 = vector.extract_strided_slice %13 {offsets = [0, 128], sizes = [128, 128], strides = [1, 1]} : vector<128x384xf32> to vector<128x128xf32>
    %16 = vector.extract_strided_slice %13 {offsets = [0, 256], sizes = [128, 128], strides = [1, 1]} : vector<128x384xf32> to vector<128x128xf32>
    %17 = vector.extract_strided_slice %14 {offsets = [0, 0], sizes = [128, 64], strides = [1, 1]} : vector<128x128xf32> to vector<128x64xf32>
    %18 = arith.truncf %17 : vector<128x64xf32> to vector<128x64xbf16>
    %19 = vector.extract_strided_slice %15 {offsets = [0, 0], sizes = [128, 64], strides = [1, 1]} : vector<128x128xf32> to vector<128x64xf32>
    %20 = arith.truncf %19 : vector<128x64xf32> to vector<128x64xbf16>
    %21 = vector.extract_strided_slice %16 {offsets = [0, 0], sizes = [128, 64], strides = [1, 1]} : vector<128x128xf32> to vector<128x64xf32>
    %22 = arith.truncf %21 : vector<128x64xf32> to vector<128x64xbf16>
    %cst_11 = arith.constant dense<0.000000e+00> : vector<128x128xf32>
    %23 = tpu.matmul %18, %20, %cst_11 {dimension_numbers = #tpu.dot_dimension_numbers<[1], [1], [0], [0], [0, 0, 1, 0], [], []>} : vector<128x64xbf16>, vector<128x64xbf16>, vector<128x128xf32> -> vector<128x128xf32>
    %cst_12 = arith.constant 1.250000e-01 : f32
    %24 = vector.broadcast %cst_12 : f32 to vector<128x128xf32>
    %25 = arith.mulf %23, %24 : vector<128x128xf32>
    %26 = vector.broadcast %5 : vector<1x128xf32> to vector<128x128xf32>
    %27 = arith.addf %25, %26 : vector<128x128xf32>
    %cst_13 = arith.constant dense<0xFF800000> : vector<128xf32>
    %28 = vector.multi_reduction <maximumf>, %27, %cst_13 [1] : vector<128x128xf32> to vector<128xf32>
    %29 = vector.shape_cast %28 : vector<128xf32> to vector<128x1xf32>
    %30 = vector.broadcast %29 : vector<128x1xf32> to vector<128x128xf32>
    %31 = arith.subf %27, %30 : vector<128x128xf32>
    %32 = math.exp %31 : vector<128x128xf32>
    %cst_14 = arith.constant dense<0.000000e+00> : vector<128xf32>
    %33 = vector.multi_reduction <add>, %32, %cst_14 [1] : vector<128x128xf32> to vector<128xf32>
    %34 = vector.shape_cast %33 : vector<128xf32> to vector<128x1xf32>
    %35 = tpu.reciprocal %34 {approx = true} : vector<128x1xf32> -> vector<128x1xf32>
    %36 = vector.broadcast %35 : vector<128x1xf32> to vector<128x128xf32>
    %37 = arith.mulf %32, %36 : vector<128x128xf32>
    %38 = arith.truncf %37 : vector<128x128xf32> to vector<128x128xbf16>
    %cst_15 = arith.constant dense<0.000000e+00> : vector<128x64xf32>
    %39 = tpu.matmul %38, %22, %cst_15 {dimension_numbers = #tpu.dot_dimension_numbers<[1], [0], [0], [1], [0, 0, 1, 1], [], []>} : vector<128x128xbf16>, vector<128x64xbf16>, vector<128x64xf32> -> vector<128x64xf32>
    %40 = vector.extract_strided_slice %14 {offsets = [0, 64], sizes = [128, 64], strides = [1, 1]} : vector<128x128xf32> to vector<128x64xf32>
    %41 = arith.truncf %40 : vector<128x64xf32> to vector<128x64xbf16>
    %42 = vector.extract_strided_slice %15 {offsets = [0, 64], sizes = [128, 64], strides = [1, 1]} : vector<128x128xf32> to vector<128x64xf32>
    %43 = arith.truncf %42 : vector<128x64xf32> to vector<128x64xbf16>
    %44 = vector.extract_strided_slice %16 {offsets = [0, 64], sizes = [128, 64], strides = [1, 1]} : vector<128x128xf32> to vector<128x64xf32>
    %45 = arith.truncf %44 : vector<128x64xf32> to vector<128x64xbf16>
    %cst_16 = arith.constant dense<0.000000e+00> : vector<128x128xf32>
    %46 = tpu.matmul %41, %43, %cst_16 {dimension_numbers = #tpu.dot_dimension_numbers<[1], [1], [0], [0], [0, 0, 1, 0], [], []>} : vector<128x64xbf16>, vector<128x64xbf16>, vector<128x128xf32> -> vector<128x128xf32>
    %cst_17 = arith.constant 1.250000e-01 : f32
    %47 = vector.broadcast %cst_17 : f32 to vector<128x128xf32>
    %48 = arith.mulf %46, %47 : vector<128x128xf32>
    %49 = vector.broadcast %5 : vector<1x128xf32> to vector<128x128xf32>
    %50 = arith.addf %48, %49 : vector<128x128xf32>
    %cst_18 = arith.constant dense<0xFF800000> : vector<128xf32>
    %51 = vector.multi_reduction <maximumf>, %50, %cst_18 [1] : vector<128x128xf32> to vector<128xf32>
    %52 = vector.shape_cast %51 : vector<128xf32> to vector<128x1xf32>
    %53 = vector.broadcast %52 : vector<128x1xf32> to vector<128x128xf32>
    %54 = arith.subf %50, %53 : vector<128x128xf32>
    %55 = math.exp %54 : vector<128x128xf32>
    %cst_19 = arith.constant dense<0.000000e+00> : vector<128xf32>
    %56 = vector.multi_reduction <add>, %55, %cst_19 [1] : vector<128x128xf32> to vector<128xf32>
    %57 = vector.shape_cast %56 : vector<128xf32> to vector<128x1xf32>
    %58 = tpu.reciprocal %57 {approx = true} : vector<128x1xf32> -> vector<128x1xf32>
    %59 = vector.broadcast %58 : vector<128x1xf32> to vector<128x128xf32>
    %60 = arith.mulf %55, %59 : vector<128x128xf32>
    %61 = arith.truncf %60 : vector<128x128xf32> to vector<128x128xbf16>
    %cst_20 = arith.constant dense<0.000000e+00> : vector<128x64xf32>
    %62 = tpu.matmul %61, %45, %cst_20 {dimension_numbers = #tpu.dot_dimension_numbers<[1], [0], [0], [1], [0, 0, 1, 1], [], []>} : vector<128x128xbf16>, vector<128x64xbf16>, vector<128x64xf32> -> vector<128x64xf32>
    %63 = tpu.concatenate %39, %62 in 1 : vector<128x64xf32>, vector<128x64xf32> -> vector<128x128xf32>
    %64 = arith.truncf %63 : vector<128x128xf32> to vector<128x128xbf16>
    %c0_21 = arith.constant 0 : index
    %c0_22 = arith.constant 0 : index
    %c0_23 = arith.constant 0 : index
    %65 = vector.load %arg6[%c0_21, %c0_22, %c0_23] : memref<1x128x128xbf16, #tpu.memory_space<vmem>>, vector<1x128x128xbf16>
    %66 = vector.shape_cast %65 : vector<1x128x128xbf16> to vector<128x128xbf16>
    %cst_24 = arith.constant dense<0.000000e+00> : vector<128x128xf32>
    %67 = tpu.matmul %64, %66, %cst_24 {dimension_numbers = #tpu.dot_dimension_numbers<[1], [0], [0], [1], [0, 0, 1, 1], [], []>} : vector<128x128xbf16>, vector<128x128xbf16>, vector<128x128xf32> -> vector<128x128xf32>
    %c0_25 = arith.constant 0 : index
    %c0_26 = arith.constant 0 : index
    %c0_27 = arith.constant 0 : index
    %68 = vector.load %arg7[%c0_25, %c0_26, %c0_27] : memref<1x1x128xf32, #tpu.memory_space<vmem>>, vector<1x1x128xf32>
    %69 = vector.shape_cast %68 : vector<1x1x128xf32> to vector<1x128xf32>
    %70 = vector.broadcast %69 : vector<1x128xf32> to vector<128x128xf32>
    %71 = arith.addf %67, %70 : vector<128x128xf32>
    %72 = arith.addf %71, %3 : vector<128x128xf32>
    %c0_28 = arith.constant 0 : index
    %c0_29 = arith.constant 0 : index
    %c0_30 = arith.constant 0 : index
    %73 = vector.load %arg8[%c0_28, %c0_29, %c0_30] : memref<1x1x128xf32, #tpu.memory_space<vmem>>, vector<1x1x128xf32>
    %74 = vector.shape_cast %73 : vector<1x1x128xf32> to vector<1x128xf32>
    %c0_31 = arith.constant 0 : index
    %c0_32 = arith.constant 0 : index
    %c0_33 = arith.constant 0 : index
    %75 = vector.load %arg9[%c0_31, %c0_32, %c0_33] : memref<1x1x128xf32, #tpu.memory_space<vmem>>, vector<1x1x128xf32>
    %76 = vector.shape_cast %75 : vector<1x1x128xf32> to vector<1x128xf32>
    %cst_34 = arith.constant dense<0.000000e+00> : vector<128xf32>
    %77 = vector.multi_reduction <add>, %72, %cst_34 [1] : vector<128x128xf32> to vector<128xf32>
    %78 = vector.shape_cast %77 : vector<128xf32> to vector<128x1xf32>
    %cst_35 = arith.constant 1.280000e+02 : f32
    %79 = vector.broadcast %cst_35 : f32 to vector<128x1xf32>
    %80 = arith.divf %78, %79 : vector<128x1xf32>
    %81 = vector.broadcast %80 : vector<128x1xf32> to vector<128x128xf32>
    %82 = arith.subf %72, %81 : vector<128x128xf32>
    %83 = arith.mulf %82, %82 : vector<128x128xf32>
    %cst_36 = arith.constant dense<0.000000e+00> : vector<128xf32>
    %84 = vector.multi_reduction <add>, %83, %cst_36 [1] : vector<128x128xf32> to vector<128xf32>
    %85 = vector.shape_cast %84 : vector<128xf32> to vector<128x1xf32>
    %cst_37 = arith.constant 1.280000e+02 : f32
    %86 = vector.broadcast %cst_37 : f32 to vector<128x1xf32>
    %87 = arith.divf %85, %86 : vector<128x1xf32>
    %88 = vector.broadcast %80 : vector<128x1xf32> to vector<128x128xf32>
    %89 = arith.subf %72, %88 : vector<128x128xf32>
    %cst_38 = arith.constant 9.99999996E-13 : f32
    %90 = vector.broadcast %cst_38 : f32 to vector<128x1xf32>
    %91 = arith.addf %87, %90 : vector<128x1xf32>
    %92 = math.rsqrt %91 : vector<128x1xf32>
    %93 = vector.broadcast %92 : vector<128x1xf32> to vector<128x128xf32>
    %94 = arith.mulf %89, %93 : vector<128x128xf32>
    %95 = vector.broadcast %74 : vector<1x128xf32> to vector<128x128xf32>
    %96 = arith.mulf %94, %95 : vector<128x128xf32>
    %97 = vector.broadcast %76 : vector<1x128xf32> to vector<128x128xf32>
    %98 = arith.addf %96, %97 : vector<128x128xf32>
    %99 = arith.truncf %98 : vector<128x128xf32> to vector<128x128xbf16>
    %c0_39 = arith.constant 0 : index
    %c0_40 = arith.constant 0 : index
    %c0_41 = arith.constant 0 : index
    %100 = vector.load %arg10[%c0_39, %c0_40, %c0_41] : memref<1x128x512xbf16, #tpu.memory_space<vmem>>, vector<1x128x512xbf16>
    %101 = vector.shape_cast %100 : vector<1x128x512xbf16> to vector<128x512xbf16>
    %cst_42 = arith.constant dense<0.000000e+00> : vector<128x512xf32>
    %102 = tpu.matmul %99, %101, %cst_42 {dimension_numbers = #tpu.dot_dimension_numbers<[1], [0], [0], [1], [0, 0, 1, 1], [], []>} : vector<128x128xbf16>, vector<128x512xbf16>, vector<128x512xf32> -> vector<128x512xf32>
    %c0_43 = arith.constant 0 : index
    %c0_44 = arith.constant 0 : index
    %c0_45 = arith.constant 0 : index
    %103 = vector.load %arg11[%c0_43, %c0_44, %c0_45] : memref<1x1x512xf32, #tpu.memory_space<vmem>>, vector<1x1x512xf32>
    %104 = vector.shape_cast %103 : vector<1x1x512xf32> to vector<1x512xf32>
    %105 = vector.broadcast %104 : vector<1x512xf32> to vector<128x512xf32>
    %106 = arith.addf %102, %105 : vector<128x512xf32>
    %cst_46 = arith.constant 5.000000e-01 : f32
    %107 = vector.broadcast %cst_46 : f32 to vector<128x512xf32>
    %108 = arith.mulf %106, %107 : vector<128x512xf32>
    %cst_47 = arith.constant 2.000000e+00 : f32
    %109 = math.sqrt %cst_47 : f32
    %110 = vector.broadcast %109 : f32 to vector<128x512xf32>
    %111 = arith.divf %106, %110 : vector<128x512xf32>
    %112 = math.erf %111 : vector<128x512xf32>
    %cst_48 = arith.constant 1.000000e+00 : f32
    %113 = vector.broadcast %cst_48 : f32 to vector<128x512xf32>
    %114 = arith.addf %113, %112 : vector<128x512xf32>
    %115 = arith.mulf %108, %114 : vector<128x512xf32>
    %116 = arith.truncf %115 : vector<128x512xf32> to vector<128x512xbf16>
    %c0_49 = arith.constant 0 : index
    %c0_50 = arith.constant 0 : index
    %c0_51 = arith.constant 0 : index
    %117 = vector.load %arg12[%c0_49, %c0_50, %c0_51] : memref<1x512x128xbf16, #tpu.memory_space<vmem>>, vector<1x512x128xbf16>
    %118 = vector.shape_cast %117 : vector<1x512x128xbf16> to vector<512x128xbf16>
    %cst_52 = arith.constant dense<0.000000e+00> : vector<128x128xf32>
    %119 = tpu.matmul %116, %118, %cst_52 {dimension_numbers = #tpu.dot_dimension_numbers<[1], [0], [0], [1], [0, 0, 1, 1], [], []>} : vector<128x512xbf16>, vector<512x128xbf16>, vector<128x128xf32> -> vector<128x128xf32>
    %c0_53 = arith.constant 0 : index
    %c0_54 = arith.constant 0 : index
    %c0_55 = arith.constant 0 : index
    %120 = vector.load %arg13[%c0_53, %c0_54, %c0_55] : memref<1x1x128xf32, #tpu.memory_space<vmem>>, vector<1x1x128xf32>
    %121 = vector.shape_cast %120 : vector<1x1x128xf32> to vector<1x128xf32>
    %122 = vector.broadcast %121 : vector<1x128xf32> to vector<128x128xf32>
    %123 = arith.addf %119, %122 : vector<128x128xf32>
    %124 = arith.addf %123, %98 : vector<128x128xf32>
    %c0_56 = arith.constant 0 : index
    %c0_57 = arith.constant 0 : index
    %c0_58 = arith.constant 0 : index
    %125 = vector.load %arg14[%c0_56, %c0_57, %c0_58] : memref<1x1x128xf32, #tpu.memory_space<vmem>>, vector<1x1x128xf32>
    %126 = vector.shape_cast %125 : vector<1x1x128xf32> to vector<1x128xf32>
    %c0_59 = arith.constant 0 : index
    %c0_60 = arith.constant 0 : index
    %c0_61 = arith.constant 0 : index
    %127 = vector.load %arg15[%c0_59, %c0_60, %c0_61] : memref<1x1x128xf32, #tpu.memory_space<vmem>>, vector<1x1x128xf32>
    %128 = vector.shape_cast %127 : vector<1x1x128xf32> to vector<1x128xf32>
    %cst_62 = arith.constant dense<0.000000e+00> : vector<128xf32>
    %129 = vector.multi_reduction <add>, %124, %cst_62 [1] : vector<128x128xf32> to vector<128xf32>
    %130 = vector.shape_cast %129 : vector<128xf32> to vector<128x1xf32>
    %cst_63 = arith.constant 1.280000e+02 : f32
    %131 = vector.broadcast %cst_63 : f32 to vector<128x1xf32>
    %132 = arith.divf %130, %131 : vector<128x1xf32>
    %133 = vector.broadcast %132 : vector<128x1xf32> to vector<128x128xf32>
    %134 = arith.subf %124, %133 : vector<128x128xf32>
    %135 = arith.mulf %134, %134 : vector<128x128xf32>
    %cst_64 = arith.constant dense<0.000000e+00> : vector<128xf32>
    %136 = vector.multi_reduction <add>, %135, %cst_64 [1] : vector<128x128xf32> to vector<128xf32>
    %137 = vector.shape_cast %136 : vector<128xf32> to vector<128x1xf32>
    %cst_65 = arith.constant 1.280000e+02 : f32
    %138 = vector.broadcast %cst_65 : f32 to vector<128x1xf32>
    %139 = arith.divf %137, %138 : vector<128x1xf32>
    %140 = vector.broadcast %132 : vector<128x1xf32> to vector<128x128xf32>
    %141 = arith.subf %124, %140 : vector<128x128xf32>
    %cst_66 = arith.constant 9.99999996E-13 : f32
    %142 = vector.broadcast %cst_66 : f32 to vector<128x1xf32>
    %143 = arith.addf %139, %142 : vector<128x1xf32>
    %144 = math.rsqrt %143 : vector<128x1xf32>
    %145 = vector.broadcast %144 : vector<128x1xf32> to vector<128x128xf32>
    %146 = arith.mulf %141, %145 : vector<128x128xf32>
    %147 = vector.broadcast %126 : vector<1x128xf32> to vector<128x128xf32>
    %148 = arith.mulf %146, %147 : vector<128x128xf32>
    %149 = vector.broadcast %128 : vector<1x128xf32> to vector<128x128xf32>
    %150 = arith.addf %148, %149 : vector<128x128xf32>
    %c0_67 = arith.constant 0 : index
    %c0_68 = arith.constant 0 : index
    %151 = vector.load %arg17[%c0_67, %c0_68] : memref<128x128xf32, #tpu.memory_space<vmem>>, vector<128x128xf32>
    tpu.vector_store %arg17[%c0_67, %c0_68], %150 {strides = array<i32>} : memref<128x128xf32, #tpu.memory_space<vmem>>, vector<128x128xf32>,
    %c1_i32 = arith.constant 1 : i32
    %152 = arith.cmpi eq, %arg1, %c1_i32 : i32
    %153 = arith.extui %152 : i1 to i32
    %c0_i32_69 = arith.constant 0 : i32
    %154 = arith.cmpi ne, %153, %c0_i32_69 : i32
    scf.if %154 {
      %c0_70 = arith.constant 0 : index
      %c0_71 = arith.constant 0 : index
      %c0_72 = arith.constant 0 : index
      %155 = vector.load %arg16[%c0_70, %c0_71, %c0_72] : memref<1x128x128xf32, #tpu.memory_space<vmem>>, vector<1x128x128xf32>
      %156 = vector.shape_cast %155 : vector<1x128x128xf32> to vector<128x128xf32>
      %157 = vector.shape_cast %150 : vector<128x128xf32> to vector<1x128x128xf32>
      tpu.vector_store %arg16[%c0_70, %c0_71, %c0_72], %157 {strides = array<i32>} : memref<1x128x128xf32, #tpu.memory_space<vmem>>, vector<1x128x128xf32>,
    } else {
    }
    return
  }
  func.func @transform_0(%arg0: i32, %arg1: i32) -> (i32, i32, i32) {
    %c0_i32 = arith.constant 0 : i32
    %c0_i32_0 = arith.constant 0 : i32
    %c0_i32_1 = arith.constant 0 : i32
    return %arg0, %c0_i32, %c0_i32_0 : i32, i32, i32
  }
  func.func @transform_1(%arg0: i32, %arg1: i32) -> (i32, i32, i32) {
    %c0_i32 = arith.constant 0 : i32
    %c0_i32_0 = arith.constant 0 : i32
    %c0_i32_1 = arith.constant 0 : i32
    return %arg0, %c0_i32, %c0_i32_0 : i32, i32, i32
  }
  func.func @transform_2(%arg0: i32, %arg1: i32) -> (i32, i32, i32) {
    %c0_i32 = arith.constant 0 : i32
    %c0_i32_0 = arith.constant 0 : i32
    %c0_i32_1 = arith.constant 0 : i32
    return %arg1, %c0_i32, %c0_i32_0 : i32, i32, i32
  }
  func.func @transform_3(%arg0: i32, %arg1: i32) -> (i32, i32, i32) {
    %c0_i32 = arith.constant 0 : i32
    %c0_i32_0 = arith.constant 0 : i32
    %c0_i32_1 = arith.constant 0 : i32
    return %arg1, %c0_i32, %c0_i32_0 : i32, i32, i32
  }
  func.func @transform_4(%arg0: i32, %arg1: i32) -> (i32, i32, i32) {
    %c0_i32 = arith.constant 0 : i32
    %c0_i32_0 = arith.constant 0 : i32
    %c0_i32_1 = arith.constant 0 : i32
    return %arg1, %c0_i32, %c0_i32_0 : i32, i32, i32
  }
  func.func @transform_5(%arg0: i32, %arg1: i32) -> (i32, i32, i32) {
    %c0_i32 = arith.constant 0 : i32
    %c0_i32_0 = arith.constant 0 : i32
    %c0_i32_1 = arith.constant 0 : i32
    return %arg1, %c0_i32, %c0_i32_0 : i32, i32, i32
  }
  func.func @transform_6(%arg0: i32, %arg1: i32) -> (i32, i32, i32) {
    %c0_i32 = arith.constant 0 : i32
    %c0_i32_0 = arith.constant 0 : i32
    %c0_i32_1 = arith.constant 0 : i32
    return %arg1, %c0_i32, %c0_i32_0 : i32, i32, i32
  }
  func.func @transform_7(%arg0: i32, %arg1: i32) -> (i32, i32, i32) {
    %c0_i32 = arith.constant 0 : i32
    %c0_i32_0 = arith.constant 0 : i32
    %c0_i32_1 = arith.constant 0 : i32
    return %arg1, %c0_i32, %c0_i32_0 : i32, i32, i32
  }
  func.func @transform_8(%arg0: i32, %arg1: i32) -> (i32, i32, i32) {
    %c0_i32 = arith.constant 0 : i32
    %c0_i32_0 = arith.constant 0 : i32
    %c0_i32_1 = arith.constant 0 : i32
    return %arg1, %c0_i32, %c0_i32_0 : i32, i32, i32
  }
  func.func @transform_9(%arg0: i32, %arg1: i32) -> (i32, i32, i32) {
    %c0_i32 = arith.constant 0 : i32
    %c0_i32_0 = arith.constant 0 : i32
    %c0_i32_1 = arith.constant 0 : i32
    return %arg1, %c0_i32, %c0_i32_0 : i32, i32, i32
  }
  func.func @transform_10(%arg0: i32, %arg1: i32) -> (i32, i32, i32) {
    %c0_i32 = arith.constant 0 : i32
    %c0_i32_0 = arith.constant 0 : i32
    %c0_i32_1 = arith.constant 0 : i32
    return %arg1, %c0_i32, %c0_i32_0 : i32, i32, i32
  }
  func.func @transform_11(%arg0: i32, %arg1: i32) -> (i32, i32, i32) {
    %c0_i32 = arith.constant 0 : i32
    %c0_i32_0 = arith.constant 0 : i32
    %c0_i32_1 = arith.constant 0 : i32
    return %arg1, %c0_i32, %c0_i32_0 : i32, i32, i32
  }
  func.func @transform_12(%arg0: i32, %arg1: i32) -> (i32, i32, i32) {
    %c0_i32 = arith.constant 0 : i32
    %c0_i32_0 = arith.constant 0 : i32
    %c0_i32_1 = arith.constant 0 : i32
    return %arg1, %c0_i32, %c0_i32_0 : i32, i32, i32
  }
  func.func @transform_13(%arg0: i32, %arg1: i32) -> (i32, i32, i32) {
    %c0_i32 = arith.constant 0 : i32
    %c0_i32_0 = arith.constant 0 : i32
    %c0_i32_1 = arith.constant 0 : i32
    return %arg1, %c0_i32, %c0_i32_0 : i32, i32, i32
  }
  func.func @transform_14(%arg0: i32, %arg1: i32) -> (i32, i32, i32) {
    %c0_i32 = arith.constant 0 : i32
    %c0_i32_0 = arith.constant 0 : i32
    %c0_i32_1 = arith.constant 0 : i32
    return %arg0, %c0_i32, %c0_i32_0 : i32, i32, i32
  }
}

module attributes {stable_mosaic.version = 11 : i64} {
  func.func @_head_kernel(%arg0: i32, %arg1: memref<2x128xf32, #tpu.memory_space<vmem>>, %arg2: memref<128x128xbf16, #tpu.memory_space<vmem>>, %arg3: memref<1x128xf32, #tpu.memory_space<vmem>>, %arg4: memref<1x128xf32, #tpu.memory_space<vmem>>, %arg5: memref<1x128xf32, #tpu.memory_space<vmem>>, %arg6: memref<2x128xf32, #tpu.memory_space<vmem>>) attributes {dimension_semantics = [#tpu.dimension_semantics<arbitrary>], iteration_bounds = array<i64: 1>, scalar_prefetch = 0 : i64, scratch_operands = 0 : i64, tpu.core_type = #tpu.core_type<tc>, window_params = [{pipeline_mode = #tpu.pipeline_mode<synchronous>, transform_indices = @transform_0, window_bounds = array<i64: 2, 128>}, {pipeline_mode = #tpu.pipeline_mode<synchronous>, transform_indices = @transform_1, window_bounds = array<i64: 128, 128>}, {pipeline_mode = #tpu.pipeline_mode<synchronous>, transform_indices = @transform_2, window_bounds = array<i64: 1, 128>}, {pipeline_mode = #tpu.pipeline_mode<synchronous>, transform_indices = @transform_3, window_bounds = array<i64: 1, 128>}, {pipeline_mode = #tpu.pipeline_mode<synchronous>, transform_indices = @transform_4, window_bounds = array<i64: 1, 128>}, {pipeline_mode = #tpu.pipeline_mode<synchronous>, transform_indices = @transform_5, window_bounds = array<i64: 2, 128>}]} {
    %c0 = arith.constant 0 : index
    %c0_0 = arith.constant 0 : index
    %0 = vector.load %arg1[%c0, %c0_0] : memref<2x128xf32, #tpu.memory_space<vmem>>, vector<2x128xf32>
    %1 = arith.truncf %0 : vector<2x128xf32> to vector<2x128xbf16>
    %c0_1 = arith.constant 0 : index
    %c0_2 = arith.constant 0 : index
    %2 = vector.load %arg2[%c0_1, %c0_2] : memref<128x128xbf16, #tpu.memory_space<vmem>>, vector<128x128xbf16>
    %cst = arith.constant dense<0.000000e+00> : vector<2x128xf32>
    %3 = tpu.matmul %1, %2, %cst {dimension_numbers = #tpu.dot_dimension_numbers<[1], [0], [0], [1], [0, 0, 1, 1], [], []>} : vector<2x128xbf16>, vector<128x128xbf16>, vector<2x128xf32> -> vector<2x128xf32>
    %c0_3 = arith.constant 0 : index
    %c0_4 = arith.constant 0 : index
    %4 = vector.load %arg3[%c0_3, %c0_4] : memref<1x128xf32, #tpu.memory_space<vmem>>, vector<1x128xf32>
    %5 = vector.broadcast %4 : vector<1x128xf32> to vector<2x128xf32>
    %6 = arith.addf %3, %5 : vector<2x128xf32>
    %cst_5 = arith.constant 5.000000e-01 : f32
    %7 = vector.broadcast %cst_5 : f32 to vector<2x128xf32>
    %8 = arith.mulf %6, %7 : vector<2x128xf32>
    %cst_6 = arith.constant 2.000000e+00 : f32
    %9 = math.sqrt %cst_6 : f32
    %10 = vector.broadcast %9 : f32 to vector<2x128xf32>
    %11 = arith.divf %6, %10 : vector<2x128xf32>
    %12 = math.erf %11 : vector<2x128xf32>
    %cst_7 = arith.constant 1.000000e+00 : f32
    %13 = vector.broadcast %cst_7 : f32 to vector<2x128xf32>
    %14 = arith.addf %13, %12 : vector<2x128xf32>
    %15 = arith.mulf %8, %14 : vector<2x128xf32>
    %c0_8 = arith.constant 0 : index
    %c0_9 = arith.constant 0 : index
    %16 = vector.load %arg4[%c0_8, %c0_9] : memref<1x128xf32, #tpu.memory_space<vmem>>, vector<1x128xf32>
    %c0_10 = arith.constant 0 : index
    %c0_11 = arith.constant 0 : index
    %17 = vector.load %arg5[%c0_10, %c0_11] : memref<1x128xf32, #tpu.memory_space<vmem>>, vector<1x128xf32>
    %cst_12 = arith.constant dense<0.000000e+00> : vector<2xf32>
    %18 = vector.multi_reduction <add>, %15, %cst_12 [1] : vector<2x128xf32> to vector<2xf32>
    %19 = vector.shape_cast %18 : vector<2xf32> to vector<2x1xf32>
    %cst_13 = arith.constant 1.280000e+02 : f32
    %20 = vector.broadcast %cst_13 : f32 to vector<2x1xf32>
    %21 = arith.divf %19, %20 : vector<2x1xf32>
    %22 = vector.broadcast %21 : vector<2x1xf32> to vector<2x128xf32>
    %23 = arith.subf %15, %22 : vector<2x128xf32>
    %24 = arith.mulf %23, %23 : vector<2x128xf32>
    %cst_14 = arith.constant dense<0.000000e+00> : vector<2xf32>
    %25 = vector.multi_reduction <add>, %24, %cst_14 [1] : vector<2x128xf32> to vector<2xf32>
    %26 = vector.shape_cast %25 : vector<2xf32> to vector<2x1xf32>
    %cst_15 = arith.constant 1.280000e+02 : f32
    %27 = vector.broadcast %cst_15 : f32 to vector<2x1xf32>
    %28 = arith.divf %26, %27 : vector<2x1xf32>
    %29 = vector.broadcast %21 : vector<2x1xf32> to vector<2x128xf32>
    %30 = arith.subf %15, %29 : vector<2x128xf32>
    %cst_16 = arith.constant 9.99999996E-13 : f32
    %31 = vector.broadcast %cst_16 : f32 to vector<2x1xf32>
    %32 = arith.addf %28, %31 : vector<2x1xf32>
    %33 = math.rsqrt %32 : vector<2x1xf32>
    %34 = vector.broadcast %33 : vector<2x1xf32> to vector<2x128xf32>
    %35 = arith.mulf %30, %34 : vector<2x128xf32>
    %36 = vector.broadcast %16 : vector<1x128xf32> to vector<2x128xf32>
    %37 = arith.mulf %35, %36 : vector<2x128xf32>
    %38 = vector.broadcast %17 : vector<1x128xf32> to vector<2x128xf32>
    %39 = arith.addf %37, %38 : vector<2x128xf32>
    %c0_17 = arith.constant 0 : index
    %c0_18 = arith.constant 0 : index
    %40 = vector.load %arg6[%c0_17, %c0_18] : memref<2x128xf32, #tpu.memory_space<vmem>>, vector<2x128xf32>
    tpu.vector_store %arg6[%c0_17, %c0_18], %39 {strides = array<i32>} : memref<2x128xf32, #tpu.memory_space<vmem>>, vector<2x128xf32>,
    return
  }
  func.func @transform_0(%arg0: i32) -> (i32, i32) {
    %c0_i32 = arith.constant 0 : i32
    %c0_i32_0 = arith.constant 0 : i32
    %c0_i32_1 = arith.constant 0 : i32
    return %c0_i32, %c0_i32_0 : i32, i32
  }
  func.func @transform_1(%arg0: i32) -> (i32, i32) {
    %c0_i32 = arith.constant 0 : i32
    %c0_i32_0 = arith.constant 0 : i32
    %c0_i32_1 = arith.constant 0 : i32
    return %c0_i32, %c0_i32_0 : i32, i32
  }
  func.func @transform_2(%arg0: i32) -> (i32, i32) {
    %c0_i32 = arith.constant 0 : i32
    %c0_i32_0 = arith.constant 0 : i32
    %c0_i32_1 = arith.constant 0 : i32
    return %c0_i32, %c0_i32_0 : i32, i32
  }
  func.func @transform_3(%arg0: i32) -> (i32, i32) {
    %c0_i32 = arith.constant 0 : i32
    %c0_i32_0 = arith.constant 0 : i32
    %c0_i32_1 = arith.constant 0 : i32
    return %c0_i32, %c0_i32_0 : i32, i32
  }
  func.func @transform_4(%arg0: i32) -> (i32, i32) {
    %c0_i32 = arith.constant 0 : i32
    %c0_i32_0 = arith.constant 0 : i32
    %c0_i32_1 = arith.constant 0 : i32
    return %c0_i32, %c0_i32_0 : i32, i32
  }
  func.func @transform_5(%arg0: i32) -> (i32, i32) {
    %c0_i32 = arith.constant 0 : i32
    %c0_i32_0 = arith.constant 0 : i32
    %c0_i32_1 = arith.constant 0 : i32
    return %c0_i32, %c0_i32_0 : i32, i32
  }
}

</mosaic_0001>

<llo_original>
// kernel: forward_huffpost.3
$region0: #{forward_huffpost.3}
  #allocation0 [shape = 'u32[]', space=smem, size = 0x4, offset = 0x4, fixed_abs, tag = 'smem constant byte address 0x4 - core index']
  #allocation1 [shape = 'u32[144,128]{1,0:T(1,128)}', space=vmem, size = 0x12000, scoped, tag = 'internal scratch']
  %s0 = inlined_call_operand.vmem [shape: f32[2,128,128], index: 0, kind: input, shape index: {}]
  %s1 = inlined_call_operand.vmem [shape: f32[128,128], index: 1, kind: input, shape index: {}]
  %s2 = inlined_call_operand.vmem [shape: f32[1,128], index: 2, kind: input, shape index: {}]
  %s3 = inlined_call_operand.vmem [shape: f32[1,128], index: 3, kind: input, shape index: {}]
  %s4 = inlined_call_operand.vmem [shape: f32[2,128,128], index: 4, kind: output, shape index: {}]
  %s5 = sld [smem:[#allocation0]]
  $region49: #{forward_huffpost.3} parent=0
    _
  %s7 = ssub.s32 1, %s5
  %s8 = scalar_select 0, %s7, %s5
  loop: start=0, step=1, limit=4
  $region2: #{forward_huffpost.3} parent=0 // loop_pre_header
    _
  $region3: #{forward_huffpost.3} parent=0 // loop_header
    %s10 = sphi 0, %s14
    %p11 = scmp.ge.s32.totalorder %s10, 4
    %s20 = sphi 0, %s22
    %s23 = sphi 0, %s20
    %s24 = sphi 0, %s23
    %s40 = sphi 0, %s24
    %s44 = sphi 0, %s44
    %s46 = sphi 0, %s44
    %s47 = sphi 0, %s46
    %s61 = sphi 0, %s47
    %s65 = sphi 0, %s65
    %s67 = sphi 0, %s65
    %s68 = sphi 0, %s67
    %s82 = sphi 0, %s68
    %s86 = sphi 0, %s86
    %s88 = sphi 0, %s86
    %s89 = sphi 0, %s88
    %s103 = sphi 0, %s89
    %s109 = sphi 0, %s111
    %s112 = sphi 0, %s109
    %s113 = sphi 0, %s112
    %s129 = sphi 0, %s113
  $region4: #{forward_huffpost.3} parent=0 // loop_header_branch
    %13 = sbr.rel (%p11) target = $region8
  $region5: #{forward_huffpost.3} parent=0 // loop_body
    %s15 = ssub.s32 %s10, 1
    %s16 = ssub.s32 %s10, 2
    %s17 = sadd.s32 %s10, 1
    %s18 = ssub.s32 %s10, %s17
    %p19 = scmp.eq.s32.totalorder %s18, 0
    %s21 = sadd.s32 %s20, 1
    %s22 = scalar_select %p19, %s20, %s21
    %p25 = pneg %p19
    %p26 = scmp.eq.s32.totalorder %s10, 1
    %p27 = por %p25, %p26
    %p28 = scmp.ne.s32.totalorder %s20, %s23
    %p29 = scmp.eq.s32.totalorder %s10, 0
    %p30 = por %p28, %p29
    %p31 = scmp.ne.s32.totalorder %s20, %s23
    %p32 = scmp.eq.s32.totalorder %s15, 1
    %p33 = por %p31, %p32
    %p34 = scmp.ne.s32.totalorder %s23, %s24
    %p35 = scmp.eq.s32.totalorder %s15, 0
    %p36 = por %p34, %p35
    %p37 = scmp.ne.s32.totalorder %s23, %s24
    %p38 = scmp.eq.s32.totalorder %s16, 1
    %p39 = por %p37, %p38
    %p41 = scmp.ne.s32.totalorder %s24, %s40
    %p42 = scmp.eq.s32.totalorder %s16, 0
    %p43 = por %p41, %p42
    %s45 = sadd.s32 %s44, 1
    %p48 = scmp.eq.s32.totalorder %s10, 1
    %p49 = scmp.ne.s32.totalorder %s44, %s46
    %p50 = scmp.eq.s32.totalorder %s10, 0
    %p51 = por %p49, %p50
    %p52 = scmp.ne.s32.totalorder %s44, %s46
    %p53 = scmp.eq.s32.totalorder %s15, 1
    %p54 = por %p52, %p53
    %p55 = scmp.ne.s32.totalorder %s46, %s47
    %p56 = scmp.eq.s32.totalorder %s15, 0
    %p57 = por %p55, %p56
    %p58 = scmp.ne.s32.totalorder %s46, %s47
    %p59 = scmp.eq.s32.totalorder %s16, 1
    %p60 = por %p58, %p59
    %p62 = scmp.ne.s32.totalorder %s47, %s61
    %p63 = scmp.eq.s32.totalorder %s16, 0
    %p64 = por %p62, %p63
    %s66 = sadd.s32 %s65, 1
    %p69 = scmp.eq.s32.totalorder %s10, 1
    %p70 = scmp.ne.s32.totalorder %s65, %s67
    %p71 = scmp.eq.s32.totalorder %s10, 0
    %p72 = por %p70, %p71
    %p73 = scmp.ne.s32.totalorder %s65, %s67
    %p74 = scmp.eq.s32.totalorder %s15, 1
    %p75 = por %p73, %p74
    %p76 = scmp.ne.s32.totalorder %s67, %s68
    %p77 = scmp.eq.s32.totalorder %s15, 0
    %p78 = por %p76, %p77
    %p79 = scmp.ne.s32.totalorder %s67, %s68
    %p80 = scmp.eq.s32.totalorder %s16, 1
    %p81 = por %p79, %p80
    %p83 = scmp.ne.s32.totalorder %s68, %s82
    %p84 = scmp.eq.s32.totalorder %s16, 0
    %p85 = por %p83, %p84
    %s87 = sadd.s32 %s86, 1
    %p90 = scmp.eq.s32.totalorder %s10, 1
    %p91 = scmp.ne.s32.totalorder %s86, %s88
    %p92 = scmp.eq.s32.totalorder %s10, 0
    %p93 = por %p91, %p92
    %p94 = scmp.ne.s32.totalorder %s86, %s88
    %p95 = scmp.eq.s32.totalorder %s15, 1
    %p96 = por %p94, %p95
    %p97 = scmp.ne.s32.totalorder %s88, %s89
    %p98 = scmp.eq.s32.totalorder %s15, 0
    %p99 = por %p97, %p98
    %p100 = scmp.ne.s32.totalorder %s88, %s89
    %p101 = scmp.eq.s32.totalorder %s16, 1
    %p102 = por %p100, %p101
    %p104 = scmp.ne.s32.totalorder %s89, %s103
    %p105 = scmp.eq.s32.totalorder %s16, 0
    %p106 = por %p104, %p105
    %s107 = ssub.s32 %s10, %s17
    %p108 = scmp.eq.s32.totalorder %s107, 0
    %s110 = sadd.s32 %s109, 1
    %s111 = scalar_select %p108, %s109, %s110
    %p114 = pneg %p108
    %p115 = scmp.eq.s32.totalorder %s10, 1
    %p116 = por %p114, %p115
    %p117 = scmp.ne.s32.totalorder %s109, %s112
    %p118 = scmp.eq.s32.totalorder %s10, 0
    %p119 = por %p117, %p118
    %p120 = scmp.ne.s32.totalorder %s109, %s112
    %p121 = scmp.eq.s32.totalorder %s15, 1
    %p122 = por %p120, %p121
    %p123 = scmp.ne.s32.totalorder %s112, %s113
    %p124 = scmp.eq.s32.totalorder %s15, 0
    %p125 = por %p123, %p124
    %p126 = scmp.ne.s32.totalorder %s112, %s113
    %p127 = scmp.eq.s32.totalorder %s16, 1
    %p128 = por %p126, %p127
    %p130 = scmp.ne.s32.totalorder %s113, %s129
    %p131 = scmp.eq.s32.totalorder %s16, 0
    %p132 = por %p130, %p131
    %p133 = scmp.le.s32.totalorder 1, %s10
    %p134 = scmp.lt.s32.totalorder %s10, 3
    %p135 = pnand %p133, %p134
    %p136 = pneg %p135
    // Predicated region
    $region9: #{forward_huffpost.3} parent=5 // pred_check
      _
    $region10: #{forward_huffpost.3} parent=5 // pred_check_branch
      %138 = sbr.rel (%p135) target = $region12
    $region11: #{forward_huffpost.3} parent=5 // pred_region
      %s139 = ssub.s32 %s10, 1
      // Predicated region
      $region13: #{forward_huffpost.3} parent=11 // pred_check
        %p140 = pneg %p57
      $region14: #{forward_huffpost.3} parent=11 // pred_check_branch
        %142 = sbr.rel (%p140) target = $region16
      $region15: #{forward_huffpost.3} parent=11 // pred_region
        _
      $region16: #{forward_huffpost.3} parent=11 // pred_fallthru
        _
      // Predicated region
      $region17: #{forward_huffpost.3} parent=11 // pred_check
        %p143 = pneg %p78
      $region18: #{forward_huffpost.3} parent=11 // pred_check_branch
        %145 = sbr.rel (%p143) target = $region20
      $region19: #{forward_huffpost.3} parent=11 // pred_region
        _
      $region20: #{forward_huffpost.3} parent=11 // pred_fallthru
        _
      // Predicated region
      $region21: #{forward_huffpost.3} parent=11 // pred_check
        %p146 = pneg %p99
      $region22: #{forward_huffpost.3} parent=11 // pred_check_branch
        %148 = sbr.rel (%p146) target = $region24
      $region23: #{forward_huffpost.3} parent=11 // pred_region
        _
      $region24: #{forward_huffpost.3} parent=11 // pred_fallthru
        _
    $region12: #{forward_huffpost.3} parent=5 // pred_fallthru
      _
    %p149 = scmp.lt.s32.totalorder %s10, 2
    // Predicated region
    $region25: #{forward_huffpost.3} parent=5 // pred_check
      %p150 = pneg %p149
    $region26: #{forward_huffpost.3} parent=5 // pred_check_branch
      %152 = sbr.rel (%p150) target = $region28
    $region27: #{forward_huffpost.3} parent=5 // pred_region
      // Predicated region
      $region29: #{forward_huffpost.3} parent=27 // pred_check
        %p153 = pneg %p30
      $region30: #{forward_huffpost.3} parent=27 // pred_check_branch
        %155 = sbr.rel (%p153) target = $region32
      $region31: #{forward_huffpost.3} parent=27 // pred_region
        %p156 = scmp.lt.s32.totalorder %s10, 1
        %s157 = scalar_select %p156, %s10, 1
        %s158 = smul.addr %s157, 16
        %s159 = smul.addr %s158, 8
        %s160 = scalar_lea.vmem %s0, %s159
      $region32: #{forward_huffpost.3} parent=27 // pred_fallthru
        _
    $region28: #{forward_huffpost.3} parent=5 // pred_fallthru
      _
    %p161 = scmp.le.s32.totalorder 1, %s10
    %p162 = scmp.lt.s32.totalorder %s10, 3
    %p163 = pnand %p161, %p162
    %p164 = pneg %p163
    // Predicated region
    $region33: #{forward_huffpost.3} parent=5 // pred_check
      _
    $region34: #{forward_huffpost.3} parent=5 // pred_check_branch
      %166 = sbr.rel (%p163) target = $region36
    $region35: #{forward_huffpost.3} parent=5 // pred_region
      %s167 = ssub.s32 %s10, 1
      %p168 = scmp.lt.s32.totalorder %s15, 1
      %s169 = scalar_select %p168, %s15, 1
      %s170 = smul.addr %s169, 16
      %s171 = smul.addr %s170, 8
      %s172 = scalar_lea.vmem %s0, %s171
      %p173 = pneg %p36
      %p174 = pneg %p33
      %p175 = pneg %p57
      %p176 = pneg %p54
      %p177 = pneg %p78
      %p178 = pneg %p75
      %p179 = pneg %p99
      %p180 = pneg %p96
      %p181 = pneg %p125
      %p182 = pneg %p122
      %p183 = scmp.lt.s32.totalorder %s15, 1
      %s184 = scalar_select %p183, %s15, 1
      %s185 = smul.addr %s184, 16
      %s186 = smul.addr %s185, 8
      %s187 = scalar_lea.vmem %s4, %s186
      %p188 = scmp.lt.s32.totalorder %s15, 1
      %s189 = scalar_select %p188, %s15, 1
      %s190 = smul.addr %s189, 16
      %s191 = smul.addr %s190, 8
      %s192 = scalar_lea.vmem %s0, %s191
      %p193 = scmp.lt.s32.totalorder %s15, 1
      %s194 = scalar_select %p193, %s15, 1
      %s195 = smul.addr %s194, 16
      %s196 = smul.addr %s195, 8
      %s197 = scalar_lea.vmem %s4, %s196
      %v198 = vld [vmem:[%s192] sm:$0xff]
      %v199 = vld [vmem:[%s192 + $0x8] sm:$0xff]
      %v200 = vld [vmem:[%s192 + $0x10] sm:$0xff]
      %v201 = vld [vmem:[%s192 + $0x18] sm:$0xff]
      %v202 = vld [vmem:[%s192 + $0x20] sm:$0xff]
      %v203 = vld [vmem:[%s192 + $0x28] sm:$0xff]
      %v204 = vld [vmem:[%s192 + $0x30] sm:$0xff]
      %v205 = vld [vmem:[%s192 + $0x38] sm:$0xff]
      %v206 = vld [vmem:[%s192 + $0x40] sm:$0xff]
      %v207 = vld [vmem:[%s192 + $0x48] sm:$0xff]
      %v208 = vld [vmem:[%s192 + $0x50] sm:$0xff]
      %v209 = vld [vmem:[%s192 + $0x58] sm:$0xff]
      %v210 = vld [vmem:[%s192 + $0x60] sm:$0xff]
      %v211 = vld [vmem:[%s192 + $0x68] sm:$0xff]
      %v212 = vld [vmem:[%s192 + $0x70] sm:$0xff]
      %v213 = vld [vmem:[%s192 + $0x78] sm:$0xff]
      %v214 = vld [vmem:[%s1] sm:$0xff]
      %v215 = vld [vmem:[%s1 + $0x8] sm:$0xff]
      %v216 = vld [vmem:[%s1 + $0x10] sm:$0xff]
      %v217 = vld [vmem:[%s1 + $0x18] sm:$0xff]
      %v218 = vld [vmem:[%s1 + $0x20] sm:$0xff]
      %v219 = vld [vmem:[%s1 + $0x28] sm:$0xff]
      %v220 = vld [vmem:[%s1 + $0x30] sm:$0xff]
      %v221 = vld [vmem:[%s1 + $0x38] sm:$0xff]
      %v222 = vld [vmem:[%s1 + $0x40] sm:$0xff]
      %v223 = vld [vmem:[%s1 + $0x48] sm:$0xff]
      %v224 = vld [vmem:[%s1 + $0x50] sm:$0xff]
      %v225 = vld [vmem:[%s1 + $0x58] sm:$0xff]
      %v226 = vld [vmem:[%s1 + $0x60] sm:$0xff]
      %v227 = vld [vmem:[%s1 + $0x68] sm:$0xff]
      %v228 = vld [vmem:[%s1 + $0x70] sm:$0xff]
      %v229 = vld [vmem:[%s1 + $0x78] sm:$0xff]
      %v230 = vadd.f32 %v198, %v214
      %v231 = vadd.f32 %v199, %v215
      %v232 = vadd.f32 %v200, %v216
      %v233 = vadd.f32 %v201, %v217
      %v234 = vadd.f32 %v202, %v218
      %v235 = vadd.f32 %v203, %v219
      %v236 = vadd.f32 %v204, %v220
      %v237 = vadd.f32 %v205, %v221
      %v238 = vadd.f32 %v206, %v222
      %v239 = vadd.f32 %v207, %v223
      %v240 = vadd.f32 %v208, %v224
      %v241 = vadd.f32 %v209, %v225
      %v242 = vadd.f32 %v210, %v226
      %v243 = vadd.f32 %v211, %v227
      %v244 = vadd.f32 %v212, %v228
      %v245 = vadd.f32 %v213, %v229
      %v246 = vld [vmem:[%s2] sm:$0x1]
      %v247 = vld [vmem:[%s3] sm:$0x1]
      %248 = vadd.xlane.f32.xlu0 %v230
      %v249 = vpop.xlane.xlu0 %248
      %250 = vadd.xlane.f32.xlu0 %v231
      %v251 = vpop.xlane.xlu0 %250
      %252 = vadd.xlane.f32.xlu0 %v232
      %v253 = vpop.xlane.xlu0 %252
      %254 = vadd.xlane.f32.xlu0 %v233
      %v255 = vpop.xlane.xlu0 %254
      %256 = vadd.xlane.f32.xlu0 %v234
      %v257 = vpop.xlane.xlu0 %256
      %258 = vadd.xlane.f32.xlu0 %v235
      %v259 = vpop.xlane.xlu0 %258
      %260 = vadd.xlane.f32.xlu0 %v236
      %v261 = vpop.xlane.xlu0 %260
      %262 = vadd.xlane.f32.xlu0 %v237
      %v263 = vpop.xlane.xlu0 %262
      %264 = vadd.xlane.f32.xlu0 %v238
      %v265 = vpop.xlane.xlu0 %264
      %266 = vadd.xlane.f32.xlu0 %v239
      %v267 = vpop.xlane.xlu0 %266
      %268 = vadd.xlane.f32.xlu0 %v240
      %v269 = vpop.xlane.xlu0 %268
      %270 = vadd.xlane.f32.xlu0 %v241
      %v271 = vpop.xlane.xlu0 %270
      %272 = vadd.xlane.f32.xlu0 %v242
      %v273 = vpop.xlane.xlu0 %272
      %274 = vadd.xlane.f32.xlu0 %v243
      %v275 = vpop.xlane.xlu0 %274
      %276 = vadd.xlane.f32.xlu0 %v244
      %v277 = vpop.xlane.xlu0 %276
      %278 = vadd.xlane.f32.xlu0 %v245
      %v279 = vpop.xlane.xlu0 %278
      %v280 = vrcp.pop 128.0
      %v281 = vmul.f32 %v249, %v280
      %v282 = vmul.f32 %v251, %v280
      %v283 = vmul.f32 %v253, %v280
      %v284 = vmul.f32 %v255, %v280
      %v285 = vmul.f32 %v257, %v280
      %v286 = vmul.f32 %v259, %v280
      %v287 = vmul.f32 %v261, %v280
      %v288 = vmul.f32 %v263, %v280
      %v289 = vmul.f32 %v265, %v280
      %v290 = vmul.f32 %v267, %v280
      %v291 = vmul.f32 %v269, %v280
      %v292 = vmul.f32 %v271, %v280
      %v293 = vmul.f32 %v273, %v280
      %v294 = vmul.f32 %v275, %v280
      %v295 = vmul.f32 %v277, %v280
      %v296 = vmul.f32 %v279, %v280
      %v297 = vsub.f32 %v230, %v281
      %v298 = vsub.f32 %v231, %v282
      %v299 = vsub.f32 %v232, %v283
      %v300 = vsub.f32 %v233, %v284
      %v301 = vsub.f32 %v234, %v285
      %v302 = vsub.f32 %v235, %v286
      %v303 = vsub.f32 %v236, %v287
      %v304 = vsub.f32 %v237, %v288
      %v305 = vsub.f32 %v238, %v289
      %v306 = vsub.f32 %v239, %v290
      %v307 = vsub.f32 %v240, %v291
      %v308 = vsub.f32 %v241, %v292
      %v309 = vsub.f32 %v242, %v293
      %v310 = vsub.f32 %v243, %v294
      %v311 = vsub.f32 %v244, %v295
      %v312 = vsub.f32 %v245, %v296
      %v313 = vmul.f32 %v297, %v297
      %v314 = vmul.f32 %v298, %v298
      %v315 = vmul.f32 %v299, %v299
      %v316 = vmul.f32 %v300, %v300
      %v317 = vmul.f32 %v301, %v301
      %v318 = vmul.f32 %v302, %v302
      %v319 = vmul.f32 %v303, %v303
      %v320 = vmul.f32 %v304, %v304
      %v321 = vmul.f32 %v305, %v305
      %v322 = vmul.f32 %v306, %v306
      %v323 = vmul.f32 %v307, %v307
      %v324 = vmul.f32 %v308, %v308
      %v325 = vmul.f32 %v309, %v309
      %v326 = vmul.f32 %v310, %v310
      %v327 = vmul.f32 %v311, %v311
      %v328 = vmul.f32 %v312, %v312
      %329 = vadd.xlane.f32.xlu0 %v313
      %v330 = vpop.xlane.xlu0 %329
      %331 = vadd.xlane.f32.xlu0 %v314
      %v332 = vpop.xlane.xlu0 %331
      %333 = vadd.xlane.f32.xlu0 %v315
      %v334 = vpop.xlane.xlu0 %333
      %335 = vadd.xlane.f32.xlu0 %v316
      %v336 = vpop.xlane.xlu0 %335
      %337 = vadd.xlane.f32.xlu0 %v317
      %v338 = vpop.xlane.xlu0 %337
      %339 = vadd.xlane.f32.xlu0 %v318
      %v340 = vpop.xlane.xlu0 %339
      %341 = vadd.xlane.f32.xlu0 %v319
      %v342 = vpop.xlane.xlu0 %341
      %343 = vadd.xlane.f32.xlu0 %v320
      %v344 = vpop.xlane.xlu0 %343
      %345 = vadd.xlane.f32.xlu0 %v321
      %v346 = vpop.xlane.xlu0 %345
      %347 = vadd.xlane.f32.xlu0 %v322
      %v348 = vpop.xlane.xlu0 %347
      %349 = vadd.xlane.f32.xlu0 %v323
      %v350 = vpop.xlane.xlu0 %349
      %351 = vadd.xlane.f32.xlu0 %v324
      %v352 = vpop.xlane.xlu0 %351
      %353 = vadd.xlane.f32.xlu0 %v325
      %v354 = vpop.xlane.xlu0 %353
      %355 = vadd.xlane.f32.xlu0 %v326
      %v356 = vpop.xlane.xlu0 %355
      %357 = vadd.xlane.f32.xlu0 %v327
      %v358 = vpop.xlane.xlu0 %357
      %359 = vadd.xlane.f32.xlu0 %v328
      %v360 = vpop.xlane.xlu0 %359
      %v361 = vmul.f32 %v330, %v280
      %v362 = vmul.f32 %v332, %v280
      %v363 = vmul.f32 %v334, %v280
      %v364 = vmul.f32 %v336, %v280
      %v365 = vmul.f32 %v338, %v280
      %v366 = vmul.f32 %v340, %v280
      %v367 = vmul.f32 %v342, %v280
      %v368 = vmul.f32 %v344, %v280
      %v369 = vmul.f32 %v346, %v280
      %v370 = vmul.f32 %v348, %v280
      %v371 = vmul.f32 %v350, %v280
      %v372 = vmul.f32 %v352, %v280
      %v373 = vmul.f32 %v354, %v280
      %v374 = vmul.f32 %v356, %v280
      %v375 = vmul.f32 %v358, %v280
      %v376 = vmul.f32 %v360, %v280
      %v377 = vadd.f32 %v361, 1e-12
      %v378 = vadd.f32 %v362, 1e-12
      %v379 = vadd.f32 %v363, 1e-12
      %v380 = vadd.f32 %v364, 1e-12
      %v381 = vadd.f32 %v365, 1e-12
      %v382 = vadd.f32 %v366, 1e-12
      %v383 = vadd.f32 %v367, 1e-12
      %v384 = vadd.f32 %v368, 1e-12
      %v385 = vadd.f32 %v369, 1e-12
      %v386 = vadd.f32 %v370, 1e-12
      %v387 = vadd.f32 %v371, 1e-12
      %v388 = vadd.f32 %v372, 1e-12
      %v389 = vadd.f32 %v373, 1e-12
      %v390 = vadd.f32 %v374, 1e-12
      %v391 = vadd.f32 %v375, 1e-12
      %v392 = vadd.f32 %v376, 1e-12
      %v393 = vrsqrt.pop %v377
      %v394 = vrsqrt.pop %v378
      %v395 = vrsqrt.pop %v379
      %v396 = vrsqrt.pop %v380
      %v397 = vrsqrt.pop %v381
      %v398 = vrsqrt.pop %v382
      %v399 = vrsqrt.pop %v383
      %v400 = vrsqrt.pop %v384
      %v401 = vrsqrt.pop %v385
      %v402 = vrsqrt.pop %v386
      %v403 = vrsqrt.pop %v387
      %v404 = vrsqrt.pop %v388
      %v405 = vrsqrt.pop %v389
      %v406 = vrsqrt.pop %v390
      %v407 = vrsqrt.pop %v391
      %v408 = vrsqrt.pop %v392
      %v409 = vmul.f32 %v297, %v393
      %v410 = vmul.f32 %v298, %v394
      %v411 = vmul.f32 %v299, %v395
      %v412 = vmul.f32 %v300, %v396
      %v413 = vmul.f32 %v301, %v397
      %v414 = vmul.f32 %v302, %v398
      %v415 = vmul.f32 %v303, %v399
      %v416 = vmul.f32 %v304, %v400
      %v417 = vmul.f32 %v305, %v401
      %v418 = vmul.f32 %v306, %v402
      %v419 = vmul.f32 %v307, %v403
      %v420 = vmul.f32 %v308, %v404
      %v421 = vmul.f32 %v309, %v405
      %v422 = vmul.f32 %v310, %v406
      %v423 = vmul.f32 %v311, %v407
      %v424 = vmul.f32 %v312, %v408
      %v426 = vlaneseq
      %v427 = vshrl.u32 %v426, 7
      %v428 = vsub.s32 0, %v427
      %v429 = vrot.slane %v246, %v428
      %v431 = vmul.f32 %v409, %v429
      %v432 = vmul.f32 %v410, %v429
      %v433 = vmul.f32 %v411, %v429
      %v434 = vmul.f32 %v412, %v429
      %v435 = vmul.f32 %v413, %v429
      %v436 = vmul.f32 %v414, %v429
      %v437 = vmul.f32 %v415, %v429
      %v438 = vmul.f32 %v416, %v429
      %v439 = vmul.f32 %v417, %v429
      %v440 = vmul.f32 %v418, %v429
      %v441 = vmul.f32 %v419, %v429
      %v442 = vmul.f32 %v420, %v429
      %v443 = vmul.f32 %v421, %v429
      %v444 = vmul.f32 %v422, %v429
      %v445 = vmul.f32 %v423, %v429
      %v446 = vmul.f32 %v424, %v429
      %v448 = vlaneseq
      %v449 = vshrl.u32 %v448, 7
      %v450 = vsub.s32 0, %v449
      %v451 = vrot.slane %v247, %v450
      %v453 = vadd.f32 %v431, %v451
      %v454 = vadd.f32 %v432, %v451
      %v455 = vadd.f32 %v433, %v451
      %v456 = vadd.f32 %v434, %v451
      %v457 = vadd.f32 %v435, %v451
      %v458 = vadd.f32 %v436, %v451
      %v459 = vadd.f32 %v437, %v451
      %v460 = vadd.f32 %v438, %v451
      %v461 = vadd.f32 %v439, %v451
      %v462 = vadd.f32 %v440, %v451
      %v463 = vadd.f32 %v441, %v451
      %v464 = vadd.f32 %v442, %v451
      %v465 = vadd.f32 %v443, %v451
      %v466 = vadd.f32 %v444, %v451
      %v467 = vadd.f32 %v445, %v451
      %v468 = vadd.f32 %v446, %v451
      %469 = vst [vmem:[%s197] sm:$0xff] %v453
      %470 = vst [vmem:[%s197 + $0x8] sm:$0xff] %v454
      %471 = vst [vmem:[%s197 + $0x10] sm:$0xff] %v455
      %472 = vst [vmem:[%s197 + $0x18] sm:$0xff] %v456
      %473 = vst [vmem:[%s197 + $0x20] sm:$0xff] %v457
      %474 = vst [vmem:[%s197 + $0x28] sm:$0xff] %v458
      %475 = vst [vmem:[%s197 + $0x30] sm:$0xff] %v459
      %476 = vst [vmem:[%s197 + $0x38] sm:$0xff] %v460
      %477 = vst [vmem:[%s197 + $0x40] sm:$0xff] %v461
      %478 = vst [vmem:[%s197 + $0x48] sm:$0xff] %v462
      %479 = vst [vmem:[%s197 + $0x50] sm:$0xff] %v463
      %480 = vst [vmem:[%s197 + $0x58] sm:$0xff] %v464
      %481 = vst [vmem:[%s197 + $0x60] sm:$0xff] %v465
      %482 = vst [vmem:[%s197 + $0x68] sm:$0xff] %v466
      %483 = vst [vmem:[%s197 + $0x70] sm:$0xff] %v467
      %484 = vst [vmem:[%s197 + $0x78] sm:$0xff] %v468
      %p485 = scmp.lt.s32.totalorder %s15, 1
      %s486 = scalar_select %p485, %s15, 1
      %s487 = smul.addr %s486, 16
      %s488 = smul.addr %s487, 8
      %s489 = scalar_lea.vmem %s4, %s488
      // Predicated region
      $region37: #{forward_huffpost.3} parent=35 // pred_check
        %p490 = pneg %p122
      $region38: #{forward_huffpost.3} parent=35 // pred_check_branch
        %492 = sbr.rel (%p490) target = $region40
      $region39: #{forward_huffpost.3} parent=35 // pred_region
        _
      $region40: #{forward_huffpost.3} parent=35 // pred_fallthru
        _
    $region36: #{forward_huffpost.3} parent=5 // pred_fallthru
      _
    %p493 = scmp.le.s32.totalorder 2, %s10
    // Predicated region
    $region41: #{forward_huffpost.3} parent=5 // pred_check
      %p494 = pneg %p493
    $region42: #{forward_huffpost.3} parent=5 // pred_check_branch
      %496 = sbr.rel (%p494) target = $region44
    $region43: #{forward_huffpost.3} parent=5 // pred_region
      %s497 = ssub.s32 %s10, 2
      // Predicated region
      $region45: #{forward_huffpost.3} parent=43 // pred_check
        %p498 = pneg %p128
      $region46: #{forward_huffpost.3} parent=43 // pred_check_branch
        %500 = sbr.rel (%p498) target = $region48
      $region47: #{forward_huffpost.3} parent=43 // pred_region
        %p501 = scmp.lt.s32.totalorder %s16, 1
        %s502 = scalar_select %p501, %s16, 1
        %s503 = smul.addr %s502, 16
        %s504 = smul.addr %s503, 8
        %s505 = scalar_lea.vmem %s4, %s504
      $region48: #{forward_huffpost.3} parent=43 // pred_fallthru
        _
    $region44: #{forward_huffpost.3} parent=5 // pred_fallthru
      _
  $region6: #{forward_huffpost.3} parent=0 // loop_footer
    %s14 = sadd.s32 1, %s10
  $region7: #{forward_huffpost.3} parent=0 // loop_footer_branch
    %9 = sbr.rel target = $region3
  $region8: #{forward_huffpost.3} parent=0 // loop_exit
    _

// kernel: forward_huffpost.5
$region0: #{forward_huffpost.5}
  #allocation0 [shape = 'u32[]', space=smem, size = 0x4, offset = 0x4, fixed_abs, tag = 'smem constant byte address 0x4 - core index']
  #allocation1 [shape = 'u32[144,128]{1,0:T(1,128)}', space=vmem, size = 0x12000, scoped, tag = 'internal scratch']
  %s0 = inlined_call_operand.vmem [shape: f32[2,128], index: 0, kind: input, shape index: {}]
  %s1 = inlined_call_operand.vmem [shape: bf16[128,128], index: 1, kind: input, shape index: {}]
  %s2 = inlined_call_operand.vmem [shape: f32[1,128], index: 2, kind: input, shape index: {}]
  %s3 = inlined_call_operand.vmem [shape: f32[1,128], index: 3, kind: input, shape index: {}]
  %s4 = inlined_call_operand.vmem [shape: f32[1,128], index: 4, kind: input, shape index: {}]
  %s5 = inlined_call_operand.hbm [shape: f32[2,128], index: 5, kind: output, shape index: {}]
  %s6 = sld [smem:[#allocation0]]
  $region30: #{forward_huffpost.5} parent=0
    _
  %s8 = ssub.s32 1, %s6
  %s9 = scalar_select 0, %s8, %s6
  $region1: #{forward_huffpost.5} parent=0
    #allocation2 [shape = 'u8[1024]{0}', space=vmem, size = 0x400, scoped, tag = 'output window, operand 0, single buffered']
    #allocation3 [shape = 's32[1]{0}', space=sflag, size = 0x4, scoped, tag = 'scoped memory for forward_huffpost.5']
    %10 = vsyncpa [#allocation3], 0
    // Predicated region
    $region2: #{forward_huffpost.5} parent=1 // pred_check
      _
    $region3: #{forward_huffpost.5} parent=1 // pred_check_branch
      %12 = sbr.rel (0) target = $region5
    $region4: #{forward_huffpost.5} parent=1 // pred_region
      _
    $region5: #{forward_huffpost.5} parent=1 // pred_fallthru
      _
    // Predicated region
    $region6: #{forward_huffpost.5} parent=1 // pred_check
      _
    $region7: #{forward_huffpost.5} parent=1 // pred_check_branch
      %14 = sbr.rel (0) target = $region9
    $region8: #{forward_huffpost.5} parent=1 // pred_region
      _
    $region9: #{forward_huffpost.5} parent=1 // pred_fallthru
      _
    // Predicated region
    $region10: #{forward_huffpost.5} parent=1 // pred_check
      _
    $region11: #{forward_huffpost.5} parent=1 // pred_check_branch
      %16 = sbr.rel (0) target = $region13
    $region12: #{forward_huffpost.5} parent=1 // pred_region
      _
    $region13: #{forward_huffpost.5} parent=1 // pred_fallthru
      _
    // Predicated region
    $region14: #{forward_huffpost.5} parent=1 // pred_check
      _
    $region15: #{forward_huffpost.5} parent=1 // pred_check_branch
      %18 = sbr.rel (0) target = $region17
    $region16: #{forward_huffpost.5} parent=1 // pred_region
      _
    $region17: #{forward_huffpost.5} parent=1 // pred_fallthru
      _
    // Predicated region
    $region18: #{forward_huffpost.5} parent=1 // pred_check
      _
    $region19: #{forward_huffpost.5} parent=1 // pred_check_branch
      %20 = sbr.rel (0) target = $region21
    $region20: #{forward_huffpost.5} parent=1 // pred_region
      _
    $region21: #{forward_huffpost.5} parent=1 // pred_fallthru
      _
    %v22 = vld [vmem:[%s0] sm:$0x3]
    %v23 = vpack.c.bf16 %v22, %v22
    %v24 = vld [vmem:[%s1] sm:$0xf]
    %v25 = vld [vmem:[%s1 + $0x4] sm:$0xf]
    %v26 = vld [vmem:[%s1 + $0x8] sm:$0xf]
    %v27 = vld [vmem:[%s1 + $0xc] sm:$0xf]
    %v28 = vld [vmem:[%s1 + $0x10] sm:$0xf]
    %v29 = vld [vmem:[%s1 + $0x14] sm:$0xf]
    %v30 = vld [vmem:[%s1 + $0x18] sm:$0xf]
    %v31 = vld [vmem:[%s1 + $0x1c] sm:$0xf]
    %v32 = vld [vmem:[%s1 + $0x20] sm:$0xf]
    %v33 = vld [vmem:[%s1 + $0x24] sm:$0xf]
    %v34 = vld [vmem:[%s1 + $0x28] sm:$0xf]
    %v35 = vld [vmem:[%s1 + $0x2c] sm:$0xf]
    %v36 = vld [vmem:[%s1 + $0x30] sm:$0xf]
    %v37 = vld [vmem:[%s1 + $0x34] sm:$0xf]
    %v38 = vld [vmem:[%s1 + $0x38] sm:$0xf]
    %v39 = vld [vmem:[%s1 + $0x3c] sm:$0xf]
    %v40 = vld [vmem:[%s2] sm:$0x1]
    %v42 = vlaneseq
    %v43 = vshrl.u32 %v42, 7
    %v44 = vsub.s32 0, %v43
    %v45 = vrot.slane %v40, %v44
    %v63 = vunpack.c.l.b16 %v24
    %v64 = vunpack.c.l.b16 %v25
    %v65 = vunpack.c.l.b16 %v26
    %v66 = vunpack.c.l.b16 %v27
    %v67 = vunpack.c.l.b16 %v28
    %v68 = vunpack.c.l.b16 %v29
    %v69 = vunpack.c.l.b16 %v30
    %v70 = vunpack.c.l.b16 %v31
    %v71 = vunpack.c.l.b16 %v32
    %v72 = vunpack.c.l.b16 %v33
    %v73 = vunpack.c.l.b16 %v34
    %v74 = vunpack.c.l.b16 %v35
    %v75 = vunpack.c.l.b16 %v36
    %v76 = vunpack.c.l.b16 %v37
    %v77 = vunpack.c.l.b16 %v38
    %v78 = vunpack.c.l.b16 %v39
    %v79 = vpack.c.b16 %v64, %v63
    %v80 = vpack.c.b16 %v66, %v65
    %v81 = vpack.c.b16 %v68, %v67
    %v82 = vpack.c.b16 %v70, %v69
    %v83 = vpack.c.b16 %v72, %v71
    %v84 = vpack.c.b16 %v74, %v73
    %v85 = vpack.c.b16 %v76, %v75
    %v86 = vpack.c.b16 %v78, %v77
    %95 = vmatprep.subr.bf16.mxu0 0
    %96 = vmatpush1.bf16.msra.mxu0 %v86
    %97 = vmatprep.subr.bf16.mxu0 0
    %98 = vmatpush1.bf16.msra.mxu0 %v85
    %99 = vmatprep.subr.bf16.mxu0 0
    %100 = vmatpush1.bf16.msra.mxu0 %v84
    %101 = vmatprep.subr.bf16.mxu0 0
    %102 = vmatpush1.bf16.msra.mxu0 %v83
    %103 = vmatprep.subr.bf16.mxu0 0
    %104 = vmatpush1.bf16.msra.mxu0 %v82
    %105 = vmatprep.subr.bf16.mxu0 0
    %106 = vmatpush1.bf16.msra.mxu0 %v81
    %107 = vmatprep.subr.bf16.mxu0 0
    %108 = vmatpush1.bf16.msra.mxu0 %v80
    %109 = vmatprep.subr.bf16.mxu0 0
    %110 = vmatpush1.bf16.msra.mxu0 %v79
    %111 = vmatprep.subr.bf16.mxu0 0
    %112 = vmatpush2.bf16.msra.mxu0 0
    %113 = vmatprep.subr.bf16.mxu0 0
    %114 = vmatpush2.bf16.msra.mxu0 0
    %115 = vmatprep.subr.bf16.mxu0 0
    %116 = vmatpush2.bf16.msra.mxu0 0
    %117 = vmatprep.subr.bf16.mxu0 0
    %118 = vmatpush2.bf16.msra.mxu0 0
    %119 = vmatprep.subr.bf16.mxu0 0
    %120 = vmatpush2.bf16.msra.mxu0 0
    %121 = vmatprep.subr.bf16.mxu0 0
    %122 = vmatpush2.bf16.msra.mxu0 0
    %123 = vmatprep.subr.bf16.mxu0 0
    %124 = vmatpush2.bf16.msra.mxu0 0
    %125 = vmatprep.subr.bf16.mxu0 0
    %126 = vmatpush2.bf16.msra.mxu0 0
    %127 = vmatprep.mubr.bf16.mxu0 0
    %128 = vmatmul.mubr.bf16.gmra.mxu0 %v23
    %v129 = vpop.f32.mrf.mxu0
    %v130 = vadd.f32 %v45, %v129
    %v131 = vpop.f32.mrf.mxu0
    %v132 = vpop.f32.mrf.mxu0
    %v133 = vpop.f32.mrf.mxu0
    %134 = vdwg.mxu0
    %v135 = vmul.f32 %v130, 0.5
    %v136 = vrcp.pop 1.4142135
    %v137 = vmul.f32 %v130, %v136
    %v138 = verf.f32.pop %v137
    %v139 = vadd.f32 %v138, 1.0
    %v140 = vmul.f32 %v135, %v139
    %v141 = vld [vmem:[%s3] sm:$0x1]
    %v142 = vld [vmem:[%s4] sm:$0x1]
    %vm143 = vcmask 1041408
    %v144 = vsel %vm143, %v140, 0.0
    %145 = vadd.xlane.f32.xlu0 %v144
    %v146 = vpop.xlane.xlu0 %145
    %v147 = vrcp.pop 128.0
    %v148 = vmul.f32 %v146, %v147
    %v149 = vsub.f32 %v140, %v148
    %v150 = vmul.f32 %v149, %v149
    %v151 = vsel %vm143, %v150, 0.0
    %152 = vadd.xlane.f32.xlu0 %v151
    %v153 = vpop.xlane.xlu0 %152
    %v154 = vmul.f32 %v153, %v147
    %v155 = vadd.f32 %v154, 1e-12
    %v156 = vrsqrt.pop %v155
    %v157 = vmul.f32 %v149, %v156
    %v159 = vlaneseq
    %v160 = vshrl.u32 %v159, 7
    %v161 = vsub.s32 0, %v160
    %v162 = vrot.slane %v141, %v161
    %v164 = vmul.f32 %v157, %v162
    %v166 = vlaneseq
    %v167 = vshrl.u32 %v166, 7
    %v168 = vsub.s32 0, %v167
    %v169 = vrot.slane %v142, %v168
    %v171 = vadd.f32 %v164, %v169
    %172 = vst [vmem:[#allocation2] sm:$0x3] %v171
    // Predicated region
    $region22: #{forward_huffpost.5} parent=1 // pred_check
      _
    $region23: #{forward_huffpost.5} parent=1 // pred_check_branch
      %174 = sbr.rel (0) target = $region25
    $region24: #{forward_huffpost.5} parent=1 // pred_region
      %s176 = ssub.s32 32, 32
      %177 = vsyncadd [#allocation3], %s176
      %s179 = sshll.u32 [#allocation2], 4
      %s180 = int_to_ptr.vmem [resolvable:$true] %s179
      %182 = dma.vmem_to_hbm [thread:$0]  %s180, 32, %s5, [#allocation3]
    $region25: #{forward_huffpost.5} parent=1 // pred_fallthru
      _
    // Predicated region
    $region26: #{forward_huffpost.5} parent=1 // pred_check
      _
    $region27: #{forward_huffpost.5} parent=1 // pred_check_branch
      %184 = sbr.rel (0) target = $region29
    $region28: #{forward_huffpost.5} parent=1 // pred_region
      %185 = dma.done [#allocation3], 32
    $region29: #{forward_huffpost.5} parent=1 // pred_fallthru
      _
    %186 = vsyncpa [#allocation3], 1

// kernel: forward_huffpost.4
$region0: #{forward_huffpost.4}
  #allocation0 [shape = 'u32[]', space=smem, size = 0x4, offset = 0x4, fixed_abs, tag = 'smem constant byte address 0x4 - core index']
  #allocation1 [shape = 'u32[144,128]{1,0:T(1,128)}', space=vmem, size = 0x12000, scoped, tag = 'internal scratch']
  #allocation2 [shape = 'f32[128,128]{1,0:T(8,128)}', space=vmem, size = 0x10000, scoped, tag = 'scratch operand']
  %s0 = inlined_call_operand.vmem [shape: f32[2,128,128], index: 0, kind: input, shape index: {}]
  %s1 = inlined_call_operand.vmem [shape: f32[2,1,128], index: 1, kind: input, shape index: {}]
  %s2 = inlined_call_operand.vmem [shape: bf16[2,128,384], index: 2, kind: input, shape index: {}]
  %s3 = inlined_call_operand.vmem [shape: f32[2,1,384], index: 3, kind: input, shape index: {}]
  %s4 = inlined_call_operand.vmem [shape: bf16[2,128,128], index: 4, kind: input, shape index: {}]
  %s5 = inlined_call_operand.vmem [shape: f32[2,1,128], index: 5, kind: input, shape index: {}]
  %s6 = inlined_call_operand.vmem [shape: f32[2,1,128], index: 6, kind: input, shape index: {}]
  %s7 = inlined_call_operand.vmem [shape: f32[2,1,128], index: 7, kind: input, shape index: {}]
  %s8 = inlined_call_operand.vmem [shape: bf16[2,128,512], index: 8, kind: input, shape index: {}]
  %s9 = inlined_call_operand.vmem [shape: f32[2,1,512], index: 9, kind: input, shape index: {}]
  %s10 = inlined_call_operand.vmem [shape: bf16[2,512,128], index: 10, kind: input, shape index: {}]
  %s11 = inlined_call_operand.vmem [shape: f32[2,1,128], index: 11, kind: input, shape index: {}]
  %s12 = inlined_call_operand.vmem [shape: f32[2,1,128], index: 12, kind: input, shape index: {}]
  %s13 = inlined_call_operand.vmem [shape: f32[2,1,128], index: 13, kind: input, shape index: {}]
  %s14 = inlined_call_operand.vmem [shape: f32[2,128,128], index: 14, kind: output, shape index: {}]
  %s15 = sld [smem:[#allocation0]]
  $region97: #{forward_huffpost.4} parent=0
    _
  %s17 = ssub.s32 1, %s15
  %s18 = scalar_select 0, %s17, %s15
  loop: start=0, step=1, limit=6
  $region2: #{forward_huffpost.4} parent=0 // loop_pre_header
    _
  $region3: #{forward_huffpost.4} parent=0 // loop_header
    %s20 = sphi 0, %s24
    %p21 = scmp.ge.s32.totalorder %s20, 6
    %s27 = sphi 0, %s39
    %s28 = sphi 0, %s35
    %s29 = sphi 0, %s27
    %s30 = sphi 0, %s28
    %s31 = sphi 0, %s29
    %s32 = sphi 0, %s30
    %s42 = sphi 0, %s44
    %s45 = sphi 0, %s42
    %s46 = sphi 0, %s45
    %s62 = sphi 0, %s46
    %s68 = sphi 0, %s70
    %s71 = sphi 0, %s68
    %s72 = sphi 0, %s71
    %s88 = sphi 0, %s72
    %s94 = sphi 0, %s96
    %s97 = sphi 0, %s94
    %s98 = sphi 0, %s97
    %s114 = sphi 0, %s98
    %s120 = sphi 0, %s122
    %s123 = sphi 0, %s120
    %s124 = sphi 0, %s123
    %s140 = sphi 0, %s124
    %s146 = sphi 0, %s148
    %s149 = sphi 0, %s146
    %s150 = sphi 0, %s149
    %s166 = sphi 0, %s150
    %s172 = sphi 0, %s174
    %s175 = sphi 0, %s172
    %s176 = sphi 0, %s175
    %s192 = sphi 0, %s176
    %s198 = sphi 0, %s200
    %s201 = sphi 0, %s198
    %s202 = sphi 0, %s201
    %s218 = sphi 0, %s202
    %s224 = sphi 0, %s226
    %s227 = sphi 0, %s224
    %s228 = sphi 0, %s227
    %s244 = sphi 0, %s228
    %s250 = sphi 0, %s252
    %s253 = sphi 0, %s250
    %s254 = sphi 0, %s253
    %s270 = sphi 0, %s254
    %s276 = sphi 0, %s278
    %s279 = sphi 0, %s276
    %s280 = sphi 0, %s279
    %s296 = sphi 0, %s280
    %s302 = sphi 0, %s304
    %s305 = sphi 0, %s302
    %s306 = sphi 0, %s305
    %s322 = sphi 0, %s306
    %s328 = sphi 0, %s330
    %s331 = sphi 0, %s328
    %s332 = sphi 0, %s331
    %s348 = sphi 0, %s332
    %s354 = sphi 0, %s356
    %s357 = sphi 0, %s354
    %s358 = sphi 0, %s357
    %s374 = sphi 0, %s358
    %s380 = sphi 0, %s382
    %s383 = sphi 0, %s380
    %s384 = sphi 0, %s383
    %s400 = sphi 0, %s384
    %s406 = sphi 0, %s408
    %s409 = sphi 0, %s406
    %s410 = sphi 0, %s409
    %s426 = sphi 0, %s410
  $region4: #{forward_huffpost.4} parent=0 // loop_header_branch
    %23 = sbr.rel (%p21) target = $region8
  $region5: #{forward_huffpost.4} parent=0 // loop_body
    %s25 = ssub.s32 %s20, 1
    %s26 = ssub.s32 %s20, 2
    %s33 = sadd.s32 1, %s28
    %p34 = scmp.ge.s32.totalorder %s33, 2
    %s35 = scalar_select %p34, 0, %s33
    %s36 = sadd.s32 1, %s27
    %s37 = scalar_select %p34, %s36, %s27
    %p38 = scmp.ge.s32.totalorder %s37, 2
    %s39 = scalar_select %p38, 0, %s37
    %s40 = ssub.s32 %s27, %s39
    %p41 = scmp.eq.s32.totalorder %s40, 0
    %s43 = sadd.s32 %s42, 1
    %s44 = scalar_select %p41, %s42, %s43
    %p47 = pneg %p41
    %p48 = scmp.eq.s32.totalorder %s20, 3
    %p49 = por %p47, %p48
    %p50 = scmp.ne.s32.totalorder %s42, %s45
    %p51 = scmp.eq.s32.totalorder %s20, 0
    %p52 = por %p50, %p51
    %p53 = scmp.ne.s32.totalorder %s42, %s45
    %p54 = scmp.eq.s32.totalorder %s25, 3
    %p55 = por %p53, %p54
    %p56 = scmp.ne.s32.totalorder %s45, %s46
    %p57 = scmp.eq.s32.totalorder %s25, 0
    %p58 = por %p56, %p57
    %p59 = scmp.ne.s32.totalorder %s45, %s46
    %p60 = scmp.eq.s32.totalorder %s26, 3
    %p61 = por %p59, %p60
    %p63 = scmp.ne.s32.totalorder %s46, %s62
    %p64 = scmp.eq.s32.totalorder %s26, 0
    %p65 = por %p63, %p64
    %s66 = ssub.s32 %s27, %s39
    %p67 = scmp.eq.s32.totalorder %s66, 0
    %s69 = sadd.s32 %s68, 1
    %s70 = scalar_select %p67, %s68, %s69
    %p73 = pneg %p67
    %p74 = scmp.eq.s32.totalorder %s20, 3
    %p75 = por %p73, %p74
    %p76 = scmp.ne.s32.totalorder %s68, %s71
    %p77 = scmp.eq.s32.totalorder %s20, 0
    %p78 = por %p76, %p77
    %p79 = scmp.ne.s32.totalorder %s68, %s71
    %p80 = scmp.eq.s32.totalorder %s25, 3
    %p81 = por %p79, %p80
    %p82 = scmp.ne.s32.totalorder %s71, %s72
    %p83 = scmp.eq.s32.totalorder %s25, 0
    %p84 = por %p82, %p83
    %p85 = scmp.ne.s32.totalorder %s71, %s72
    %p86 = scmp.eq.s32.totalorder %s26, 3
    %p87 = por %p85, %p86
    %p89 = scmp.ne.s32.totalorder %s72, %s88
    %p90 = scmp.eq.s32.totalorder %s26, 0
    %p91 = por %p89, %p90
    %s92 = ssub.s32 %s28, %s35
    %p93 = scmp.eq.s32.totalorder %s92, 0
    %s95 = sadd.s32 %s94, 1
    %s96 = scalar_select %p93, %s94, %s95
    %p99 = pneg %p93
    %p100 = scmp.eq.s32.totalorder %s20, 3
    %p101 = por %p99, %p100
    %p102 = scmp.ne.s32.totalorder %s94, %s97
    %p103 = scmp.eq.s32.totalorder %s20, 0
    %p104 = por %p102, %p103
    %p105 = scmp.ne.s32.totalorder %s94, %s97
    %p106 = scmp.eq.s32.totalorder %s25, 3
    %p107 = por %p105, %p106
    %p108 = scmp.ne.s32.totalorder %s97, %s98
    %p109 = scmp.eq.s32.totalorder %s25, 0
    %p110 = por %p108, %p109
    %p111 = scmp.ne.s32.totalorder %s97, %s98
    %p112 = scmp.eq.s32.totalorder %s26, 3
    %p113 = por %p111, %p112
    %p115 = scmp.ne.s32.totalorder %s98, %s114
    %p116 = scmp.eq.s32.totalorder %s26, 0
    %p117 = por %p115, %p116
    %s118 = ssub.s32 %s28, %s35
    %p119 = scmp.eq.s32.totalorder %s118, 0
    %s121 = sadd.s32 %s120, 1
    %s122 = scalar_select %p119, %s120, %s121
    %p125 = pneg %p119
    %p126 = scmp.eq.s32.totalorder %s20, 3
    %p127 = por %p125, %p126
    %p128 = scmp.ne.s32.totalorder %s120, %s123
    %p129 = scmp.eq.s32.totalorder %s20, 0
    %p130 = por %p128, %p129
    %p131 = scmp.ne.s32.totalorder %s120, %s123
    %p132 = scmp.eq.s32.totalorder %s25, 3
    %p133 = por %p131, %p132
    %p134 = scmp.ne.s32.totalorder %s123, %s124
    %p135 = scmp.eq.s32.totalorder %s25, 0
    %p136 = por %p134, %p135
    %p137 = scmp.ne.s32.totalorder %s123, %s124
    %p138 = scmp.eq.s32.totalorder %s26, 3
    %p139 = por %p137, %p138
    %p141 = scmp.ne.s32.totalorder %s124, %s140
    %p142 = scmp.eq.s32.totalorder %s26, 0
    %p143 = por %p141, %p142
    %s144 = ssub.s32 %s28, %s35
    %p145 = scmp.eq.s32.totalorder %s144, 0
    %s147 = sadd.s32 %s146, 1
    %s148 = scalar_select %p145, %s146, %s147
    %p151 = pneg %p145
    %p152 = scmp.eq.s32.totalorder %s20, 3
    %p153 = por %p151, %p152
    %p154 = scmp.ne.s32.totalorder %s146, %s149
    %p155 = scmp.eq.s32.totalorder %s20, 0
    %p156 = por %p154, %p155
    %p157 = scmp.ne.s32.totalorder %s146, %s149
    %p158 = scmp.eq.s32.totalorder %s25, 3
    %p159 = por %p157, %p158
    %p160 = scmp.ne.s32.totalorder %s149, %s150
    %p161 = scmp.eq.s32.totalorder %s25, 0
    %p162 = por %p160, %p161
    %p163 = scmp.ne.s32.totalorder %s149, %s150
    %p164 = scmp.eq.s32.totalorder %s26, 3
    %p165 = por %p163, %p164
    %p167 = scmp.ne.s32.totalorder %s150, %s166
    %p168 = scmp.eq.s32.totalorder %s26, 0
    %p169 = por %p167, %p168
    %s170 = ssub.s32 %s28, %s35
    %p171 = scmp.eq.s32.totalorder %s170, 0
    %s173 = sadd.s32 %s172, 1
    %s174 = scalar_select %p171, %s172, %s173
    %p177 = pneg %p171
    %p178 = scmp.eq.s32.totalorder %s20, 3
    %p179 = por %p177, %p178
    %p180 = scmp.ne.s32.totalorder %s172, %s175
    %p181 = scmp.eq.s32.totalorder %s20, 0
    %p182 = por %p180, %p181
    %p183 = scmp.ne.s32.totalorder %s172, %s175
    %p184 = scmp.eq.s32.totalorder %s25, 3
    %p185 = por %p183, %p184
    %p186 = scmp.ne.s32.totalorder %s175, %s176
    %p187 = scmp.eq.s32.totalorder %s25, 0
    %p188 = por %p186, %p187
    %p189 = scmp.ne.s32.totalorder %s175, %s176
    %p190 = scmp.eq.s32.totalorder %s26, 3
    %p191 = por %p189, %p190
    %p193 = scmp.ne.s32.totalorder %s176, %s192
    %p194 = scmp.eq.s32.totalorder %s26, 0
    %p195 = por %p193, %p194
    %s196 = ssub.s32 %s28, %s35
    %p197 = scmp.eq.s32.totalorder %s196, 0
    %s199 = sadd.s32 %s198, 1
    %s200 = scalar_select %p197, %s198, %s199
    %p203 = pneg %p197
    %p204 = scmp.eq.s32.totalorder %s20, 3
    %p205 = por %p203, %p204
    %p206 = scmp.ne.s32.totalorder %s198, %s201
    %p207 = scmp.eq.s32.totalorder %s20, 0
    %p208 = por %p206, %p207
    %p209 = scmp.ne.s32.totalorder %s198, %s201
    %p210 = scmp.eq.s32.totalorder %s25, 3
    %p211 = por %p209, %p210
    %p212 = scmp.ne.s32.totalorder %s201, %s202
    %p213 = scmp.eq.s32.totalorder %s25, 0
    %p214 = por %p212, %p213
    %p215 = scmp.ne.s32.totalorder %s201, %s202
    %p216 = scmp.eq.s32.totalorder %s26, 3
    %p217 = por %p215, %p216
    %p219 = scmp.ne.s32.totalorder %s202, %s218
    %p220 = scmp.eq.s32.totalorder %s26, 0
    %p221 = por %p219, %p220
    %s222 = ssub.s32 %s28, %s35
    %p223 = scmp.eq.s32.totalorder %s222, 0
    %s225 = sadd.s32 %s224, 1
    %s226 = scalar_select %p223, %s224, %s225
    %p229 = pneg %p223
    %p230 = scmp.eq.s32.totalorder %s20, 3
    %p231 = por %p229, %p230
    %p232 = scmp.ne.s32.totalorder %s224, %s227
    %p233 = scmp.eq.s32.totalorder %s20, 0
    %p234 = por %p232, %p233
    %p235 = scmp.ne.s32.totalorder %s224, %s227
    %p236 = scmp.eq.s32.totalorder %s25, 3
    %p237 = por %p235, %p236
    %p238 = scmp.ne.s32.totalorder %s227, %s228
    %p239 = scmp.eq.s32.totalorder %s25, 0
    %p240 = por %p238, %p239
    %p241 = scmp.ne.s32.totalorder %s227, %s228
    %p242 = scmp.eq.s32.totalorder %s26, 3
    %p243 = por %p241, %p242
    %p245 = scmp.ne.s32.totalorder %s228, %s244
    %p246 = scmp.eq.s32.totalorder %s26, 0
    %p247 = por %p245, %p246
    %s248 = ssub.s32 %s28, %s35
    %p249 = scmp.eq.s32.totalorder %s248, 0
    %s251 = sadd.s32 %s250, 1
    %s252 = scalar_select %p249, %s250, %s251
    %p255 = pneg %p249
    %p256 = scmp.eq.s32.totalorder %s20, 3
    %p257 = por %p255, %p256
    %p258 = scmp.ne.s32.totalorder %s250, %s253
    %p259 = scmp.eq.s32.totalorder %s20, 0
    %p260 = por %p258, %p259
    %p261 = scmp.ne.s32.totalorder %s250, %s253
    %p262 = scmp.eq.s32.totalorder %s25, 3
    %p263 = por %p261, %p262
    %p264 = scmp.ne.s32.totalorder %s253, %s254
    %p265 = scmp.eq.s32.totalorder %s25, 0
    %p266 = por %p264, %p265
    %p267 = scmp.ne.s32.totalorder %s253, %s254
    %p268 = scmp.eq.s32.totalorder %s26, 3
    %p269 = por %p267, %p268
    %p271 = scmp.ne.s32.totalorder %s254, %s270
    %p272 = scmp.eq.s32.totalorder %s26, 0
    %p273 = por %p271, %p272
    %s274 = ssub.s32 %s28, %s35
    %p275 = scmp.eq.s32.totalorder %s274, 0
    %s277 = sadd.s32 %s276, 1
    %s278 = scalar_select %p275, %s276, %s277
    %p281 = pneg %p275
    %p282 = scmp.eq.s32.totalorder %s20, 3
    %p283 = por %p281, %p282
    %p284 = scmp.ne.s32.totalorder %s276, %s279
    %p285 = scmp.eq.s32.totalorder %s20, 0
    %p286 = por %p284, %p285
    %p287 = scmp.ne.s32.totalorder %s276, %s279
    %p288 = scmp.eq.s32.totalorder %s25, 3
    %p289 = por %p287, %p288
    %p290 = scmp.ne.s32.totalorder %s279, %s280
    %p291 = scmp.eq.s32.totalorder %s25, 0
    %p292 = por %p290, %p291
    %p293 = scmp.ne.s32.totalorder %s279, %s280
    %p294 = scmp.eq.s32.totalorder %s26, 3
    %p295 = por %p293, %p294
    %p297 = scmp.ne.s32.totalorder %s280, %s296
    %p298 = scmp.eq.s32.totalorder %s26, 0
    %p299 = por %p297, %p298
    %s300 = ssub.s32 %s28, %s35
    %p301 = scmp.eq.s32.totalorder %s300, 0
    %s303 = sadd.s32 %s302, 1
    %s304 = scalar_select %p301, %s302, %s303
    %p307 = pneg %p301
    %p308 = scmp.eq.s32.totalorder %s20, 3
    %p309 = por %p307, %p308
    %p310 = scmp.ne.s32.totalorder %s302, %s305
    %p311 = scmp.eq.s32.totalorder %s20, 0
    %p312 = por %p310, %p311
    %p313 = scmp.ne.s32.totalorder %s302, %s305
    %p314 = scmp.eq.s32.totalorder %s25, 3
    %p315 = por %p313, %p314
    %p316 = scmp.ne.s32.totalorder %s305, %s306
    %p317 = scmp.eq.s32.totalorder %s25, 0
    %p318 = por %p316, %p317
    %p319 = scmp.ne.s32.totalorder %s305, %s306
    %p320 = scmp.eq.s32.totalorder %s26, 3
    %p321 = por %p319, %p320
    %p323 = scmp.ne.s32.totalorder %s306, %s322
    %p324 = scmp.eq.s32.totalorder %s26, 0
    %p325 = por %p323, %p324
    %s326 = ssub.s32 %s28, %s35
    %p327 = scmp.eq.s32.totalorder %s326, 0
    %s329 = sadd.s32 %s328, 1
    %s330 = scalar_select %p327, %s328, %s329
    %p333 = pneg %p327
    %p334 = scmp.eq.s32.totalorder %s20, 3
    %p335 = por %p333, %p334
    %p336 = scmp.ne.s32.totalorder %s328, %s331
    %p337 = scmp.eq.s32.totalorder %s20, 0
    %p338 = por %p336, %p337
    %p339 = scmp.ne.s32.totalorder %s328, %s331
    %p340 = scmp.eq.s32.totalorder %s25, 3
    %p341 = por %p339, %p340
    %p342 = scmp.ne.s32.totalorder %s331, %s332
    %p343 = scmp.eq.s32.totalorder %s25, 0
    %p344 = por %p342, %p343
    %p345 = scmp.ne.s32.totalorder %s331, %s332
    %p346 = scmp.eq.s32.totalorder %s26, 3
    %p347 = por %p345, %p346
    %p349 = scmp.ne.s32.totalorder %s332, %s348
    %p350 = scmp.eq.s32.totalorder %s26, 0
    %p351 = por %p349, %p350
    %s352 = ssub.s32 %s28, %s35
    %p353 = scmp.eq.s32.totalorder %s352, 0
    %s355 = sadd.s32 %s354, 1
    %s356 = scalar_select %p353, %s354, %s355
    %p359 = pneg %p353
    %p360 = scmp.eq.s32.totalorder %s20, 3
    %p361 = por %p359, %p360
    %p362 = scmp.ne.s32.totalorder %s354, %s357
    %p363 = scmp.eq.s32.totalorder %s20, 0
    %p364 = por %p362, %p363
    %p365 = scmp.ne.s32.totalorder %s354, %s357
    %p366 = scmp.eq.s32.totalorder %s25, 3
    %p367 = por %p365, %p366
    %p368 = scmp.ne.s32.totalorder %s357, %s358
    %p369 = scmp.eq.s32.totalorder %s25, 0
    %p370 = por %p368, %p369
    %p371 = scmp.ne.s32.totalorder %s357, %s358
    %p372 = scmp.eq.s32.totalorder %s26, 3
    %p373 = por %p371, %p372
    %p375 = scmp.ne.s32.totalorder %s358, %s374
    %p376 = scmp.eq.s32.totalorder %s26, 0
    %p377 = por %p375, %p376
    %s378 = ssub.s32 %s28, %s35
    %p379 = scmp.eq.s32.totalorder %s378, 0
    %s381 = sadd.s32 %s380, 1
    %s382 = scalar_select %p379, %s380, %s381
    %p385 = pneg %p379
    %p386 = scmp.eq.s32.totalorder %s20, 3
    %p387 = por %p385, %p386
    %p388 = scmp.ne.s32.totalorder %s380, %s383
    %p389 = scmp.eq.s32.totalorder %s20, 0
    %p390 = por %p388, %p389
    %p391 = scmp.ne.s32.totalorder %s380, %s383
    %p392 = scmp.eq.s32.totalorder %s25, 3
    %p393 = por %p391, %p392
    %p394 = scmp.ne.s32.totalorder %s383, %s384
    %p395 = scmp.eq.s32.totalorder %s25, 0
    %p396 = por %p394, %p395
    %p397 = scmp.ne.s32.totalorder %s383, %s384
    %p398 = scmp.eq.s32.totalorder %s26, 3
    %p399 = por %p397, %p398
    %p401 = scmp.ne.s32.totalorder %s384, %s400
    %p402 = scmp.eq.s32.totalorder %s26, 0
    %p403 = por %p401, %p402
    %s404 = ssub.s32 %s27, %s39
    %p405 = scmp.eq.s32.totalorder %s404, 0
    %s407 = sadd.s32 %s406, 1
    %s408 = scalar_select %p405, %s406, %s407
    %p411 = pneg %p405
    %p412 = scmp.eq.s32.totalorder %s20, 3
    %p413 = por %p411, %p412
    %p414 = scmp.ne.s32.totalorder %s406, %s409
    %p415 = scmp.eq.s32.totalorder %s20, 0
    %p416 = por %p414, %p415
    %p417 = scmp.ne.s32.totalorder %s406, %s409
    %p418 = scmp.eq.s32.totalorder %s25, 3
    %p419 = por %p417, %p418
    %p420 = scmp.ne.s32.totalorder %s409, %s410
    %p421 = scmp.eq.s32.totalorder %s25, 0
    %p422 = por %p420, %p421
    %p423 = scmp.ne.s32.totalorder %s409, %s410
    %p424 = scmp.eq.s32.totalorder %s26, 3
    %p425 = por %p423, %p424
    %p427 = scmp.ne.s32.totalorder %s410, %s426
    %p428 = scmp.eq.s32.totalorder %s26, 0
    %p429 = por %p427, %p428
    %p430 = scmp.le.s32.totalorder 1, %s20
    %p431 = scmp.lt.s32.totalorder %s20, 5
    %p432 = pnand %p430, %p431
    %p433 = pneg %p432
    // Predicated region
    $region9: #{forward_huffpost.4} parent=5 // pred_check
      _
    $region10: #{forward_huffpost.4} parent=5 // pred_check_branch
      %435 = sbr.rel (%p432) target = $region12
    $region11: #{forward_huffpost.4} parent=5 // pred_region
      %s436 = ssub.s32 %s20, 1
    $region12: #{forward_huffpost.4} parent=5 // pred_fallthru
      _
    %p437 = scmp.lt.s32.totalorder %s20, 4
    // Predicated region
    $region13: #{forward_huffpost.4} parent=5 // pred_check
      %p438 = pneg %p437
    $region14: #{forward_huffpost.4} parent=5 // pred_check_branch
      %440 = sbr.rel (%p438) target = $region16
    $region15: #{forward_huffpost.4} parent=5 // pred_region
      // Predicated region
      $region17: #{forward_huffpost.4} parent=15 // pred_check
        %p441 = pneg %p52
      $region18: #{forward_huffpost.4} parent=15 // pred_check_branch
        %443 = sbr.rel (%p441) target = $region20
      $region19: #{forward_huffpost.4} parent=15 // pred_region
        %p444 = scmp.lt.s32.totalorder %s27, 1
        %s445 = scalar_select %p444, %s27, 1
        %s446 = smul.addr %s445, 16
        %s447 = smul.addr %s446, 8
        %s448 = scalar_lea.vmem %s0, %s447
      $region20: #{forward_huffpost.4} parent=15 // pred_fallthru
        _
      // Predicated region
      $region21: #{forward_huffpost.4} parent=15 // pred_check
        %p449 = pneg %p78
      $region22: #{forward_huffpost.4} parent=15 // pred_check_branch
        %451 = sbr.rel (%p449) target = $region24
      $region23: #{forward_huffpost.4} parent=15 // pred_region
        %p452 = scmp.lt.s32.totalorder %s27, 1
        %s453 = scalar_select %p452, %s27, 1
        %s454 = scalar_lea.vmem %s1, %s453
      $region24: #{forward_huffpost.4} parent=15 // pred_fallthru
        _
      // Predicated region
      $region25: #{forward_huffpost.4} parent=15 // pred_check
        %p455 = pneg %p104
      $region26: #{forward_huffpost.4} parent=15 // pred_check_branch
        %457 = sbr.rel (%p455) target = $region28
      $region27: #{forward_huffpost.4} parent=15 // pred_region
        %p458 = scmp.lt.s32.totalorder %s28, 1
        %s459 = scalar_select %p458, %s28, 1
        %s460 = smul.addr %s459, 48
        %s461 = smul.addr %s460, 4
        %s462 = scalar_lea.vmem %s2, %s461
      $region28: #{forward_huffpost.4} parent=15 // pred_fallthru
        _
      // Predicated region
      $region29: #{forward_huffpost.4} parent=15 // pred_check
        %p463 = pneg %p130
      $region30: #{forward_huffpost.4} parent=15 // pred_check_branch
        %465 = sbr.rel (%p463) target = $region32
      $region31: #{forward_huffpost.4} parent=15 // pred_region
        %p466 = scmp.lt.s32.totalorder %s28, 1
        %s467 = scalar_select %p466, %s28, 1
        %s468 = smul.addr %s467, 3
        %s469 = scalar_lea.vmem %s3, %s468
      $region32: #{forward_huffpost.4} parent=15 // pred_fallthru
        _
      // Predicated region
      $region33: #{forward_huffpost.4} parent=15 // pred_check
        %p470 = pneg %p156
      $region34: #{forward_huffpost.4} parent=15 // pred_check_branch
        %472 = sbr.rel (%p470) target = $region36
      $region35: #{forward_huffpost.4} parent=15 // pred_region
        %p473 = scmp.lt.s32.totalorder %s28, 1
        %s474 = scalar_select %p473, %s28, 1
        %s475 = smul.addr %s474, 16
        %s476 = smul.addr %s475, 4
        %s477 = scalar_lea.vmem %s4, %s476
      $region36: #{forward_huffpost.4} parent=15 // pred_fallthru
        _
      // Predicated region
      $region37: #{forward_huffpost.4} parent=15 // pred_check
        %p478 = pneg %p182
      $region38: #{forward_huffpost.4} parent=15 // pred_check_branch
        %480 = sbr.rel (%p478) target = $region40
      $region39: #{forward_huffpost.4} parent=15 // pred_region
        %p481 = scmp.lt.s32.totalorder %s28, 1
        %s482 = scalar_select %p481, %s28, 1
        %s483 = scalar_lea.vmem %s5, %s482
      $region40: #{forward_huffpost.4} parent=15 // pred_fallthru
        _
      // Predicated region
      $region41: #{forward_huffpost.4} parent=15 // pred_check
        %p484 = pneg %p208
      $region42: #{forward_huffpost.4} parent=15 // pred_check_branch
        %486 = sbr.rel (%p484) target = $region44
      $region43: #{forward_huffpost.4} parent=15 // pred_region
        %p487 = scmp.lt.s32.totalorder %s28, 1
        %s488 = scalar_select %p487, %s28, 1
        %s489 = scalar_lea.vmem %s6, %s488
      $region44: #{forward_huffpost.4} parent=15 // pred_fallthru
        _
      // Predicated region
      $region45: #{forward_huffpost.4} parent=15 // pred_check
        %p490 = pneg %p234
      $region46: #{forward_huffpost.4} parent=15 // pred_check_branch
        %492 = sbr.rel (%p490) target = $region48
      $region47: #{forward_huffpost.4} parent=15 // pred_region
        %p493 = scmp.lt.s32.totalorder %s28, 1
        %s494 = scalar_select %p493, %s28, 1
        %s495 = scalar_lea.vmem %s7, %s494
      $region48: #{forward_huffpost.4} parent=15 // pred_fallthru
        _
      // Predicated region
      $region49: #{forward_huffpost.4} parent=15 // pred_check
        %p496 = pneg %p260
      $region50: #{forward_huffpost.4} parent=15 // pred_check_branch
        %498 = sbr.rel (%p496) target = $region52
      $region51: #{forward_huffpost.4} parent=15 // pred_region
        %p499 = scmp.lt.s32.totalorder %s28, 1
        %s500 = scalar_select %p499, %s28, 1
        %s501 = smul.addr %s500, 64
        %s502 = smul.addr %s501, 4
        %s503 = scalar_lea.vmem %s8, %s502
      $region52: #{forward_huffpost.4} parent=15 // pred_fallthru
        _
      // Predicated region
      $region53: #{forward_huffpost.4} parent=15 // pred_check
        %p504 = pneg %p286
      $region54: #{forward_huffpost.4} parent=15 // pred_check_branch
        %506 = sbr.rel (%p504) target = $region56
      $region55: #{forward_huffpost.4} parent=15 // pred_region
        %p507 = scmp.lt.s32.totalorder %s28, 1
        %s508 = scalar_select %p507, %s28, 1
        %s509 = smul.addr %s508, 4
        %s510 = scalar_lea.vmem %s9, %s509
      $region56: #{forward_huffpost.4} parent=15 // pred_fallthru
        _
      // Predicated region
      $region57: #{forward_huffpost.4} parent=15 // pred_check
        %p511 = pneg %p312
      $region58: #{forward_huffpost.4} parent=15 // pred_check_branch
        %513 = sbr.rel (%p511) target = $region60
      $region59: #{forward_huffpost.4} parent=15 // pred_region
        %p514 = scmp.lt.s32.totalorder %s28, 1
        %s515 = scalar_select %p514, %s28, 1
        %s516 = smul.addr %s515, 64
        %s517 = smul.addr %s516, 4
        %s518 = scalar_lea.vmem %s10, %s517
      $region60: #{forward_huffpost.4} parent=15 // pred_fallthru
        _
      // Predicated region
      $region61: #{forward_huffpost.4} parent=15 // pred_check
        %p519 = pneg %p338
      $region62: #{forward_huffpost.4} parent=15 // pred_check_branch
        %521 = sbr.rel (%p519) target = $region64
      $region63: #{forward_huffpost.4} parent=15 // pred_region
        %p522 = scmp.lt.s32.totalorder %s28, 1
        %s523 = scalar_select %p522, %s28, 1
        %s524 = scalar_lea.vmem %s11, %s523
      $region64: #{forward_huffpost.4} parent=15 // pred_fallthru
        _
      // Predicated region
      $region65: #{forward_huffpost.4} parent=15 // pred_check
        %p525 = pneg %p364
      $region66: #{forward_huffpost.4} parent=15 // pred_check_branch
        %527 = sbr.rel (%p525) target = $region68
      $region67: #{forward_huffpost.4} parent=15 // pred_region
        %p528 = scmp.lt.s32.totalorder %s28, 1
        %s529 = scalar_select %p528, %s28, 1
        %s530 = scalar_lea.vmem %s12, %s529
      $region68: #{forward_huffpost.4} parent=15 // pred_fallthru
        _
      // Predicated region
      $region69: #{forward_huffpost.4} parent=15 // pred_check
        %p531 = pneg %p390
      $region70: #{forward_huffpost.4} parent=15 // pred_check_branch
        %533 = sbr.rel (%p531) target = $region72
      $region71: #{forward_huffpost.4} parent=15 // pred_region
        %p534 = scmp.lt.s32.totalorder %s28, 1
        %s535 = scalar_select %p534, %s28, 1
        %s536 = scalar_lea.vmem %s13, %s535
      $region72: #{forward_huffpost.4} parent=15 // pred_fallthru
        _
    $region16: #{forward_huffpost.4} parent=5 // pred_fallthru
      _
    %p537 = scmp.le.s32.totalorder 1, %s20
    %p538 = scmp.lt.s32.totalorder %s20, 5
    %p539 = pnand %p537, %p538
    %p540 = pneg %p539
    // Predicated region
    $region73: #{forward_huffpost.4} parent=5 // pred_check
      _
    $region74: #{forward_huffpost.4} parent=5 // pred_check_branch
      %542 = sbr.rel (%p539) target = $region76
    $region75: #{forward_huffpost.4} parent=5 // pred_region
      %s543 = ssub.s32 %s20, 1
      %p544 = scmp.lt.s32.totalorder %s29, 1
      %s545 = scalar_select %p544, %s29, 1
      %s546 = smul.addr %s545, 16
      %s547 = smul.addr %s546, 8
      %s548 = scalar_lea.vmem %s0, %s547
      %p549 = pneg %p58
      %p550 = pneg %p55
      %p551 = scmp.lt.s32.totalorder %s29, 1
      %s552 = scalar_select %p551, %s29, 1
      %s553 = scalar_lea.vmem %s1, %s552
      %p554 = pneg %p84
      %p555 = pneg %p81
      %p556 = scmp.lt.s32.totalorder %s30, 1
      %s557 = scalar_select %p556, %s30, 1
      %s558 = smul.addr %s557, 48
      %s559 = smul.addr %s558, 4
      %s560 = scalar_lea.vmem %s2, %s559
      %p561 = pneg %p110
      %p562 = pneg %p107
      %p563 = scmp.lt.s32.totalorder %s30, 1
      %s564 = scalar_select %p563, %s30, 1
      %s565 = smul.addr %s564, 3
      %s566 = scalar_lea.vmem %s3, %s565
      %p567 = pneg %p136
      %p568 = pneg %p133
      %p569 = scmp.lt.s32.totalorder %s30, 1
      %s570 = scalar_select %p569, %s30, 1
      %s571 = smul.addr %s570, 16
      %s572 = smul.addr %s571, 4
      %s573 = scalar_lea.vmem %s4, %s572
      %p574 = pneg %p162
      %p575 = pneg %p159
      %p576 = scmp.lt.s32.totalorder %s30, 1
      %s577 = scalar_select %p576, %s30, 1
      %s578 = scalar_lea.vmem %s5, %s577
      %p579 = pneg %p188
      %p580 = pneg %p185
      %p581 = scmp.lt.s32.totalorder %s30, 1
      %s582 = scalar_select %p581, %s30, 1
      %s583 = scalar_lea.vmem %s6, %s582
      %p584 = pneg %p214
      %p585 = pneg %p211
      %p586 = scmp.lt.s32.totalorder %s30, 1
      %s587 = scalar_select %p586, %s30, 1
      %s588 = scalar_lea.vmem %s7, %s587
      %p589 = pneg %p240
      %p590 = pneg %p237
      %p591 = scmp.lt.s32.totalorder %s30, 1
      %s592 = scalar_select %p591, %s30, 1
      %s593 = smul.addr %s592, 64
      %s594 = smul.addr %s593, 4
      %s595 = scalar_lea.vmem %s8, %s594
      %p596 = pneg %p266
      %p597 = pneg %p263
      %p598 = scmp.lt.s32.totalorder %s30, 1
      %s599 = scalar_select %p598, %s30, 1
      %s600 = smul.addr %s599, 4
      %s601 = scalar_lea.vmem %s9, %s600
      %p602 = pneg %p292
      %p603 = pneg %p289
      %p604 = scmp.lt.s32.totalorder %s30, 1
      %s605 = scalar_select %p604, %s30, 1
      %s606 = smul.addr %s605, 64
      %s607 = smul.addr %s606, 4
      %s608 = scalar_lea.vmem %s10, %s607
      %p609 = pneg %p318
      %p610 = pneg %p315
      %p611 = scmp.lt.s32.totalorder %s30, 1
      %s612 = scalar_select %p611, %s30, 1
      %s613 = scalar_lea.vmem %s11, %s612
      %p614 = pneg %p344
      %p615 = pneg %p341
      %p616 = scmp.lt.s32.totalorder %s30, 1
      %s617 = scalar_select %p616, %s30, 1
      %s618 = scalar_lea.vmem %s12, %s617
      %p619 = pneg %p370
      %p620 = pneg %p367
      %p621 = scmp.lt.s32.totalorder %s30, 1
      %s622 = scalar_select %p621, %s30, 1
      %s623 = scalar_lea.vmem %s13, %s622
      %p624 = pneg %p396
      %p625 = pneg %p393
      %p626 = pneg %p422
      %p627 = pneg %p419
      %p628 = scmp.lt.s32.totalorder %s29, 1
      %s629 = scalar_select %p628, %s29, 1
      %s630 = smul.addr %s629, 16
      %s631 = smul.addr %s630, 8
      %s632 = scalar_lea.vmem %s14, %s631
      %p633 = scmp.lt.s32.totalorder %s29, 1
      %s634 = scalar_select %p633, %s29, 1
      %s635 = smul.addr %s634, 16
      %s636 = smul.addr %s635, 8
      %s637 = scalar_lea.vmem %s0, %s636
      %p638 = scmp.lt.s32.totalorder %s29, 1
      %s639 = scalar_select %p638, %s29, 1
      %s640 = scalar_lea.vmem %s1, %s639
      %p641 = scmp.lt.s32.totalorder %s30, 1
      %s642 = scalar_select %p641, %s30, 1
      %s643 = smul.addr %s642, 48
      %s644 = smul.addr %s643, 4
      %s645 = scalar_lea.vmem %s2, %s644
      %p646 = scmp.lt.s32.totalorder %s30, 1
      %s647 = scalar_select %p646, %s30, 1
      %s648 = smul.addr %s647, 3
      %s649 = scalar_lea.vmem %s3, %s648
      %p650 = scmp.lt.s32.totalorder %s30, 1
      %s651 = scalar_select %p650, %s30, 1
      %s652 = smul.addr %s651, 16
      %s653 = smul.addr %s652, 4
      %s654 = scalar_lea.vmem %s4, %s653
      %p655 = scmp.lt.s32.totalorder %s30, 1
      %s656 = scalar_select %p655, %s30, 1
      %s657 = scalar_lea.vmem %s5, %s656
      %p658 = scmp.lt.s32.totalorder %s30, 1
      %s659 = scalar_select %p658, %s30, 1
      %s660 = scalar_lea.vmem %s6, %s659
      %p661 = scmp.lt.s32.totalorder %s30, 1
      %s662 = scalar_select %p661, %s30, 1
      %s663 = scalar_lea.vmem %s7, %s662
      %p664 = scmp.lt.s32.totalorder %s30, 1
      %s665 = scalar_select %p664, %s30, 1
      %s666 = smul.addr %s665, 64
      %s667 = smul.addr %s666, 4
      %s668 = scalar_lea.vmem %s8, %s667
      %p669 = scmp.lt.s32.totalorder %s30, 1
      %s670 = scalar_select %p669, %s30, 1
      %s671 = smul.addr %s670, 4
      %s672 = scalar_lea.vmem %s9, %s671
      %p673 = scmp.lt.s32.totalorder %s30, 1
      %s674 = scalar_select %p673, %s30, 1
      %s675 = smul.addr %s674, 64
      %s676 = smul.addr %s675, 4
      %s677 = scalar_lea.vmem %s10, %s676
      %p678 = scmp.lt.s32.totalorder %s30, 1
      %s679 = scalar_select %p678, %s30, 1
      %s680 = scalar_lea.vmem %s11, %s679
      %p681 = scmp.lt.s32.totalorder %s30, 1
      %s682 = scalar_select %p681, %s30, 1
      %s683 = scalar_lea.vmem %s12, %s682
      %p684 = scmp.lt.s32.totalorder %s30, 1
      %s685 = scalar_select %p684, %s30, 1
      %s686 = scalar_lea.vmem %s13, %s685
      %p687 = scmp.lt.s32.totalorder %s29, 1
      %s688 = scalar_select %p687, %s29, 1
      %s689 = smul.addr %s688, 16
      %s690 = smul.addr %s689, 8
      %s691 = scalar_lea.vmem %s14, %s690
      %p693 = scmp.eq.s32.totalorder %s30, 0
      // Predicated region
      $region77: #{forward_huffpost.4} parent=75 // pred_check
        %p694 = pneg %p693
      $region78: #{forward_huffpost.4} parent=75 // pred_check_branch
        %696 = sbr.rel (%p694) target = $region80
      $region79: #{forward_huffpost.4} parent=75 // pred_region
        %v697 = vld [vmem:[%s637] sm:$0xff]
        %v698 = vld [vmem:[%s637 + $0x8] sm:$0xff]
        %v699 = vld [vmem:[%s637 + $0x10] sm:$0xff]
        %v700 = vld [vmem:[%s637 + $0x18] sm:$0xff]
        %v701 = vld [vmem:[%s637 + $0x20] sm:$0xff]
        %v702 = vld [vmem:[%s637 + $0x28] sm:$0xff]
        %v703 = vld [vmem:[%s637 + $0x30] sm:$0xff]
        %v704 = vld [vmem:[%s637 + $0x38] sm:$0xff]
        %v705 = vld [vmem:[%s637 + $0x40] sm:$0xff]
        %v706 = vld [vmem:[%s637 + $0x48] sm:$0xff]
        %v707 = vld [vmem:[%s637 + $0x50] sm:$0xff]
        %v708 = vld [vmem:[%s637 + $0x58] sm:$0xff]
        %v709 = vld [vmem:[%s637 + $0x60] sm:$0xff]
        %v710 = vld [vmem:[%s637 + $0x68] sm:$0xff]
        %v711 = vld [vmem:[%s637 + $0x70] sm:$0xff]
        %v712 = vld [vmem:[%s637 + $0x78] sm:$0xff]
        %713 = vst [vmem:[#allocation2] sm:$0xff] %v697
        %714 = vst [vmem:[#allocation2 + $0x8] sm:$0xff] %v698
        %715 = vst [vmem:[#allocation2 + $0x10] sm:$0xff] %v699
        %716 = vst [vmem:[#allocation2 + $0x18] sm:$0xff] %v700
        %717 = vst [vmem:[#allocation2 + $0x20] sm:$0xff] %v701
        %718 = vst [vmem:[#allocation2 + $0x28] sm:$0xff] %v702
        %719 = vst [vmem:[#allocation2 + $0x30] sm:$0xff] %v703
        %720 = vst [vmem:[#allocation2 + $0x38] sm:$0xff] %v704
        %721 = vst [vmem:[#allocation2 + $0x40] sm:$0xff] %v705
        %722 = vst [vmem:[#allocation2 + $0x48] sm:$0xff] %v706
        %723 = vst [vmem:[#allocation2 + $0x50] sm:$0xff] %v707
        %724 = vst [vmem:[#allocation2 + $0x58] sm:$0xff] %v708
        %725 = vst [vmem:[#allocation2 + $0x60] sm:$0xff] %v709
        %726 = vst [vmem:[#allocation2 + $0x68] sm:$0xff] %v710
        %727 = vst [vmem:[#allocation2 + $0x70] sm:$0xff] %v711
        %728 = vst [vmem:[#allocation2 + $0x78] sm:$0xff] %v712
      $region80: #{forward_huffpost.4} parent=75 // pred_fallthru
        _
      %v729 = vld [vmem:[#allocation2] sm:$0xff]
      %v730 = vld [vmem:[#allocation2 + $0x8] sm:$0xff]
      %v731 = vld [vmem:[#allocation2 + $0x10] sm:$0xff]
      %v732 = vld [vmem:[#allocation2 + $0x18] sm:$0xff]
      %v733 = vld [vmem:[#allocation2 + $0x20] sm:$0xff]
      %v734 = vld [vmem:[#allocation2 + $0x28] sm:$0xff]
      %v735 = vld [vmem:[#allocation2 + $0x30] sm:$0xff]
      %v736 = vld [vmem:[#allocation2 + $0x38] sm:$0xff]
      %v737 = vld [vmem:[#allocation2 + $0x40] sm:$0xff]
      %v738 = vld [vmem:[#allocation2 + $0x48] sm:$0xff]
      %v739 = vld [vmem:[#allocation2 + $0x50] sm:$0xff]
      %v740 = vld [vmem:[#allocation2 + $0x58] sm:$0xff]
      %v741 = vld [vmem:[#allocation2 + $0x60] sm:$0xff]
      %v742 = vld [vmem:[#allocation2 + $0x68] sm:$0xff]
      %v743 = vld [vmem:[#allocation2 + $0x70] sm:$0xff]
      %v744 = vld [vmem:[#allocation2 + $0x78] sm:$0xff]
      %v745 = vld [vmem:[%s640] sm:$0x1]
      %v746 = vpack.c.bf16 %v730, %v729
      %v747 = vpack.c.bf16 %v732, %v731
      %v748 = vpack.c.bf16 %v734, %v733
      %v749 = vpack.c.bf16 %v736, %v735
      %v750 = vpack.c.bf16 %v738, %v737
      %v751 = vpack.c.bf16 %v740, %v739
      %v752 = vpack.c.bf16 %v742, %v741
      %v753 = vpack.c.bf16 %v744, %v743
      %v754 = vld [vmem:[%s645] sm:$0xff]
      %v755 = vld [vmem:[%s645 + $0x8] sm:$0xf]
      %v756 = vld [vmem:[%s645 + $0xc] sm:$0xff]
      %v757 = vld [vmem:[%s645 + $0x14] sm:$0xf]
      %v758 = vld [vmem:[%s645 + $0x18] sm:$0xff]
      %v759 = vld [vmem:[%s645 + $0x20] sm:$0xf]
      %v760 = vld [vmem:[%s645 + $0x24] sm:$0xff]
      %v761 = vld [vmem:[%s645 + $0x2c] sm:$0xf]
      %v762 = vld [vmem:[%s645 + $0x30] sm:$0xff]
      %v763 = vld [vmem:[%s645 + $0x38] sm:$0xf]
      %v764 = vld [vmem:[%s645 + $0x3c] sm:$0xff]
      %v765 = vld [vmem:[%s645 + $0x44] sm:$0xf]
      %v766 = vld [vmem:[%s645 + $0x48] sm:$0xff]
      %v767 = vld [vmem:[%s645 + $0x50] sm:$0xf]
      %v768 = vld [vmem:[%s645 + $0x54] sm:$0xff]
      %v769 = vld [vmem:[%s645 + $0x5c] sm:$0xf]
      %v770 = vld [vmem:[%s645 + $0x60] sm:$0xff]
      %v771 = vld [vmem:[%s645 + $0x68] sm:$0xf]
      %v772 = vld [vmem:[%s645 + $0x6c] sm:$0xff]
      %v773 = vld [vmem:[%s645 + $0x74] sm:$0xf]
      %v774 = vld [vmem:[%s645 + $0x78] sm:$0xff]
      %v775 = vld [vmem:[%s645 + $0x80] sm:$0xf]
      %v776 = vld [vmem:[%s645 + $0x84] sm:$0xff]
      %v777 = vld [vmem:[%s645 + $0x8c] sm:$0xf]
      %v778 = vld [vmem:[%s645 + $0x90] sm:$0xff]
      %v779 = vld [vmem:[%s645 + $0x98] sm:$0xf]
      %v780 = vld [vmem:[%s645 + $0x9c] sm:$0xff]
      %v781 = vld [vmem:[%s645 + $0xa4] sm:$0xf]
      %v782 = vld [vmem:[%s645 + $0xa8] sm:$0xff]
      %v783 = vld [vmem:[%s645 + $0xb0] sm:$0xf]
      %v784 = vld [vmem:[%s645 + $0xb4] sm:$0xff]
      %v785 = vld [vmem:[%s645 + $0xbc] sm:$0xf]
      %v786 = vld [vmem:[%s649] sm:$0x7]
      %v788 = vlaneseq
      %v789 = vshrl.u32 %v788, 7
      %v790 = vsub.s32 0, %v789
      %v791 = vrot.slane %v786, %v790
      %v792 = vlaneseq
      %v793 = vshrl.u32 %v792, 7
      %v794 = vsub.s32 1, %v793
      %v795 = vrot.slane %v786, %v794
      %v796 = vlaneseq
      %v797 = vshrl.u32 %v796, 7
      %v798 = vsub.s32 2, %v797
      %v799 = vrot.slane %v786, %v798
      %v835 = vunpack.c.l.b16 %v754
      %v836 = vunpack.c.h.b16 %v754
      %v837 = vunpack.c.l.b16 %v755
      %v838 = vunpack.c.l.b16 %v756
      %v839 = vunpack.c.h.b16 %v756
      %v840 = vunpack.c.l.b16 %v757
      %v841 = vunpack.c.l.b16 %v758
      %v842 = vunpack.c.h.b16 %v758
      %v843 = vunpack.c.l.b16 %v759
      %v844 = vunpack.c.l.b16 %v760
      %v845 = vunpack.c.h.b16 %v760
      %v846 = vunpack.c.l.b16 %v761
      %v847 = vunpack.c.l.b16 %v762
      %v848 = vunpack.c.h.b16 %v762
      %v849 = vunpack.c.l.b16 %v763
      %v850 = vunpack.c.l.b16 %v764
      %v851 = vunpack.c.h.b16 %v764
      %v852 = vunpack.c.l.b16 %v765
      %v853 = vunpack.c.l.b16 %v766
      %v854 = vunpack.c.h.b16 %v766
      %v855 = vunpack.c.l.b16 %v767
      %v856 = vunpack.c.l.b16 %v768
      %v857 = vunpack.c.h.b16 %v768
      %v858 = vunpack.c.l.b16 %v769
      %v859 = vunpack.c.l.b16 %v770
      %v860 = vunpack.c.h.b16 %v770
      %v861 = vunpack.c.l.b16 %v771
      %v862 = vunpack.c.l.b16 %v772
      %v863 = vunpack.c.h.b16 %v772
      %v864 = vunpack.c.l.b16 %v773
      %v865 = vunpack.c.l.b16 %v774
      %v866 = vunpack.c.h.b16 %v774
      %v867 = vunpack.c.l.b16 %v775
      %v868 = vunpack.c.l.b16 %v776
      %v869 = vunpack.c.h.b16 %v776
      %v870 = vunpack.c.l.b16 %v777
      %v871 = vunpack.c.l.b16 %v778
      %v872 = vunpack.c.h.b16 %v778
      %v873 = vunpack.c.l.b16 %v779
      %v874 = vunpack.c.l.b16 %v780
      %v875 = vunpack.c.h.b16 %v780
      %v876 = vunpack.c.l.b16 %v781
      %v877 = vunpack.c.l.b16 %v782
      %v878 = vunpack.c.h.b16 %v782
      %v879 = vunpack.c.l.b16 %v783
      %v880 = vunpack.c.l.b16 %v784
      %v881 = vunpack.c.h.b16 %v784
      %v882 = vunpack.c.l.b16 %v785
      %v883 = vpack.c.b16 %v838, %v835
      %v884 = vpack.c.b16 %v839, %v836
      %v885 = vpack.c.b16 %v840, %v837
      %v886 = vpack.c.b16 %v844, %v841
      %v887 = vpack.c.b16 %v845, %v842
      %v888 = vpack.c.b16 %v846, %v843
      %v889 = vpack.c.b16 %v850, %v847
      %v890 = vpack.c.b16 %v851, %v848
      %v891 = vpack.c.b16 %v852, %v849
      %v892 = vpack.c.b16 %v856, %v853
      %v893 = vpack.c.b16 %v857, %v854
      %v894 = vpack.c.b16 %v858, %v855
      %v895 = vpack.c.b16 %v862, %v859
      %v896 = vpack.c.b16 %v863, %v860
      %v897 = vpack.c.b16 %v864, %v861
      %v898 = vpack.c.b16 %v868, %v865
      %v899 = vpack.c.b16 %v869, %v866
      %v900 = vpack.c.b16 %v870, %v867
      %v901 = vpack.c.b16 %v874, %v871
      %v902 = vpack.c.b16 %v875, %v872
      %v903 = vpack.c.b16 %v876, %v873
      %v904 = vpack.c.b16 %v880, %v877
      %v905 = vpack.c.b16 %v881, %v878
      %v906 = vpack.c.b16 %v882, %v879
      %931 = vmatprep.subr.bf16.mxu0 %v905
      %932 = vmatpush1.bf16.msra.mxu0 %v904
      %933 = vmatprep.subr.bf16.mxu0 %v902
      %934 = vmatpush1.bf16.msra.mxu0 %v901
      %935 = vmatprep.subr.bf16.mxu0 %v899
      %936 = vmatpush1.bf16.msra.mxu0 %v898
      %937 = vmatprep.subr.bf16.mxu0 %v896
      %938 = vmatpush1.bf16.msra.mxu0 %v895
      %939 = vmatprep.subr.bf16.mxu0 %v893
      %940 = vmatpush1.bf16.msra.mxu0 %v892
      %941 = vmatprep.subr.bf16.mxu0 %v890
      %942 = vmatpush1.bf16.msra.mxu0 %v889
      %943 = vmatprep.subr.bf16.mxu0 %v887
      %944 = vmatpush1.bf16.msra.mxu0 %v886
      %945 = vmatprep.subr.bf16.mxu0 %v884
      %946 = vmatpush1.bf16.msra.mxu0 %v883
      %947 = vmatprep.subr.bf16.mxu0 0
      %948 = vmatpush2.bf16.msra.mxu0 0
      %949 = vmatprep.subr.bf16.mxu0 0
      %950 = vmatpush2.bf16.msra.mxu0 0
      %951 = vmatprep.subr.bf16.mxu0 0
      %952 = vmatpush2.bf16.msra.mxu0 0
      %953 = vmatprep.subr.bf16.mxu0 0
      %954 = vmatpush2.bf16.msra.mxu0 0
      %955 = vmatprep.subr.bf16.mxu0 0
      %956 = vmatpush2.bf16.msra.mxu0 0
      %957 = vmatprep.subr.bf16.mxu0 0
      %958 = vmatpush2.bf16.msra.mxu0 0
      %959 = vmatprep.subr.bf16.mxu0 0
      %960 = vmatpush2.bf16.msra.mxu0 0
      %961 = vmatprep.subr.bf16.mxu0 0
      %962 = vmatpush2.bf16.msra.mxu0 0
      %963 = vmatprep.mubr.bf16.mxu0 0
      %964 = vmatmul.mubr.bf16.gmra.mxu0 %v746
      %v965 = vpop.f32.mrf.mxu0
      %v966 = vadd.f32 %v791, %v965
      %v967 = vpop.f32.mrf.mxu0
      %v968 = vadd.f32 %v795, %v967
      %v969 = vpop.f32.mrf.mxu0
      %v970 = vadd.f32 %v791, %v969
      %v971 = vpop.f32.mrf.mxu0
      %v972 = vadd.f32 %v795, %v971
      %973 = vmatprep.mubr.bf16.mxu0 0
      %974 = vmatmul.mubr.bf16.gmra.mxu0 %v747
      %v975 = vpop.f32.mrf.mxu0
      %v976 = vadd.f32 %v791, %v975
      %v977 = vpop.f32.mrf.mxu0
      %v978 = vadd.f32 %v795, %v977
      %v979 = vpop.f32.mrf.mxu0
      %v980 = vadd.f32 %v791, %v979
      %v981 = vpop.f32.mrf.mxu0
      %v982 = vadd.f32 %v795, %v981
      %983 = vmatprep.mubr.bf16.mxu0 0
      %984 = vmatmul.mubr.bf16.gmra.mxu0 %v748
      %v985 = vpop.f32.mrf.mxu0
      %v986 = vadd.f32 %v791, %v985
      %v987 = vpop.f32.mrf.mxu0
      %v988 = vadd.f32 %v795, %v987
      %v989 = vpop.f32.mrf.mxu0
      %v990 = vadd.f32 %v791, %v989
      %v991 = vpop.f32.mrf.mxu0
      %v992 = vadd.f32 %v795, %v991
      %993 = vmatprep.mubr.bf16.mxu0 0
      %994 = vmatmul.mubr.bf16.gmra.mxu0 %v749
      %v995 = vpop.f32.mrf.mxu0
      %v996 = vadd.f32 %v791, %v995
      %v997 = vpop.f32.mrf.mxu0
      %v998 = vadd.f32 %v795, %v997
      %v999 = vpop.f32.mrf.mxu0
      %v1000 = vadd.f32 %v791, %v999
      %v1001 = vpop.f32.mrf.mxu0
      %v1002 = vadd.f32 %v795, %v1001
      %1003 = vmatprep.mubr.bf16.mxu0 0
      %1004 = vmatmul.mubr.bf16.gmra.mxu0 %v750
      %v1005 = vpop.f32.mrf.mxu0
      %v1006 = vadd.f32 %v791, %v1005
      %v1007 = vpop.f32.mrf.mxu0
      %v1008 = vadd.f32 %v795, %v1007
      %v1009 = vpop.f32.mrf.mxu0
      %v1010 = vadd.f32 %v791, %v1009
      %v1011 = vpop.f32.mrf.mxu0
      %v1012 = vadd.f32 %v795, %v1011
      %1013 = vmatprep.mubr.bf16.mxu0 0
      %1014 = vmatmul.mubr.bf16.gmra.mxu0 %v751
      %v1015 = vpop.f32.mrf.mxu0
      %v1016 = vadd.f32 %v791, %v1015
      %v1017 = vpop.f32.mrf.mxu0
      %v1018 = vadd.f32 %v795, %v1017
      %v1019 = vpop.f32.mrf.mxu0
      %v1020 = vadd.f32 %v791, %v1019
      %v1021 = vpop.f32.mrf.mxu0
      %v1022 = vadd.f32 %v795, %v1021
      %1023 = vmatprep.mubr.bf16.mxu0 0
      %1024 = vmatmul.mubr.bf16.gmra.mxu0 %v752
      %v1025 = vpop.f32.mrf.mxu0
      %v1026 = vadd.f32 %v791, %v1025
      %v1027 = vpop.f32.mrf.mxu0
      %v1028 = vadd.f32 %v795, %v1027
      %v1029 = vpop.f32.mrf.mxu0
      %v1030 = vadd.f32 %v791, %v1029
      %v1031 = vpop.f32.mrf.mxu0
      %v1032 = vadd.f32 %v795, %v1031
      %1033 = vmatprep.mubr.bf16.mxu0 0
      %1034 = vmatmul.mubr.bf16.gmra.mxu0 %v753
      %v1035 = vpop.f32.mrf.mxu0
      %v1036 = vadd.f32 %v791, %v1035
      %v1037 = vpop.f32.mrf.mxu0
      %v1038 = vadd.f32 %v795, %v1037
      %v1039 = vpop.f32.mrf.mxu0
      %v1040 = vadd.f32 %v791, %v1039
      %v1041 = vpop.f32.mrf.mxu0
      %v1042 = vadd.f32 %v795, %v1041
      %1043 = vdwg.mxu0
      %1044 = vmatprep.subr.bf16.mxu0 0
      %1045 = vmatpush1.bf16.msra.mxu0 %v906
      %1046 = vmatprep.subr.bf16.mxu0 0
      %1047 = vmatpush1.bf16.msra.mxu0 %v903
      %1048 = vmatprep.subr.bf16.mxu0 0
      %1049 = vmatpush1.bf16.msra.mxu0 %v900
      %1050 = vmatprep.subr.bf16.mxu0 0
      %1051 = vmatpush1.bf16.msra.mxu0 %v897
      %1052 = vmatprep.subr.bf16.mxu0 0
      %1053 = vmatpush1.bf16.msra.mxu0 %v894
      %1054 = vmatprep.subr.bf16.mxu0 0
      %1055 = vmatpush1.bf16.msra.mxu0 %v891
      %1056 = vmatprep.subr.bf16.mxu0 0
      %1057 = vmatpush1.bf16.msra.mxu0 %v888
      %1058 = vmatprep.subr.bf16.mxu0 0
      %1059 = vmatpush1.bf16.msra.mxu0 %v885
      %1060 = vmatprep.subr.bf16.mxu0 0
      %1061 = vmatpush2.bf16.msra.mxu0 0
      %1062 = vmatprep.subr.bf16.mxu0 0
      %1063 = vmatpush2.bf16.msra.mxu0 0
      %1064 = vmatprep.subr.bf16.mxu0 0
      %1065 = vmatpush2.bf16.msra.mxu0 0
      %1066 = vmatprep.subr.bf16.mxu0 0
      %1067 = vmatpush2.bf16.msra.mxu0 0
      %1068 = vmatprep.subr.bf16.mxu0 0
      %1069 = vmatpush2.bf16.msra.mxu0 0
      %1070 = vmatprep.subr.bf16.mxu0 0
      %1071 = vmatpush2.bf16.msra.mxu0 0
      %1072 = vmatprep.subr.bf16.mxu0 0
      %1073 = vmatpush2.bf16.msra.mxu0 0
      %1074 = vmatprep.subr.bf16.mxu0 0
      %1075 = vmatpush2.bf16.msra.mxu0 0
      %1076 = vmatprep.mubr.bf16.mxu0 0
      %1077 = vmatmul.mubr.bf16.gmra.mxu0 %v746
      %v1078 = vpop.f32.mrf.mxu0
      %v1079 = vadd.f32 %v799, %v1078
      %v1080 = vpop.f32.mrf.mxu0
      %v1081 = vpop.f32.mrf.mxu0
      %v1082 = vadd.f32 %v799, %v1081
      %v1083 = vpop.f32.mrf.mxu0
      %1084 = vmatprep.mubr.bf16.mxu0 0
      %1085 = vmatmul.mubr.bf16.gmra.mxu0 %v747
      %v1086 = vpop.f32.mrf.mxu0
      %v1087 = vadd.f32 %v799, %v1086
      %v1088 = vpop.f32.mrf.mxu0
      %v1089 = vpop.f32.mrf.mxu0
      %v1090 = vadd.f32 %v799, %v1089
      %v1091 = vpop.f32.mrf.mxu0
      %1092 = vmatprep.mubr.bf16.mxu0 0
      %1093 = vmatmul.mubr.bf16.gmra.mxu0 %v748
      %v1094 = vpop.f32.mrf.mxu0
      %v1095 = vadd.f32 %v799, %v1094
      %v1096 = vpop.f32.mrf.mxu0
      %v1097 = vpop.f32.mrf.mxu0
      %v1098 = vadd.f32 %v799, %v1097
      %v1099 = vpop.f32.mrf.mxu0
      %1100 = vmatprep.mubr.bf16.mxu0 0
      %1101 = vmatmul.mubr.bf16.gmra.mxu0 %v749
      %v1102 = vpop.f32.mrf.mxu0
      %v1103 = vadd.f32 %v799, %v1102
      %v1104 = vpop.f32.mrf.mxu0
      %v1105 = vpop.f32.mrf.mxu0
      %v1106 = vadd.f32 %v799, %v1105
      %v1107 = vpop.f32.mrf.mxu0
      %1108 = vmatprep.mubr.bf16.mxu0 0
      %1109 = vmatmul.mubr.bf16.gmra.mxu0 %v750
      %v1110 = vpop.f32.mrf.mxu0
      %v1111 = vadd.f32 %v799, %v1110
      %v1112 = vpop.f32.mrf.mxu0
      %v1113 = vpop.f32.mrf.mxu0
      %v1114 = vadd.f32 %v799, %v1113
      %v1115 = vpop.f32.mrf.mxu0
      %1116 = vmatprep.mubr.bf16.mxu0 0
      %1117 = vmatmul.mubr.bf16.gmra.mxu0 %v751
      %v1118 = vpop.f32.mrf.mxu0
      %v1119 = vadd.f32 %v799, %v1118
      %v1120 = vpop.f32.mrf.mxu0
      %v1121 = vpop.f32.mrf.mxu0
      %v1122 = vadd.f32 %v799, %v1121
      %v1123 = vpop.f32.mrf.mxu0
      %1124 = vmatprep.mubr.bf16.mxu0 0
      %1125 = vmatmul.mubr.bf16.gmra.mxu0 %v752
      %v1126 = vpop.f32.mrf.mxu0
      %v1127 = vadd.f32 %v799, %v1126
      %v1128 = vpop.f32.mrf.mxu0
      %v1129 = vpop.f32.mrf.mxu0
      %v1130 = vadd.f32 %v799, %v1129
      %v1131 = vpop.f32.mrf.mxu0
      %1132 = vmatprep.mubr.bf16.mxu0 0
      %1133 = vmatmul.mubr.bf16.gmra.mxu0 %v753
      %v1134 = vpop.f32.mrf.mxu0
      %v1135 = vadd.f32 %v799, %v1134
      %v1136 = vpop.f32.mrf.mxu0
      %v1137 = vpop.f32.mrf.mxu0
      %v1138 = vadd.f32 %v799, %v1137
      %v1139 = vpop.f32.mrf.mxu0
      %1140 = vdwg.mxu0
      %v1141 = vpack.c.bf16 %v970, %v966
      %v1142 = vpack.c.bf16 %v980, %v976
      %v1143 = vpack.c.bf16 %v990, %v986
      %v1144 = vpack.c.bf16 %v1000, %v996
      %v1145 = vpack.c.bf16 %v1010, %v1006
      %v1146 = vpack.c.bf16 %v1020, %v1016
      %v1147 = vpack.c.bf16 %v1030, %v1026
      %v1148 = vpack.c.bf16 %v1040, %v1036
      %v1149 = vpack.c.bf16 %v972, %v968
      %v1150 = vpack.c.bf16 %v982, %v978
      %v1151 = vpack.c.bf16 %v992, %v988
      %v1152 = vpack.c.bf16 %v1002, %v998
      %v1153 = vpack.c.bf16 %v1012, %v1008
      %v1154 = vpack.c.bf16 %v1022, %v1018
      %v1155 = vpack.c.bf16 %v1032, %v1028
      %v1156 = vpack.c.bf16 %v1042, %v1038
      %v1157 = vpack.c.bf16 %v1082, %v1079
      %v1158 = vpack.c.bf16 %v1090, %v1087
      %v1159 = vpack.c.bf16 %v1098, %v1095
      %v1160 = vpack.c.bf16 %v1106, %v1103
      %v1161 = vpack.c.bf16 %v1114, %v1111
      %v1162 = vpack.c.bf16 %v1122, %v1119
      %v1163 = vpack.c.bf16 %v1130, %v1127
      %v1164 = vpack.c.bf16 %v1138, %v1135
      %vm1165 = vcmask 523264
      %v1167 = vsel %vm1165, %v1141, 0
      %v1170 = vsel %vm1165, %v1142, 0
      %v1173 = vsel %vm1165, %v1143, 0
      %v1176 = vsel %vm1165, %v1144, 0
      %v1179 = vsel %vm1165, %v1145, 0
      %v1182 = vsel %vm1165, %v1146, 0
      %v1185 = vsel %vm1165, %v1147, 0
      %v1188 = vsel %vm1165, %v1148, 0
      %v1191 = vsel %vm1165, %v1149, 0
      %v1194 = vsel %vm1165, %v1150, 0
      %v1197 = vsel %vm1165, %v1151, 0
      %v1200 = vsel %vm1165, %v1152, 0
      %v1203 = vsel %vm1165, %v1153, 0
      %v1206 = vsel %vm1165, %v1154, 0
      %v1209 = vsel %vm1165, %v1155, 0
      %v1212 = vsel %vm1165, %v1156, 0
      %1214 = vmatprep.subr.bf16.mxu0 0
      %1215 = vmatpush1.bf16.xpose.msra.mxu0 %v1212
      %1216 = vmatprep.subr.bf16.mxu0 0
      %1217 = vmatpush1.bf16.xpose.msra.mxu0 %v1209
      %1218 = vmatprep.subr.bf16.mxu0 0
      %1219 = vmatpush1.bf16.xpose.msra.mxu0 %v1206
      %1220 = vmatprep.subr.bf16.mxu0 0
      %1221 = vmatpush1.bf16.xpose.msra.mxu0 %v1203
      %1222 = vmatprep.subr.bf16.mxu0 0
      %1223 = vmatpush1.bf16.xpose.msra.mxu0 %v1200
      %1224 = vmatprep.subr.bf16.mxu0 0
      %1225 = vmatpush1.bf16.xpose.msra.mxu0 %v1197
      %1226 = vmatprep.subr.bf16.mxu0 0
      %1227 = vmatpush1.bf16.xpose.msra.mxu0 %v1194
      %1228 = vmatprep.subr.bf16.mxu0 0
      %1229 = vmatpush1.bf16.xpose.msra.mxu0 %v1191
      %1230 = vmatprep.subr.bf16.mxu0 0
      %1231 = vmatpush2.bf16.xpose.msra.mxu0 0
      %1232 = vmatprep.subr.bf16.mxu0 0
      %1233 = vmatpush2.bf16.xpose.msra.mxu0 0
      %1234 = vmatprep.subr.bf16.mxu0 0
      %1235 = vmatpush2.bf16.xpose.msra.mxu0 0
      %1236 = vmatprep.subr.bf16.mxu0 0
      %1237 = vmatpush2.bf16.xpose.msra.mxu0 0
      %1238 = vmatprep.subr.bf16.mxu0 0
      %1239 = vmatpush2.bf16.xpose.msra.mxu0 0
      %1240 = vmatprep.subr.bf16.mxu0 0
      %1241 = vmatpush2.bf16.xpose.msra.mxu0 0
      %1242 = vmatprep.subr.bf16.mxu0 0
      %1243 = vmatpush2.bf16.xpose.msra.mxu0 0
      %1244 = vmatprep.subr.bf16.mxu0 0
      %1245 = vmatpush2.bf16.xpose.msra.mxu0 0
      %1246 = vmatprep.mubr.bf16.mxu0 0
      %1247 = vmatmul.mubr.bf16.gmra.mxu0 %v1167
      %v1248 = vpop.f32.mrf.mxu0
      %v1249 = vadd.f32 0.0, %v1248
      %v1250 = vpop.f32.mrf.mxu0
      %v1251 = vpop.f32.mrf.mxu0
      %v1252 = vadd.f32 0.0, %v1251
      %v1253 = vpop.f32.mrf.mxu0
      %1254 = vmatprep.mubr.bf16.mxu0 0
      %1255 = vmatmul.mubr.bf16.gmra.mxu0 %v1170
      %v1256 = vpop.f32.mrf.mxu0
      %v1257 = vadd.f32 0.0, %v1256
      %v1258 = vpop.f32.mrf.mxu0
      %v1259 = vpop.f32.mrf.mxu0
      %v1260 = vadd.f32 0.0, %v1259
      %v1261 = vpop.f32.mrf.mxu0
      %1262 = vmatprep.mubr.bf16.mxu0 0
      %1263 = vmatmul.mubr.bf16.gmra.mxu0 %v1173
      %v1264 = vpop.f32.mrf.mxu0
      %v1265 = vadd.f32 0.0, %v1264
      %v1266 = vpop.f32.mrf.mxu0
      %v1267 = vpop.f32.mrf.mxu0
      %v1268 = vadd.f32 0.0, %v1267
      %v1269 = vpop.f32.mrf.mxu0
      %1270 = vmatprep.mubr.bf16.mxu0 0
      %1271 = vmatmul.mubr.bf16.gmra.mxu0 %v1176
      %v1272 = vpop.f32.mrf.mxu0
      %v1273 = vadd.f32 0.0, %v1272
      %v1274 = vpop.f32.mrf.mxu0
      %v1275 = vpop.f32.mrf.mxu0
      %v1276 = vadd.f32 0.0, %v1275
      %v1277 = vpop.f32.mrf.mxu0
      %1278 = vmatprep.mubr.bf16.mxu0 0
      %1279 = vmatmul.mubr.bf16.gmra.mxu0 %v1179
      %v1280 = vpop.f32.mrf.mxu0
      %v1281 = vadd.f32 0.0, %v1280
      %v1282 = vpop.f32.mrf.mxu0
      %v1283 = vpop.f32.mrf.mxu0
      %v1284 = vadd.f32 0.0, %v1283
      %v1285 = vpop.f32.mrf.mxu0
      %1286 = vmatprep.mubr.bf16.mxu0 0
      %1287 = vmatmul.mubr.bf16.gmra.mxu0 %v1182
      %v1288 = vpop.f32.mrf.mxu0
      %v1289 = vadd.f32 0.0, %v1288
      %v1290 = vpop.f32.mrf.mxu0
      %v1291 = vpop.f32.mrf.mxu0
      %v1292 = vadd.f32 0.0, %v1291
      %v1293 = vpop.f32.mrf.mxu0
      %1294 = vmatprep.mubr.bf16.mxu0 0
      %1295 = vmatmul.mubr.bf16.gmra.mxu0 %v1185
      %v1296 = vpop.f32.mrf.mxu0
      %v1297 = vadd.f32 0.0, %v1296
      %v1298 = vpop.f32.mrf.mxu0
      %v1299 = vpop.f32.mrf.mxu0
      %v1300 = vadd.f32 0.0, %v1299
      %v1301 = vpop.f32.mrf.mxu0
      %1302 = vmatprep.mubr.bf16.mxu0 0
      %1303 = vmatmul.mubr.bf16.gmra.mxu0 %v1188
      %v1304 = vpop.f32.mrf.mxu0
      %v1305 = vadd.f32 0.0, %v1304
      %v1306 = vpop.f32.mrf.mxu0
      %v1307 = vpop.f32.mrf.mxu0
      %v1308 = vadd.f32 0.0, %v1307
      %v1309 = vpop.f32.mrf.mxu0
      %1310 = vdwg.mxu0
      %v1311 = vmul.f32 %v1249, 0.125
      %v1312 = vmul.f32 %v1252, 0.125
      %v1313 = vmul.f32 %v1257, 0.125
      %v1314 = vmul.f32 %v1260, 0.125
      %v1315 = vmul.f32 %v1265, 0.125
      %v1316 = vmul.f32 %v1268, 0.125
      %v1317 = vmul.f32 %v1273, 0.125
      %v1318 = vmul.f32 %v1276, 0.125
      %v1319 = vmul.f32 %v1281, 0.125
      %v1320 = vmul.f32 %v1284, 0.125
      %v1321 = vmul.f32 %v1289, 0.125
      %v1322 = vmul.f32 %v1292, 0.125
      %v1323 = vmul.f32 %v1297, 0.125
      %v1324 = vmul.f32 %v1300, 0.125
      %v1325 = vmul.f32 %v1305, 0.125
      %v1326 = vmul.f32 %v1308, 0.125
      %v1328 = vlaneseq
      %v1329 = vshrl.u32 %v1328, 7
      %v1330 = vsub.s32 0, %v1329
      %v1331 = vrot.slane %v745, %v1330
      %v1333 = vadd.f32 %v1311, %v1331
      %v1334 = vadd.f32 %v1312, %v1331
      %v1335 = vadd.f32 %v1313, %v1331
      %v1336 = vadd.f32 %v1314, %v1331
      %v1337 = vadd.f32 %v1315, %v1331
      %v1338 = vadd.f32 %v1316, %v1331
      %v1339 = vadd.f32 %v1317, %v1331
      %v1340 = vadd.f32 %v1318, %v1331
      %v1341 = vadd.f32 %v1319, %v1331
      %v1342 = vadd.f32 %v1320, %v1331
      %v1343 = vadd.f32 %v1321, %v1331
      %v1344 = vadd.f32 %v1322, %v1331
      %v1345 = vadd.f32 %v1323, %v1331
      %v1346 = vadd.f32 %v1324, %v1331
      %v1347 = vadd.f32 %v1325, %v1331
      %v1348 = vadd.f32 %v1326, %v1331
      %1349 = vmax.xlane.f32.xlu0 %v1333
      %v1350 = vpop.xlane.xlu0 %1349
      %1351 = vmax.xlane.f32.xlu0 %v1334
      %v1352 = vpop.xlane.xlu0 %1351
      %1353 = vmax.xlane.f32.xlu0 %v1335
      %v1354 = vpop.xlane.xlu0 %1353
      %1355 = vmax.xlane.f32.xlu0 %v1336
      %v1356 = vpop.xlane.xlu0 %1355
      %1357 = vmax.xlane.f32.xlu0 %v1337
      %v1358 = vpop.xlane.xlu0 %1357
      %1359 = vmax.xlane.f32.xlu0 %v1338
      %v1360 = vpop.xlane.xlu0 %1359
      %1361 = vmax.xlane.f32.xlu0 %v1339
      %v1362 = vpop.xlane.xlu0 %1361
      %1363 = vmax.xlane.f32.xlu0 %v1340
      %v1364 = vpop.xlane.xlu0 %1363
      %1365 = vmax.xlane.f32.xlu0 %v1341
      %v1366 = vpop.xlane.xlu0 %1365
      %1367 = vmax.xlane.f32.xlu0 %v1342
      %v1368 = vpop.xlane.xlu0 %1367
      %1369 = vmax.xlane.f32.xlu0 %v1343
      %v1370 = vpop.xlane.xlu0 %1369
      %1371 = vmax.xlane.f32.xlu0 %v1344
      %v1372 = vpop.xlane.xlu0 %1371
      %1373 = vmax.xlane.f32.xlu0 %v1345
      %v1374 = vpop.xlane.xlu0 %1373
      %1375 = vmax.xlane.f32.xlu0 %v1346
      %v1376 = vpop.xlane.xlu0 %1375
      %1377 = vmax.xlane.f32.xlu0 %v1347
      %v1378 = vpop.xlane.xlu0 %1377
      %1379 = vmax.xlane.f32.xlu0 %v1348
      %v1380 = vpop.xlane.xlu0 %1379
      %v1381 = vsub.f32 %v1333, %v1350
      %v1382 = vsub.f32 %v1334, %v1352
      %v1383 = vsub.f32 %v1335, %v1354
      %v1384 = vsub.f32 %v1336, %v1356
      %v1385 = vsub.f32 %v1337, %v1358
      %v1386 = vsub.f32 %v1338, %v1360
      %v1387 = vsub.f32 %v1339, %v1362
      %v1388 = vsub.f32 %v1340, %v1364
      %v1389 = vsub.f32 %v1341, %v1366
      %v1390 = vsub.f32 %v1342, %v1368
      %v1391 = vsub.f32 %v1343, %v1370
      %v1392 = vsub.f32 %v1344, %v1372
      %v1393 = vsub.f32 %v1345, %v1374
      %v1394 = vsub.f32 %v1346, %v1376
      %v1395 = vsub.f32 %v1347, %v1378
      %v1396 = vsub.f32 %v1348, %v1380
      %v1397 = vmul.f32 %v1381, 1.442695
      %v1398 = vpow.pop %v1397
      %v1399 = vmul.f32 %v1382, 1.442695
      %v1400 = vpow.pop %v1399
      %v1401 = vmul.f32 %v1383, 1.442695
      %v1402 = vpow.pop %v1401
      %v1403 = vmul.f32 %v1384, 1.442695
      %v1404 = vpow.pop %v1403
      %v1405 = vmul.f32 %v1385, 1.442695
      %v1406 = vpow.pop %v1405
      %v1407 = vmul.f32 %v1386, 1.442695
      %v1408 = vpow.pop %v1407
      %v1409 = vmul.f32 %v1387, 1.442695
      %v1410 = vpow.pop %v1409
      %v1411 = vmul.f32 %v1388, 1.442695
      %v1412 = vpow.pop %v1411
      %v1413 = vmul.f32 %v1389, 1.442695
      %v1414 = vpow.pop %v1413
      %v1415 = vmul.f32 %v1390, 1.442695
      %v1416 = vpow.pop %v1415
      %v1417 = vmul.f32 %v1391, 1.442695
      %v1418 = vpow.pop %v1417
      %v1419 = vmul.f32 %v1392, 1.442695
      %v1420 = vpow.pop %v1419
      %v1421 = vmul.f32 %v1393, 1.442695
      %v1422 = vpow.pop %v1421
      %v1423 = vmul.f32 %v1394, 1.442695
      %v1424 = vpow.pop %v1423
      %v1425 = vmul.f32 %v1395, 1.442695
      %v1426 = vpow.pop %v1425
      %v1427 = vmul.f32 %v1396, 1.442695
      %v1428 = vpow.pop %v1427
      %1429 = vadd.xlane.f32.xlu0 %v1398
      %v1430 = vpop.xlane.xlu0 %1429
      %1431 = vadd.xlane.f32.xlu0 %v1400
      %v1432 = vpop.xlane.xlu0 %1431
      %1433 = vadd.xlane.f32.xlu0 %v1402
      %v1434 = vpop.xlane.xlu0 %1433
      %1435 = vadd.xlane.f32.xlu0 %v1404
      %v1436 = vpop.xlane.xlu0 %1435
      %1437 = vadd.xlane.f32.xlu0 %v1406
      %v1438 = vpop.xlane.xlu0 %1437
      %1439 = vadd.xlane.f32.xlu0 %v1408
      %v1440 = vpop.xlane.xlu0 %1439
      %1441 = vadd.xlane.f32.xlu0 %v1410
      %v1442 = vpop.xlane.xlu0 %1441
      %1443 = vadd.xlane.f32.xlu0 %v1412
      %v1444 = vpop.xlane.xlu0 %1443
      %1445 = vadd.xlane.f32.xlu0 %v1414
      %v1446 = vpop.xlane.xlu0 %1445
      %1447 = vadd.xlane.f32.xlu0 %v1416
      %v1448 = vpop.xlane.xlu0 %1447
      %1449 = vadd.xlane.f32.xlu0 %v1418
      %v1450 = vpop.xlane.xlu0 %1449
      %1451 = vadd.xlane.f32.xlu0 %v1420
      %v1452 = vpop.xlane.xlu0 %1451
      %1453 = vadd.xlane.f32.xlu0 %v1422
      %v1454 = vpop.xlane.xlu0 %1453
      %1455 = vadd.xlane.f32.xlu0 %v1424
      %v1456 = vpop.xlane.xlu0 %1455
      %1457 = vadd.xlane.f32.xlu0 %v1426
      %v1458 = vpop.xlane.xlu0 %1457
      %1459 = vadd.xlane.f32.xlu0 %v1428
      %v1460 = vpop.xlane.xlu0 %1459
      %v1461 = vrcp.pop %v1430
      %v1462 = vrcp.pop %v1432
      %v1463 = vrcp.pop %v1434
      %v1464 = vrcp.pop %v1436
      %v1465 = vrcp.pop %v1438
      %v1466 = vrcp.pop %v1440
      %v1467 = vrcp.pop %v1442
      %v1468 = vrcp.pop %v1444
      %v1469 = vrcp.pop %v1446
      %v1470 = vrcp.pop %v1448
      %v1471 = vrcp.pop %v1450
      %v1472 = vrcp.pop %v1452
      %v1473 = vrcp.pop %v1454
      %v1474 = vrcp.pop %v1456
      %v1475 = vrcp.pop %v1458
      %v1476 = vrcp.pop %v1460
      %v1477 = vmul.f32 %v1398, %v1461
      %v1478 = vmul.f32 %v1400, %v1462
      %v1479 = vmul.f32 %v1402, %v1463
      %v1480 = vmul.f32 %v1404, %v1464
      %v1481 = vmul.f32 %v1406, %v1465
      %v1482 = vmul.f32 %v1408, %v1466
      %v1483 = vmul.f32 %v1410, %v1467
      %v1484 = vmul.f32 %v1412, %v1468
      %v1485 = vmul.f32 %v1414, %v1469
      %v1486 = vmul.f32 %v1416, %v1470
      %v1487 = vmul.f32 %v1418, %v1471
      %v1488 = vmul.f32 %v1420, %v1472
      %v1489 = vmul.f32 %v1422, %v1473
      %v1490 = vmul.f32 %v1424, %v1474
      %v1491 = vmul.f32 %v1426, %v1475
      %v1492 = vmul.f32 %v1428, %v1476
      %v1493 = vpack.c.bf16 %v1478, %v1477
      %v1494 = vpack.c.bf16 %v1480, %v1479
      %v1495 = vpack.c.bf16 %v1482, %v1481
      %v1496 = vpack.c.bf16 %v1484, %v1483
      %v1497 = vpack.c.bf16 %v1486, %v1485
      %v1498 = vpack.c.bf16 %v1488, %v1487
      %v1499 = vpack.c.bf16 %v1490, %v1489
      %v1500 = vpack.c.bf16 %v1492, %v1491
      %1501 = vmatprep.subr.bf16.mxu0 0
      %1502 = vmatpush1.bf16.msra.mxu0 %v1164
      %1503 = vmatprep.subr.bf16.mxu0 0
      %1504 = vmatpush1.bf16.msra.mxu0 %v1163
      %1505 = vmatprep.subr.bf16.mxu0 0
      %1506 = vmatpush1.bf16.msra.mxu0 %v1162
      %1507 = vmatprep.subr.bf16.mxu0 0
      %1508 = vmatpush1.bf16.msra.mxu0 %v1161
      %1509 = vmatprep.subr.bf16.mxu0 0
      %1510 = vmatpush1.bf16.msra.mxu0 %v1160
      %1511 = vmatprep.subr.bf16.mxu0 0
      %1512 = vmatpush1.bf16.msra.mxu0 %v1159
      %1513 = vmatprep.subr.bf16.mxu0 0
      %1514 = vmatpush1.bf16.msra.mxu0 %v1158
      %1515 = vmatprep.subr.bf16.mxu0 0
      %1516 = vmatpush1.bf16.msra.mxu0 %v1157
      %1517 = vmatprep.subr.bf16.mxu0 0
      %1518 = vmatpush2.bf16.msra.mxu0 0
      %1519 = vmatprep.subr.bf16.mxu0 0
      %1520 = vmatpush2.bf16.msra.mxu0 0
      %1521 = vmatprep.subr.bf16.mxu0 0
      %1522 = vmatpush2.bf16.msra.mxu0 0
      %1523 = vmatprep.subr.bf16.mxu0 0
      %1524 = vmatpush2.bf16.msra.mxu0 0
      %1525 = vmatprep.subr.bf16.mxu0 0
      %1526 = vmatpush2.bf16.msra.mxu0 0
      %1527 = vmatprep.subr.bf16.mxu0 0
      %1528 = vmatpush2.bf16.msra.mxu0 0
      %1529 = vmatprep.subr.bf16.mxu0 0
      %1530 = vmatpush2.bf16.msra.mxu0 0
      %1531 = vmatprep.subr.bf16.mxu0 0
      %1532 = vmatpush2.bf16.msra.mxu0 0
      %1533 = vmatprep.mubr.bf16.mxu0 0
      %1534 = vmatmul.mubr.bf16.gmra.mxu0 %v1493
      %v1535 = vpop.f32.mrf.mxu0
      %v1536 = vadd.f32 0.0, %v1535
      %v1537 = vpop.f32.mrf.mxu0
      %v1538 = vpop.f32.mrf.mxu0
      %v1539 = vadd.f32 0.0, %v1538
      %v1540 = vpop.f32.mrf.mxu0
      %1541 = vmatprep.mubr.bf16.mxu0 0
      %1542 = vmatmul.mubr.bf16.gmra.mxu0 %v1494
      %v1543 = vpop.f32.mrf.mxu0
      %v1544 = vadd.f32 0.0, %v1543
      %v1545 = vpop.f32.mrf.mxu0
      %v1546 = vpop.f32.mrf.mxu0
      %v1547 = vadd.f32 0.0, %v1546
      %v1548 = vpop.f32.mrf.mxu0
      %1549 = vmatprep.mubr.bf16.mxu0 0
      %1550 = vmatmul.mubr.bf16.gmra.mxu0 %v1495
      %v1551 = vpop.f32.mrf.mxu0
      %v1552 = vadd.f32 0.0, %v1551
      %v1553 = vpop.f32.mrf.mxu0
      %v1554 = vpop.f32.mrf.mxu0
      %v1555 = vadd.f32 0.0, %v1554
      %v1556 = vpop.f32.mrf.mxu0
      %1557 = vmatprep.mubr.bf16.mxu0 0
      %1558 = vmatmul.mubr.bf16.gmra.mxu0 %v1496
      %v1559 = vpop.f32.mrf.mxu0
      %v1560 = vadd.f32 0.0, %v1559
      %v1561 = vpop.f32.mrf.mxu0
      %v1562 = vpop.f32.mrf.mxu0
      %v1563 = vadd.f32 0.0, %v1562
      %v1564 = vpop.f32.mrf.mxu0
      %1565 = vmatprep.mubr.bf16.mxu0 0
      %1566 = vmatmul.mubr.bf16.gmra.mxu0 %v1497
      %v1567 = vpop.f32.mrf.mxu0
      %v1568 = vadd.f32 0.0, %v1567
      %v1569 = vpop.f32.mrf.mxu0
      %v1570 = vpop.f32.mrf.mxu0
      %v1571 = vadd.f32 0.0, %v1570
      %v1572 = vpop.f32.mrf.mxu0
      %1573 = vmatprep.mubr.bf16.mxu0 0
      %1574 = vmatmul.mubr.bf16.gmra.mxu0 %v1498
      %v1575 = vpop.f32.mrf.mxu0
      %v1576 = vadd.f32 0.0, %v1575
      %v1577 = vpop.f32.mrf.mxu0
      %v1578 = vpop.f32.mrf.mxu0
      %v1579 = vadd.f32 0.0, %v1578
      %v1580 = vpop.f32.mrf.mxu0
      %1581 = vmatprep.mubr.bf16.mxu0 0
      %1582 = vmatmul.mubr.bf16.gmra.mxu0 %v1499
      %v1583 = vpop.f32.mrf.mxu0
      %v1584 = vadd.f32 0.0, %v1583
      %v1585 = vpop.f32.mrf.mxu0
      %v1586 = vpop.f32.mrf.mxu0
      %v1587 = vadd.f32 0.0, %v1586
      %v1588 = vpop.f32.mrf.mxu0
      %1589 = vmatprep.mubr.bf16.mxu0 0
      %1590 = vmatmul.mubr.bf16.gmra.mxu0 %v1500
      %v1591 = vpop.f32.mrf.mxu0
      %v1592 = vadd.f32 0.0, %v1591
      %v1593 = vpop.f32.mrf.mxu0
      %v1594 = vpop.f32.mrf.mxu0
      %v1595 = vadd.f32 0.0, %v1594
      %v1596 = vpop.f32.mrf.mxu0
      %1597 = vdwg.mxu0
      %1606 = vrot.lane.b32.xlu0 %v1141, 64
      %v1607 = vpop.permute.xlu0 %1606
      %1608 = vrot.lane.b32.xlu0 %v1142, 64
      %v1609 = vpop.permute.xlu0 %1608
      %1610 = vrot.lane.b32.xlu0 %v1143, 64
      %v1611 = vpop.permute.xlu0 %1610
      %1612 = vrot.lane.b32.xlu0 %v1144, 64
      %v1613 = vpop.permute.xlu0 %1612
      %1614 = vrot.lane.b32.xlu0 %v1145, 64
      %v1615 = vpop.permute.xlu0 %1614
      %1616 = vrot.lane.b32.xlu0 %v1146, 64
      %v1617 = vpop.permute.xlu0 %1616
      %1618 = vrot.lane.b32.xlu0 %v1147, 64
      %v1619 = vpop.permute.xlu0 %1618
      %1620 = vrot.lane.b32.xlu0 %v1148, 64
      %v1621 = vpop.permute.xlu0 %1620
      %1630 = vrot.lane.b32.xlu0 %v1149, 64
      %v1631 = vpop.permute.xlu0 %1630
      %1632 = vrot.lane.b32.xlu0 %v1150, 64
      %v1633 = vpop.permute.xlu0 %1632
      %1634 = vrot.lane.b32.xlu0 %v1151, 64
      %v1635 = vpop.permute.xlu0 %1634
      %1636 = vrot.lane.b32.xlu0 %v1152, 64
      %v1637 = vpop.permute.xlu0 %1636
      %1638 = vrot.lane.b32.xlu0 %v1153, 64
      %v1639 = vpop.permute.xlu0 %1638
      %1640 = vrot.lane.b32.xlu0 %v1154, 64
      %v1641 = vpop.permute.xlu0 %1640
      %1642 = vrot.lane.b32.xlu0 %v1155, 64
      %v1643 = vpop.permute.xlu0 %1642
      %1644 = vrot.lane.b32.xlu0 %v1156, 64
      %v1645 = vpop.permute.xlu0 %1644
      %v1647 = vsel %vm1165, %v1607, 0
      %v1650 = vsel %vm1165, %v1609, 0
      %v1653 = vsel %vm1165, %v1611, 0
      %v1656 = vsel %vm1165, %v1613, 0
      %v1659 = vsel %vm1165, %v1615, 0
      %v1662 = vsel %vm1165, %v1617, 0
      %v1665 = vsel %vm1165, %v1619, 0
      %v1668 = vsel %vm1165, %v1621, 0
      %v1671 = vsel %vm1165, %v1631, 0
      %v1674 = vsel %vm1165, %v1633, 0
      %v1677 = vsel %vm1165, %v1635, 0
      %v1680 = vsel %vm1165, %v1637, 0
      %v1683 = vsel %vm1165, %v1639, 0
      %v1686 = vsel %vm1165, %v1641, 0
      %v1689 = vsel %vm1165, %v1643, 0
      %v1692 = vsel %vm1165, %v1645, 0
      %1694 = vmatprep.subr.bf16.mxu0 0
      %1695 = vmatpush1.bf16.xpose.msra.mxu0 %v1692
      %1696 = vmatprep.subr.bf16.mxu0 0
      %1697 = vmatpush1.bf16.xpose.msra.mxu0 %v1689
      %1698 = vmatprep.subr.bf16.mxu0 0
      %1699 = vmatpush1.bf16.xpose.msra.mxu0 %v1686
      %1700 = vmatprep.subr.bf16.mxu0 0
      %1701 = vmatpush1.bf16.xpose.msra.mxu0 %v1683
      %1702 = vmatprep.subr.bf16.mxu0 0
      %1703 = vmatpush1.bf16.xpose.msra.mxu0 %v1680
      %1704 = vmatprep.subr.bf16.mxu0 0
      %1705 = vmatpush1.bf16.xpose.msra.mxu0 %v1677
      %1706 = vmatprep.subr.bf16.mxu0 0
      %1707 = vmatpush1.bf16.xpose.msra.mxu0 %v1674
      %1708 = vmatprep.subr.bf16.mxu0 0
      %1709 = vmatpush1.bf16.xpose.msra.mxu0 %v1671
      %1710 = vmatprep.subr.bf16.mxu0 0
      %1711 = vmatpush2.bf16.xpose.msra.mxu0 0
      %1712 = vmatprep.subr.bf16.mxu0 0
      %1713 = vmatpush2.bf16.xpose.msra.mxu0 0
      %1714 = vmatprep.subr.bf16.mxu0 0
      %1715 = vmatpush2.bf16.xpose.msra.mxu0 0
      %1716 = vmatprep.subr.bf16.mxu0 0
      %1717 = vmatpush2.bf16.xpose.msra.mxu0 0
      %1718 = vmatprep.subr.bf16.mxu0 0
      %1719 = vmatpush2.bf16.xpose.msra.mxu0 0
      %1720 = vmatprep.subr.bf16.mxu0 0
      %1721 = vmatpush2.bf16.xpose.msra.mxu0 0
      %1722 = vmatprep.subr.bf16.mxu0 0
      %1723 = vmatpush2.bf16.xpose.msra.mxu0 0
      %1724 = vmatprep.subr.bf16.mxu0 0
      %1725 = vmatpush2.bf16.xpose.msra.mxu0 0
      %1726 = vmatprep.mubr.bf16.mxu0 0
      %1727 = vmatmul.mubr.bf16.gmra.mxu0 %v1647
      %v1728 = vpop.f32.mrf.mxu0
      %v1729 = vadd.f32 0.0, %v1728
      %v1730 = vpop.f32.mrf.mxu0
      %v1731 = vpop.f32.mrf.mxu0
      %v1732 = vadd.f32 0.0, %v1731
      %v1733 = vpop.f32.mrf.mxu0
      %1734 = vmatprep.mubr.bf16.mxu0 0
      %1735 = vmatmul.mubr.bf16.gmra.mxu0 %v1650
      %v1736 = vpop.f32.mrf.mxu0
      %v1737 = vadd.f32 0.0, %v1736
      %v1738 = vpop.f32.mrf.mxu0
      %v1739 = vpop.f32.mrf.mxu0
      %v1740 = vadd.f32 0.0, %v1739
      %v1741 = vpop.f32.mrf.mxu0
      %1742 = vmatprep.mubr.bf16.mxu0 0
      %1743 = vmatmul.mubr.bf16.gmra.mxu0 %v1653
      %v1744 = vpop.f32.mrf.mxu0
      %v1745 = vadd.f32 0.0, %v1744
      %v1746 = vpop.f32.mrf.mxu0
      %v1747 = vpop.f32.mrf.mxu0
      %v1748 = vadd.f32 0.0, %v1747
      %v1749 = vpop.f32.mrf.mxu0
      %1750 = vmatprep.mubr.bf16.mxu0 0
      %1751 = vmatmul.mubr.bf16.gmra.mxu0 %v1656
      %v1752 = vpop.f32.mrf.mxu0
      %v1753 = vadd.f32 0.0, %v1752
      %v1754 = vpop.f32.mrf.mxu0
      %v1755 = vpop.f32.mrf.mxu0
      %v1756 = vadd.f32 0.0, %v1755
      %v1757 = vpop.f32.mrf.mxu0
      %1758 = vmatprep.mubr.bf16.mxu0 0
      %1759 = vmatmul.mubr.bf16.gmra.mxu0 %v1659
      %v1760 = vpop.f32.mrf.mxu0
      %v1761 = vadd.f32 0.0, %v1760
      %v1762 = vpop.f32.mrf.mxu0
      %v1763 = vpop.f32.mrf.mxu0
      %v1764 = vadd.f32 0.0, %v1763
      %v1765 = vpop.f32.mrf.mxu0
      %1766 = vmatprep.mubr.bf16.mxu0 0
      %1767 = vmatmul.mubr.bf16.gmra.mxu0 %v1662
      %v1768 = vpop.f32.mrf.mxu0
      %v1769 = vadd.f32 0.0, %v1768
      %v1770 = vpop.f32.mrf.mxu0
      %v1771 = vpop.f32.mrf.mxu0
      %v1772 = vadd.f32 0.0, %v1771
      %v1773 = vpop.f32.mrf.mxu0
      %1774 = vmatprep.mubr.bf16.mxu0 0
      %1775 = vmatmul.mubr.bf16.gmra.mxu0 %v1665
      %v1776 = vpop.f32.mrf.mxu0
      %v1777 = vadd.f32 0.0, %v1776
      %v1778 = vpop.f32.mrf.mxu0
      %v1779 = vpop.f32.mrf.mxu0
      %v1780 = vadd.f32 0.0, %v1779
      %v1781 = vpop.f32.mrf.mxu0
      %1782 = vmatprep.mubr.bf16.mxu0 0
      %1783 = vmatmul.mubr.bf16.gmra.mxu0 %v1668
      %v1784 = vpop.f32.mrf.mxu0
      %v1785 = vadd.f32 0.0, %v1784
      %v1786 = vpop.f32.mrf.mxu0
      %v1787 = vpop.f32.mrf.mxu0
      %v1788 = vadd.f32 0.0, %v1787
      %v1789 = vpop.f32.mrf.mxu0
      %1790 = vdwg.mxu0
      %v1791 = vmul.f32 %v1729, 0.125
      %v1792 = vmul.f32 %v1732, 0.125
      %v1793 = vmul.f32 %v1737, 0.125
      %v1794 = vmul.f32 %v1740, 0.125
      %v1795 = vmul.f32 %v1745, 0.125
      %v1796 = vmul.f32 %v1748, 0.125
      %v1797 = vmul.f32 %v1753, 0.125
      %v1798 = vmul.f32 %v1756, 0.125
      %v1799 = vmul.f32 %v1761, 0.125
      %v1800 = vmul.f32 %v1764, 0.125
      %v1801 = vmul.f32 %v1769, 0.125
      %v1802 = vmul.f32 %v1772, 0.125
      %v1803 = vmul.f32 %v1777, 0.125
      %v1804 = vmul.f32 %v1780, 0.125
      %v1805 = vmul.f32 %v1785, 0.125
      %v1806 = vmul.f32 %v1788, 0.125
      %v1807 = vadd.f32 %v1791, %v1331
      %v1808 = vadd.f32 %v1792, %v1331
      %v1809 = vadd.f32 %v1793, %v1331
      %v1810 = vadd.f32 %v1794, %v1331
      %v1811 = vadd.f32 %v1795, %v1331
      %v1812 = vadd.f32 %v1796, %v1331
      %v1813 = vadd.f32 %v1797, %v1331
      %v1814 = vadd.f32 %v1798, %v1331
      %v1815 = vadd.f32 %v1799, %v1331
      %v1816 = vadd.f32 %v1800, %v1331
      %v1817 = vadd.f32 %v1801, %v1331
      %v1818 = vadd.f32 %v1802, %v1331
      %v1819 = vadd.f32 %v1803, %v1331
      %v1820 = vadd.f32 %v1804, %v1331
      %v1821 = vadd.f32 %v1805, %v1331
      %v1822 = vadd.f32 %v1806, %v1331
      %1823 = vmax.xlane.f32.xlu0 %v1807
      %v1824 = vpop.xlane.xlu0 %1823
      %1825 = vmax.xlane.f32.xlu0 %v1808
      %v1826 = vpop.xlane.xlu0 %1825
      %1827 = vmax.xlane.f32.xlu0 %v1809
      %v1828 = vpop.xlane.xlu0 %1827
      %1829 = vmax.xlane.f32.xlu0 %v1810
      %v1830 = vpop.xlane.xlu0 %1829
      %1831 = vmax.xlane.f32.xlu0 %v1811
      %v1832 = vpop.xlane.xlu0 %1831
      %1833 = vmax.xlane.f32.xlu0 %v1812
      %v1834 = vpop.xlane.xlu0 %1833
      %1835 = vmax.xlane.f32.xlu0 %v1813
      %v1836 = vpop.xlane.xlu0 %1835
      %1837 = vmax.xlane.f32.xlu0 %v1814
      %v1838 = vpop.xlane.xlu0 %1837
      %1839 = vmax.xlane.f32.xlu0 %v1815
      %v1840 = vpop.xlane.xlu0 %1839
      %1841 = vmax.xlane.f32.xlu0 %v1816
      %v1842 = vpop.xlane.xlu0 %1841
      %1843 = vmax.xlane.f32.xlu0 %v1817
      %v1844 = vpop.xlane.xlu0 %1843
      %1845 = vmax.xlane.f32.xlu0 %v1818
      %v1846 = vpop.xlane.xlu0 %1845
      %1847 = vmax.xlane.f32.xlu0 %v1819
      %v1848 = vpop.xlane.xlu0 %1847
      %1849 = vmax.xlane.f32.xlu0 %v1820
      %v1850 = vpop.xlane.xlu0 %1849
      %1851 = vmax.xlane.f32.xlu0 %v1821
      %v1852 = vpop.xlane.xlu0 %1851
      %1853 = vmax.xlane.f32.xlu0 %v1822
      %v1854 = vpop.xlane.xlu0 %1853
      %v1855 = vsub.f32 %v1807, %v1824
      %v1856 = vsub.f32 %v1808, %v1826
      %v1857 = vsub.f32 %v1809, %v1828
      %v1858 = vsub.f32 %v1810, %v1830
      %v1859 = vsub.f32 %v1811, %v1832
      %v1860 = vsub.f32 %v1812, %v1834
      %v1861 = vsub.f32 %v1813, %v1836
      %v1862 = vsub.f32 %v1814, %v1838
      %v1863 = vsub.f32 %v1815, %v1840
      %v1864 = vsub.f32 %v1816, %v1842
      %v1865 = vsub.f32 %v1817, %v1844
      %v1866 = vsub.f32 %v1818, %v1846
      %v1867 = vsub.f32 %v1819, %v1848
      %v1868 = vsub.f32 %v1820, %v1850
      %v1869 = vsub.f32 %v1821, %v1852
      %v1870 = vsub.f32 %v1822, %v1854
      %v1871 = vmul.f32 %v1855, 1.442695
      %v1872 = vpow.pop %v1871
      %v1873 = vmul.f32 %v1856, 1.442695
      %v1874 = vpow.pop %v1873
      %v1875 = vmul.f32 %v1857, 1.442695
      %v1876 = vpow.pop %v1875
      %v1877 = vmul.f32 %v1858, 1.442695
      %v1878 = vpow.pop %v1877
      %v1879 = vmul.f32 %v1859, 1.442695
      %v1880 = vpow.pop %v1879
      %v1881 = vmul.f32 %v1860, 1.442695
      %v1882 = vpow.pop %v1881
      %v1883 = vmul.f32 %v1861, 1.442695
      %v1884 = vpow.pop %v1883
      %v1885 = vmul.f32 %v1862, 1.442695
      %v1886 = vpow.pop %v1885
      %v1887 = vmul.f32 %v1863, 1.442695
      %v1888 = vpow.pop %v1887
      %v1889 = vmul.f32 %v1864, 1.442695
      %v1890 = vpow.pop %v1889
      %v1891 = vmul.f32 %v1865, 1.442695
      %v1892 = vpow.pop %v1891
      %v1893 = vmul.f32 %v1866, 1.442695
      %v1894 = vpow.pop %v1893
      %v1895 = vmul.f32 %v1867, 1.442695
      %v1896 = vpow.pop %v1895
      %v1897 = vmul.f32 %v1868, 1.442695
      %v1898 = vpow.pop %v1897
      %v1899 = vmul.f32 %v1869, 1.442695
      %v1900 = vpow.pop %v1899
      %v1901 = vmul.f32 %v1870, 1.442695
      %v1902 = vpow.pop %v1901
      %1903 = vadd.xlane.f32.xlu0 %v1872
      %v1904 = vpop.xlane.xlu0 %1903
      %1905 = vadd.xlane.f32.xlu0 %v1874
      %v1906 = vpop.xlane.xlu0 %1905
      %1907 = vadd.xlane.f32.xlu0 %v1876
      %v1908 = vpop.xlane.xlu0 %1907
      %1909 = vadd.xlane.f32.xlu0 %v1878
      %v1910 = vpop.xlane.xlu0 %1909
      %1911 = vadd.xlane.f32.xlu0 %v1880
      %v1912 = vpop.xlane.xlu0 %1911
      %1913 = vadd.xlane.f32.xlu0 %v1882
      %v1914 = vpop.xlane.xlu0 %1913
      %1915 = vadd.xlane.f32.xlu0 %v1884
      %v1916 = vpop.xlane.xlu0 %1915
      %1917 = vadd.xlane.f32.xlu0 %v1886
      %v1918 = vpop.xlane.xlu0 %1917
      %1919 = vadd.xlane.f32.xlu0 %v1888
      %v1920 = vpop.xlane.xlu0 %1919
      %1921 = vadd.xlane.f32.xlu0 %v1890
      %v1922 = vpop.xlane.xlu0 %1921
      %1923 = vadd.xlane.f32.xlu0 %v1892
      %v1924 = vpop.xlane.xlu0 %1923
      %1925 = vadd.xlane.f32.xlu0 %v1894
      %v1926 = vpop.xlane.xlu0 %1925
      %1927 = vadd.xlane.f32.xlu0 %v1896
      %v1928 = vpop.xlane.xlu0 %1927
      %1929 = vadd.xlane.f32.xlu0 %v1898
      %v1930 = vpop.xlane.xlu0 %1929
      %1931 = vadd.xlane.f32.xlu0 %v1900
      %v1932 = vpop.xlane.xlu0 %1931
      %1933 = vadd.xlane.f32.xlu0 %v1902
      %v1934 = vpop.xlane.xlu0 %1933
      %v1935 = vrcp.pop %v1904
      %v1936 = vrcp.pop %v1906
      %v1937 = vrcp.pop %v1908
      %v1938 = vrcp.pop %v1910
      %v1939 = vrcp.pop %v1912
      %v1940 = vrcp.pop %v1914
      %v1941 = vrcp.pop %v1916
      %v1942 = vrcp.pop %v1918
      %v1943 = vrcp.pop %v1920
      %v1944 = vrcp.pop %v1922
      %v1945 = vrcp.pop %v1924
      %v1946 = vrcp.pop %v1926
      %v1947 = vrcp.pop %v1928
      %v1948 = vrcp.pop %v1930
      %v1949 = vrcp.pop %v1932
      %v1950 = vrcp.pop %v1934
      %v1951 = vmul.f32 %v1872, %v1935
      %v1952 = vmul.f32 %v1874, %v1936
      %v1953 = vmul.f32 %v1876, %v1937
      %v1954 = vmul.f32 %v1878, %v1938
      %v1955 = vmul.f32 %v1880, %v1939
      %v1956 = vmul.f32 %v1882, %v1940
      %v1957 = vmul.f32 %v1884, %v1941
      %v1958 = vmul.f32 %v1886, %v1942
      %v1959 = vmul.f32 %v1888, %v1943
      %v1960 = vmul.f32 %v1890, %v1944
      %v1961 = vmul.f32 %v1892, %v1945
      %v1962 = vmul.f32 %v1894, %v1946
      %v1963 = vmul.f32 %v1896, %v1947
      %v1964 = vmul.f32 %v1898, %v1948
      %v1965 = vmul.f32 %v1900, %v1949
      %v1966 = vmul.f32 %v1902, %v1950
      %v1967 = vpack.c.bf16 %v1952, %v1951
      %v1968 = vpack.c.bf16 %v1954, %v1953
      %v1969 = vpack.c.bf16 %v1956, %v1955
      %v1970 = vpack.c.bf16 %v1958, %v1957
      %v1971 = vpack.c.bf16 %v1960, %v1959
      %v1972 = vpack.c.bf16 %v1962, %v1961
      %v1973 = vpack.c.bf16 %v1964, %v1963
      %v1974 = vpack.c.bf16 %v1966, %v1965
      %1983 = vrot.lane.b32.xlu0 %v1157, 64
      %v1984 = vpop.permute.xlu0 %1983
      %1985 = vrot.lane.b32.xlu0 %v1158, 64
      %v1986 = vpop.permute.xlu0 %1985
      %1987 = vrot.lane.b32.xlu0 %v1159, 64
      %v1988 = vpop.permute.xlu0 %1987
      %1989 = vrot.lane.b32.xlu0 %v1160, 64
      %v1990 = vpop.permute.xlu0 %1989
      %1991 = vrot.lane.b32.xlu0 %v1161, 64
      %v1992 = vpop.permute.xlu0 %1991
      %1993 = vrot.lane.b32.xlu0 %v1162, 64
      %v1994 = vpop.permute.xlu0 %1993
      %1995 = vrot.lane.b32.xlu0 %v1163, 64
      %v1996 = vpop.permute.xlu0 %1995
      %1997 = vrot.lane.b32.xlu0 %v1164, 64
      %v1998 = vpop.permute.xlu0 %1997
      %2007 = vmatprep.subr.bf16.mxu0 0
      %2008 = vmatpush1.bf16.msra.mxu0 %v1998
      %2009 = vmatprep.subr.bf16.mxu0 0
      %2010 = vmatpush1.bf16.msra.mxu0 %v1996
      %2011 = vmatprep.subr.bf16.mxu0 0
      %2012 = vmatpush1.bf16.msra.mxu0 %v1994
      %2013 = vmatprep.subr.bf16.mxu0 0
      %2014 = vmatpush1.bf16.msra.mxu0 %v1992
      %2015 = vmatprep.subr.bf16.mxu0 0
      %2016 = vmatpush1.bf16.msra.mxu0 %v1990
      %2017 = vmatprep.subr.bf16.mxu0 0
      %2018 = vmatpush1.bf16.msra.mxu0 %v1988
      %2019 = vmatprep.subr.bf16.mxu0 0
      %2020 = vmatpush1.bf16.msra.mxu0 %v1986
      %2021 = vmatprep.subr.bf16.mxu0 0
      %2022 = vmatpush1.bf16.msra.mxu0 %v1984
      %2023 = vmatprep.subr.bf16.mxu0 0
      %2024 = vmatpush2.bf16.msra.mxu0 0
      %2025 = vmatprep.subr.bf16.mxu0 0
      %2026 = vmatpush2.bf16.msra.mxu0 0
      %2027 = vmatprep.subr.bf16.mxu0 0
      %2028 = vmatpush2.bf16.msra.mxu0 0
      %2029 = vmatprep.subr.bf16.mxu0 0
      %2030 = vmatpush2.bf16.msra.mxu0 0
      %2031 = vmatprep.subr.bf16.mxu0 0
      %2032 = vmatpush2.bf16.msra.mxu0 0
      %2033 = vmatprep.subr.bf16.mxu0 0
      %2034 = vmatpush2.bf16.msra.mxu0 0
      %2035 = vmatprep.subr.bf16.mxu0 0
      %2036 = vmatpush2.bf16.msra.mxu0 0
      %2037 = vmatprep.subr.bf16.mxu0 0
      %2038 = vmatpush2.bf16.msra.mxu0 0
      %2039 = vmatprep.mubr.bf16.mxu0 0
      %2040 = vmatmul.mubr.bf16.gmra.mxu0 %v1967
      %v2041 = vpop.f32.mrf.mxu0
      %v2042 = vadd.f32 0.0, %v2041
      %v2043 = vpop.f32.mrf.mxu0
      %v2044 = vpop.f32.mrf.mxu0
      %v2045 = vadd.f32 0.0, %v2044
      %v2046 = vpop.f32.mrf.mxu0
      %2047 = vmatprep.mubr.bf16.mxu0 0
      %2048 = vmatmul.mubr.bf16.gmra.mxu0 %v1968
      %v2049 = vpop.f32.mrf.mxu0
      %v2050 = vadd.f32 0.0, %v2049
      %v2051 = vpop.f32.mrf.mxu0
      %v2052 = vpop.f32.mrf.mxu0
      %v2053 = vadd.f32 0.0, %v2052
      %v2054 = vpop.f32.mrf.mxu0
      %2055 = vmatprep.mubr.bf16.mxu0 0
      %2056 = vmatmul.mubr.bf16.gmra.mxu0 %v1969
      %v2057 = vpop.f32.mrf.mxu0
      %v2058 = vadd.f32 0.0, %v2057
      %v2059 = vpop.f32.mrf.mxu0
      %v2060 = vpop.f32.mrf.mxu0
      %v2061 = vadd.f32 0.0, %v2060
      %v2062 = vpop.f32.mrf.mxu0
      %2063 = vmatprep.mubr.bf16.mxu0 0
      %2064 = vmatmul.mubr.bf16.gmra.mxu0 %v1970
      %v2065 = vpop.f32.mrf.mxu0
      %v2066 = vadd.f32 0.0, %v2065
      %v2067 = vpop.f32.mrf.mxu0
      %v2068 = vpop.f32.mrf.mxu0
      %v2069 = vadd.f32 0.0, %v2068
      %v2070 = vpop.f32.mrf.mxu0
      %2071 = vmatprep.mubr.bf16.mxu0 0
      %2072 = vmatmul.mubr.bf16.gmra.mxu0 %v1971
      %v2073 = vpop.f32.mrf.mxu0
      %v2074 = vadd.f32 0.0, %v2073
      %v2075 = vpop.f32.mrf.mxu0
      %v2076 = vpop.f32.mrf.mxu0
      %v2077 = vadd.f32 0.0, %v2076
      %v2078 = vpop.f32.mrf.mxu0
      %2079 = vmatprep.mubr.bf16.mxu0 0
      %2080 = vmatmul.mubr.bf16.gmra.mxu0 %v1972
      %v2081 = vpop.f32.mrf.mxu0
      %v2082 = vadd.f32 0.0, %v2081
      %v2083 = vpop.f32.mrf.mxu0
      %v2084 = vpop.f32.mrf.mxu0
      %v2085 = vadd.f32 0.0, %v2084
      %v2086 = vpop.f32.mrf.mxu0
      %2087 = vmatprep.mubr.bf16.mxu0 0
      %2088 = vmatmul.mubr.bf16.gmra.mxu0 %v1973
      %v2089 = vpop.f32.mrf.mxu0
      %v2090 = vadd.f32 0.0, %v2089
      %v2091 = vpop.f32.mrf.mxu0
      %v2092 = vpop.f32.mrf.mxu0
      %v2093 = vadd.f32 0.0, %v2092
      %v2094 = vpop.f32.mrf.mxu0
      %2095 = vmatprep.mubr.bf16.mxu0 0
      %2096 = vmatmul.mubr.bf16.gmra.mxu0 %v1974
      %v2097 = vpop.f32.mrf.mxu0
      %v2098 = vadd.f32 0.0, %v2097
      %v2099 = vpop.f32.mrf.mxu0
      %v2100 = vpop.f32.mrf.mxu0
      %v2101 = vadd.f32 0.0, %v2100
      %v2102 = vpop.f32.mrf.mxu0
      %2103 = vdwg.mxu0
      %2120 = vrot.lane.b32.xlu0 %v2042, 64
      %v2121 = vpop.permute.xlu0 %2120
      %2122 = vrot.lane.b32.xlu0 %v2045, 64
      %v2123 = vpop.permute.xlu0 %2122
      %2124 = vrot.lane.b32.xlu0 %v2050, 64
      %v2125 = vpop.permute.xlu0 %2124
      %2126 = vrot.lane.b32.xlu0 %v2053, 64
      %v2127 = vpop.permute.xlu0 %2126
      %2128 = vrot.lane.b32.xlu0 %v2058, 64
      %v2129 = vpop.permute.xlu0 %2128
      %2130 = vrot.lane.b32.xlu0 %v2061, 64
      %v2131 = vpop.permute.xlu0 %2130
      %2132 = vrot.lane.b32.xlu0 %v2066, 64
      %v2133 = vpop.permute.xlu0 %2132
      %2134 = vrot.lane.b32.xlu0 %v2069, 64
      %v2135 = vpop.permute.xlu0 %2134
      %2136 = vrot.lane.b32.xlu0 %v2074, 64
      %v2137 = vpop.permute.xlu0 %2136
      %2138 = vrot.lane.b32.xlu0 %v2077, 64
      %v2139 = vpop.permute.xlu0 %2138
      %2140 = vrot.lane.b32.xlu0 %v2082, 64
      %v2141 = vpop.permute.xlu0 %2140
      %2142 = vrot.lane.b32.xlu0 %v2085, 64
      %v2143 = vpop.permute.xlu0 %2142
      %2144 = vrot.lane.b32.xlu0 %v2090, 64
      %v2145 = vpop.permute.xlu0 %2144
      %2146 = vrot.lane.b32.xlu0 %v2093, 64
      %v2147 = vpop.permute.xlu0 %2146
      %2148 = vrot.lane.b32.xlu0 %v2098, 64
      %v2149 = vpop.permute.xlu0 %2148
      %2150 = vrot.lane.b32.xlu0 %v2101, 64
      %v2151 = vpop.permute.xlu0 %2150
      %v2168 = vsel %vm1165, %v1536, %v2121
      %v2169 = vsel %vm1165, %v1539, %v2123
      %v2170 = vsel %vm1165, %v1544, %v2125
      %v2171 = vsel %vm1165, %v1547, %v2127
      %v2172 = vsel %vm1165, %v1552, %v2129
      %v2173 = vsel %vm1165, %v1555, %v2131
      %v2174 = vsel %vm1165, %v1560, %v2133
      %v2175 = vsel %vm1165, %v1563, %v2135
      %v2176 = vsel %vm1165, %v1568, %v2137
      %v2177 = vsel %vm1165, %v1571, %v2139
      %v2178 = vsel %vm1165, %v1576, %v2141
      %v2179 = vsel %vm1165, %v1579, %v2143
      %v2180 = vsel %vm1165, %v1584, %v2145
      %v2181 = vsel %vm1165, %v1587, %v2147
      %v2182 = vsel %vm1165, %v1592, %v2149
      %v2183 = vsel %vm1165, %v1595, %v2151
      %v2184 = vpack.c.bf16 %v2169, %v2168
      %v2185 = vpack.c.bf16 %v2171, %v2170
      %v2186 = vpack.c.bf16 %v2173, %v2172
      %v2187 = vpack.c.bf16 %v2175, %v2174
      %v2188 = vpack.c.bf16 %v2177, %v2176
      %v2189 = vpack.c.bf16 %v2179, %v2178
      %v2190 = vpack.c.bf16 %v2181, %v2180
      %v2191 = vpack.c.bf16 %v2183, %v2182
      %v2192 = vld [vmem:[%s654] sm:$0xf]
      %v2193 = vld [vmem:[%s654 + $0x4] sm:$0xf]
      %v2194 = vld [vmem:[%s654 + $0x8] sm:$0xf]
      %v2195 = vld [vmem:[%s654 + $0xc] sm:$0xf]
      %v2196 = vld [vmem:[%s654 + $0x10] sm:$0xf]
      %v2197 = vld [vmem:[%s654 + $0x14] sm:$0xf]
      %v2198 = vld [vmem:[%s654 + $0x18] sm:$0xf]
      %v2199 = vld [vmem:[%s654 + $0x1c] sm:$0xf]
      %v2200 = vld [vmem:[%s654 + $0x20] sm:$0xf]
      %v2201 = vld [vmem:[%s654 + $0x24] sm:$0xf]
      %v2202 = vld [vmem:[%s654 + $0x28] sm:$0xf]
      %v2203 = vld [vmem:[%s654 + $0x2c] sm:$0xf]
      %v2204 = vld [vmem:[%s654 + $0x30] sm:$0xf]
      %v2205 = vld [vmem:[%s654 + $0x34] sm:$0xf]
      %v2206 = vld [vmem:[%s654 + $0x38] sm:$0xf]
      %v2207 = vld [vmem:[%s654 + $0x3c] sm:$0xf]
      %v2208 = vld [vmem:[%s657] sm:$0x1]
      %v2210 = vlaneseq
      %v2211 = vshrl.u32 %v2210, 7
      %v2212 = vsub.s32 0, %v2211
      %v2213 = vrot.slane %v2208, %v2212
      %v2231 = vunpack.c.l.b16 %v2192
      %v2232 = vunpack.c.l.b16 %v2193
      %v2233 = vunpack.c.l.b16 %v2194
      %v2234 = vunpack.c.l.b16 %v2195
      %v2235 = vunpack.c.l.b16 %v2196
      %v2236 = vunpack.c.l.b16 %v2197
      %v2237 = vunpack.c.l.b16 %v2198
      %v2238 = vunpack.c.l.b16 %v2199
      %v2239 = vunpack.c.l.b16 %v2200
      %v2240 = vunpack.c.l.b16 %v2201
      %v2241 = vunpack.c.l.b16 %v2202
      %v2242 = vunpack.c.l.b16 %v2203
      %v2243 = vunpack.c.l.b16 %v2204
      %v2244 = vunpack.c.l.b16 %v2205
      %v2245 = vunpack.c.l.b16 %v2206
      %v2246 = vunpack.c.l.b16 %v2207
      %v2247 = vpack.c.b16 %v2232, %v2231
      %v2248 = vpack.c.b16 %v2234, %v2233
      %v2249 = vpack.c.b16 %v2236, %v2235
      %v2250 = vpack.c.b16 %v2238, %v2237
      %v2251 = vpack.c.b16 %v2240, %v2239
      %v2252 = vpack.c.b16 %v2242, %v2241
      %v2253 = vpack.c.b16 %v2244, %v2243
      %v2254 = vpack.c.b16 %v2246, %v2245
      %2263 = vmatprep.subr.bf16.mxu0 0
      %2264 = vmatpush1.bf16.msra.mxu0 %v2254
      %2265 = vmatprep.subr.bf16.mxu0 0
      %2266 = vmatpush1.bf16.msra.mxu0 %v2253
      %2267 = vmatprep.subr.bf16.mxu0 0
      %2268 = vmatpush1.bf16.msra.mxu0 %v2252
      %2269 = vmatprep.subr.bf16.mxu0 0
      %2270 = vmatpush1.bf16.msra.mxu0 %v2251
      %2271 = vmatprep.subr.bf16.mxu0 0
      %2272 = vmatpush1.bf16.msra.mxu0 %v2250
      %2273 = vmatprep.subr.bf16.mxu0 0
      %2274 = vmatpush1.bf16.msra.mxu0 %v2249
      %2275 = vmatprep.subr.bf16.mxu0 0
      %2276 = vmatpush1.bf16.msra.mxu0 %v2248
      %2277 = vmatprep.subr.bf16.mxu0 0
      %2278 = vmatpush1.bf16.msra.mxu0 %v2247
      %2279 = vmatprep.subr.bf16.mxu0 0
      %2280 = vmatpush2.bf16.msra.mxu0 0
      %2281 = vmatprep.subr.bf16.mxu0 0
      %2282 = vmatpush2.bf16.msra.mxu0 0
      %2283 = vmatprep.subr.bf16.mxu0 0
      %2284 = vmatpush2.bf16.msra.mxu0 0
      %2285 = vmatprep.subr.bf16.mxu0 0
      %2286 = vmatpush2.bf16.msra.mxu0 0
      %2287 = vmatprep.subr.bf16.mxu0 0
      %2288 = vmatpush2.bf16.msra.mxu0 0
      %2289 = vmatprep.subr.bf16.mxu0 0
      %2290 = vmatpush2.bf16.msra.mxu0 0
      %2291 = vmatprep.subr.bf16.mxu0 0
      %2292 = vmatpush2.bf16.msra.mxu0 0
      %2293 = vmatprep.subr.bf16.mxu0 0
      %2294 = vmatpush2.bf16.msra.mxu0 0
      %2295 = vmatprep.mubr.bf16.mxu0 0
      %2296 = vmatmul.mubr.bf16.gmra.mxu0 %v2184
      %v2297 = vpop.f32.mrf.mxu0
      %v2298 = vadd.f32 %v2213, %v2297
      %v2299 = vpop.f32.mrf.mxu0
      %v2300 = vpop.f32.mrf.mxu0
      %v2301 = vadd.f32 %v2213, %v2300
      %v2302 = vpop.f32.mrf.mxu0
      %2303 = vmatprep.mubr.bf16.mxu0 0
      %2304 = vmatmul.mubr.bf16.gmra.mxu0 %v2185
      %v2305 = vpop.f32.mrf.mxu0
      %v2306 = vadd.f32 %v2213, %v2305
      %v2307 = vpop.f32.mrf.mxu0
      %v2308 = vpop.f32.mrf.mxu0
      %v2309 = vadd.f32 %v2213, %v2308
      %v2310 = vpop.f32.mrf.mxu0
      %2311 = vmatprep.mubr.bf16.mxu0 0
      %2312 = vmatmul.mubr.bf16.gmra.mxu0 %v2186
      %v2313 = vpop.f32.mrf.mxu0
      %v2314 = vadd.f32 %v2213, %v2313
      %v2315 = vpop.f32.mrf.mxu0
      %v2316 = vpop.f32.mrf.mxu0
      %v2317 = vadd.f32 %v2213, %v2316
      %v2318 = vpop.f32.mrf.mxu0
      %2319 = vmatprep.mubr.bf16.mxu0 0
      %2320 = vmatmul.mubr.bf16.gmra.mxu0 %v2187
      %v2321 = vpop.f32.mrf.mxu0
      %v2322 = vadd.f32 %v2213, %v2321
      %v2323 = vpop.f32.mrf.mxu0
      %v2324 = vpop.f32.mrf.mxu0
      %v2325 = vadd.f32 %v2213, %v2324
      %v2326 = vpop.f32.mrf.mxu0
      %2327 = vmatprep.mubr.bf16.mxu0 0
      %2328 = vmatmul.mubr.bf16.gmra.mxu0 %v2188
      %v2329 = vpop.f32.mrf.mxu0
      %v2330 = vadd.f32 %v2213, %v2329
      %v2331 = vpop.f32.mrf.mxu0
      %v2332 = vpop.f32.mrf.mxu0
      %v2333 = vadd.f32 %v2213, %v2332
      %v2334 = vpop.f32.mrf.mxu0
      %2335 = vmatprep.mubr.bf16.mxu0 0
      %2336 = vmatmul.mubr.bf16.gmra.mxu0 %v2189
      %v2337 = vpop.f32.mrf.mxu0
      %v2338 = vadd.f32 %v2213, %v2337
      %v2339 = vpop.f32.mrf.mxu0
      %v2340 = vpop.f32.mrf.mxu0
      %v2341 = vadd.f32 %v2213, %v2340
      %v2342 = vpop.f32.mrf.mxu0
      %2343 = vmatprep.mubr.bf16.mxu0 0
      %2344 = vmatmul.mubr.bf16.gmra.mxu0 %v2190
      %v2345 = vpop.f32.mrf.mxu0
      %v2346 = vadd.f32 %v2213, %v2345
      %v2347 = vpop.f32.mrf.mxu0
      %v2348 = vpop.f32.mrf.mxu0
      %v2349 = vadd.f32 %v2213, %v2348
      %v2350 = vpop.f32.mrf.mxu0
      %2351 = vmatprep.mubr.bf16.mxu0 0
      %2352 = vmatmul.mubr.bf16.gmra.mxu0 %v2191
      %v2353 = vpop.f32.mrf.mxu0
      %v2354 = vadd.f32 %v2213, %v2353
      %v2355 = vpop.f32.mrf.mxu0
      %v2356 = vpop.f32.mrf.mxu0
      %v2357 = vadd.f32 %v2213, %v2356
      %v2358 = vpop.f32.mrf.mxu0
      %2359 = vdwg.mxu0
      %v2360 = vadd.f32 %v2298, %v729
      %v2361 = vadd.f32 %v2301, %v730
      %v2362 = vadd.f32 %v2306, %v731
      %v2363 = vadd.f32 %v2309, %v732
      %v2364 = vadd.f32 %v2314, %v733
      %v2365 = vadd.f32 %v2317, %v734
      %v2366 = vadd.f32 %v2322, %v735
      %v2367 = vadd.f32 %v2325, %v736
      %v2368 = vadd.f32 %v2330, %v737
      %v2369 = vadd.f32 %v2333, %v738
      %v2370 = vadd.f32 %v2338, %v739
      %v2371 = vadd.f32 %v2341, %v740
      %v2372 = vadd.f32 %v2346, %v741
      %v2373 = vadd.f32 %v2349, %v742
      %v2374 = vadd.f32 %v2354, %v743
      %v2375 = vadd.f32 %v2357, %v744
      %v2376 = vld [vmem:[%s660] sm:$0x1]
      %v2377 = vld [vmem:[%s663] sm:$0x1]
      %2378 = vadd.xlane.f32.xlu0 %v2360
      %v2379 = vpop.xlane.xlu0 %2378
      %2380 = vadd.xlane.f32.xlu0 %v2361
      %v2381 = vpop.xlane.xlu0 %2380
      %2382 = vadd.xlane.f32.xlu0 %v2362
      %v2383 = vpop.xlane.xlu0 %2382
      %2384 = vadd.xlane.f32.xlu0 %v2363
      %v2385 = vpop.xlane.xlu0 %2384
      %2386 = vadd.xlane.f32.xlu0 %v2364
      %v2387 = vpop.xlane.xlu0 %2386
      %2388 = vadd.xlane.f32.xlu0 %v2365
      %v2389 = vpop.xlane.xlu0 %2388
      %2390 = vadd.xlane.f32.xlu0 %v2366
      %v2391 = vpop.xlane.xlu0 %2390
      %2392 = vadd.xlane.f32.xlu0 %v2367
      %v2393 = vpop.xlane.xlu0 %2392
      %2394 = vadd.xlane.f32.xlu0 %v2368
      %v2395 = vpop.xlane.xlu0 %2394
      %2396 = vadd.xlane.f32.xlu0 %v2369
      %v2397 = vpop.xlane.xlu0 %2396
      %2398 = vadd.xlane.f32.xlu0 %v2370
      %v2399 = vpop.xlane.xlu0 %2398
      %2400 = vadd.xlane.f32.xlu0 %v2371
      %v2401 = vpop.xlane.xlu0 %2400
      %2402 = vadd.xlane.f32.xlu0 %v2372
      %v2403 = vpop.xlane.xlu0 %2402
      %2404 = vadd.xlane.f32.xlu0 %v2373
      %v2405 = vpop.xlane.xlu0 %2404
      %2406 = vadd.xlane.f32.xlu0 %v2374
      %v2407 = vpop.xlane.xlu0 %2406
      %2408 = vadd.xlane.f32.xlu0 %v2375
      %v2409 = vpop.xlane.xlu0 %2408
      %v2410 = vrcp.pop 128.0
      %v2411 = vmul.f32 %v2379, %v2410
      %v2412 = vmul.f32 %v2381, %v2410
      %v2413 = vmul.f32 %v2383, %v2410
      %v2414 = vmul.f32 %v2385, %v2410
      %v2415 = vmul.f32 %v2387, %v2410
      %v2416 = vmul.f32 %v2389, %v2410
      %v2417 = vmul.f32 %v2391, %v2410
      %v2418 = vmul.f32 %v2393, %v2410
      %v2419 = vmul.f32 %v2395, %v2410
      %v2420 = vmul.f32 %v2397, %v2410
      %v2421 = vmul.f32 %v2399, %v2410
      %v2422 = vmul.f32 %v2401, %v2410
      %v2423 = vmul.f32 %v2403, %v2410
      %v2424 = vmul.f32 %v2405, %v2410
      %v2425 = vmul.f32 %v2407, %v2410
      %v2426 = vmul.f32 %v2409, %v2410
      %v2427 = vsub.f32 %v2360, %v2411
      %v2428 = vsub.f32 %v2361, %v2412
      %v2429 = vsub.f32 %v2362, %v2413
      %v2430 = vsub.f32 %v2363, %v2414
      %v2431 = vsub.f32 %v2364, %v2415
      %v2432 = vsub.f32 %v2365, %v2416
      %v2433 = vsub.f32 %v2366, %v2417
      %v2434 = vsub.f32 %v2367, %v2418
      %v2435 = vsub.f32 %v2368, %v2419
      %v2436 = vsub.f32 %v2369, %v2420
      %v2437 = vsub.f32 %v2370, %v2421
      %v2438 = vsub.f32 %v2371, %v2422
      %v2439 = vsub.f32 %v2372, %v2423
      %v2440 = vsub.f32 %v2373, %v2424
      %v2441 = vsub.f32 %v2374, %v2425
      %v2442 = vsub.f32 %v2375, %v2426
      %v2443 = vmul.f32 %v2427, %v2427
      %v2444 = vmul.f32 %v2428, %v2428
      %v2445 = vmul.f32 %v2429, %v2429
      %v2446 = vmul.f32 %v2430, %v2430
      %v2447 = vmul.f32 %v2431, %v2431
      %v2448 = vmul.f32 %v2432, %v2432
      %v2449 = vmul.f32 %v2433, %v2433
      %v2450 = vmul.f32 %v2434, %v2434
      %v2451 = vmul.f32 %v2435, %v2435
      %v2452 = vmul.f32 %v2436, %v2436
      %v2453 = vmul.f32 %v2437, %v2437
      %v2454 = vmul.f32 %v2438, %v2438
      %v2455 = vmul.f32 %v2439, %v2439
      %v2456 = vmul.f32 %v2440, %v2440
      %v2457 = vmul.f32 %v2441, %v2441
      %v2458 = vmul.f32 %v2442, %v2442
      %2459 = vadd.xlane.f32.xlu0 %v2443
      %v2460 = vpop.xlane.xlu0 %2459
      %2461 = vadd.xlane.f32.xlu0 %v2444
      %v2462 = vpop.xlane.xlu0 %2461
      %2463 = vadd.xlane.f32.xlu0 %v2445
      %v2464 = vpop.xlane.xlu0 %2463
      %2465 = vadd.xlane.f32.xlu0 %v2446
      %v2466 = vpop.xlane.xlu0 %2465
      %2467 = vadd.xlane.f32.xlu0 %v2447
      %v2468 = vpop.xlane.xlu0 %2467
      %2469 = vadd.xlane.f32.xlu0 %v2448
      %v2470 = vpop.xlane.xlu0 %2469
      %2471 = vadd.xlane.f32.xlu0 %v2449
      %v2472 = vpop.xlane.xlu0 %2471
      %2473 = vadd.xlane.f32.xlu0 %v2450
      %v2474 = vpop.xlane.xlu0 %2473
      %2475 = vadd.xlane.f32.xlu0 %v2451
      %v2476 = vpop.xlane.xlu0 %2475
      %2477 = vadd.xlane.f32.xlu0 %v2452
      %v2478 = vpop.xlane.xlu0 %2477
      %2479 = vadd.xlane.f32.xlu0 %v2453
      %v2480 = vpop.xlane.xlu0 %2479
      %2481 = vadd.xlane.f32.xlu0 %v2454
      %v2482 = vpop.xlane.xlu0 %2481
      %2483 = vadd.xlane.f32.xlu0 %v2455
      %v2484 = vpop.xlane.xlu0 %2483
      %2485 = vadd.xlane.f32.xlu0 %v2456
      %v2486 = vpop.xlane.xlu0 %2485
      %2487 = vadd.xlane.f32.xlu0 %v2457
      %v2488 = vpop.xlane.xlu0 %2487
      %2489 = vadd.xlane.f32.xlu0 %v2458
      %v2490 = vpop.xlane.xlu0 %2489
      %v2491 = vmul.f32 %v2460, %v2410
      %v2492 = vmul.f32 %v2462, %v2410
      %v2493 = vmul.f32 %v2464, %v2410
      %v2494 = vmul.f32 %v2466, %v2410
      %v2495 = vmul.f32 %v2468, %v2410
      %v2496 = vmul.f32 %v2470, %v2410
      %v2497 = vmul.f32 %v2472, %v2410
      %v2498 = vmul.f32 %v2474, %v2410
      %v2499 = vmul.f32 %v2476, %v2410
      %v2500 = vmul.f32 %v2478, %v2410
      %v2501 = vmul.f32 %v2480, %v2410
      %v2502 = vmul.f32 %v2482, %v2410
      %v2503 = vmul.f32 %v2484, %v2410
      %v2504 = vmul.f32 %v2486, %v2410
      %v2505 = vmul.f32 %v2488, %v2410
      %v2506 = vmul.f32 %v2490, %v2410
      %v2507 = vadd.f32 %v2491, 1e-12
      %v2508 = vadd.f32 %v2492, 1e-12
      %v2509 = vadd.f32 %v2493, 1e-12
      %v2510 = vadd.f32 %v2494, 1e-12
      %v2511 = vadd.f32 %v2495, 1e-12
      %v2512 = vadd.f32 %v2496, 1e-12
      %v2513 = vadd.f32 %v2497, 1e-12
      %v2514 = vadd.f32 %v2498, 1e-12
      %v2515 = vadd.f32 %v2499, 1e-12
      %v2516 = vadd.f32 %v2500, 1e-12
      %v2517 = vadd.f32 %v2501, 1e-12
      %v2518 = vadd.f32 %v2502, 1e-12
      %v2519 = vadd.f32 %v2503, 1e-12
      %v2520 = vadd.f32 %v2504, 1e-12
      %v2521 = vadd.f32 %v2505, 1e-12
      %v2522 = vadd.f32 %v2506, 1e-12
      %v2523 = vrsqrt.pop %v2507
      %v2524 = vrsqrt.pop %v2508
      %v2525 = vrsqrt.pop %v2509
      %v2526 = vrsqrt.pop %v2510
      %v2527 = vrsqrt.pop %v2511
      %v2528 = vrsqrt.pop %v2512
      %v2529 = vrsqrt.pop %v2513
      %v2530 = vrsqrt.pop %v2514
      %v2531 = vrsqrt.pop %v2515
      %v2532 = vrsqrt.pop %v2516
      %v2533 = vrsqrt.pop %v2517
      %v2534 = vrsqrt.pop %v2518
      %v2535 = vrsqrt.pop %v2519
      %v2536 = vrsqrt.pop %v2520
      %v2537 = vrsqrt.pop %v2521
      %v2538 = vrsqrt.pop %v2522
      %v2539 = vmul.f32 %v2427, %v2523
      %v2540 = vmul.f32 %v2428, %v2524
      %v2541 = vmul.f32 %v2429, %v2525
      %v2542 = vmul.f32 %v2430, %v2526
      %v2543 = vmul.f32 %v2431, %v2527
      %v2544 = vmul.f32 %v2432, %v2528
      %v2545 = vmul.f32 %v2433, %v2529
      %v2546 = vmul.f32 %v2434, %v2530
      %v2547 = vmul.f32 %v2435, %v2531
      %v2548 = vmul.f32 %v2436, %v2532
      %v2549 = vmul.f32 %v2437, %v2533
      %v2550 = vmul.f32 %v2438, %v2534
      %v2551 = vmul.f32 %v2439, %v2535
      %v2552 = vmul.f32 %v2440, %v2536
      %v2553 = vmul.f32 %v2441, %v2537
      %v2554 = vmul.f32 %v2442, %v2538
      %v2556 = vlaneseq
      %v2557 = vshrl.u32 %v2556, 7
      %v2558 = vsub.s32 0, %v2557
      %v2559 = vrot.slane %v2376, %v2558
      %v2561 = vmul.f32 %v2539, %v2559
      %v2562 = vmul.f32 %v2540, %v2559
      %v2563 = vmul.f32 %v2541, %v2559
      %v2564 = vmul.f32 %v2542, %v2559
      %v2565 = vmul.f32 %v2543, %v2559
      %v2566 = vmul.f32 %v2544, %v2559
      %v2567 = vmul.f32 %v2545, %v2559
      %v2568 = vmul.f32 %v2546, %v2559
      %v2569 = vmul.f32 %v2547, %v2559
      %v2570 = vmul.f32 %v2548, %v2559
      %v2571 = vmul.f32 %v2549, %v2559
      %v2572 = vmul.f32 %v2550, %v2559
      %v2573 = vmul.f32 %v2551, %v2559
      %v2574 = vmul.f32 %v2552, %v2559
      %v2575 = vmul.f32 %v2553, %v2559
      %v2576 = vmul.f32 %v2554, %v2559
      %v2578 = vlaneseq
      %v2579 = vshrl.u32 %v2578, 7
      %v2580 = vsub.s32 0, %v2579
      %v2581 = vrot.slane %v2377, %v2580
      %v2583 = vadd.f32 %v2561, %v2581
      %v2584 = vadd.f32 %v2562, %v2581
      %v2585 = vadd.f32 %v2563, %v2581
      %v2586 = vadd.f32 %v2564, %v2581
      %v2587 = vadd.f32 %v2565, %v2581
      %v2588 = vadd.f32 %v2566, %v2581
      %v2589 = vadd.f32 %v2567, %v2581
      %v2590 = vadd.f32 %v2568, %v2581
      %v2591 = vadd.f32 %v2569, %v2581
      %v2592 = vadd.f32 %v2570, %v2581
      %v2593 = vadd.f32 %v2571, %v2581
      %v2594 = vadd.f32 %v2572, %v2581
      %v2595 = vadd.f32 %v2573, %v2581
      %v2596 = vadd.f32 %v2574, %v2581
      %v2597 = vadd.f32 %v2575, %v2581
      %v2598 = vadd.f32 %v2576, %v2581
      %v2599 = vpack.c.bf16 %v2584, %v2583
      %v2600 = vpack.c.bf16 %v2586, %v2585
      %v2601 = vpack.c.bf16 %v2588, %v2587
      %v2602 = vpack.c.bf16 %v2590, %v2589
      %v2603 = vpack.c.bf16 %v2592, %v2591
      %v2604 = vpack.c.bf16 %v2594, %v2593
      %v2605 = vpack.c.bf16 %v2596, %v2595
      %v2606 = vpack.c.bf16 %v2598, %v2597
      %v2607 = vld [vmem:[%s668] sm:$0xff]
      %v2608 = vld [vmem:[%s668 + $0x8] sm:$0xff]
      %v2609 = vld [vmem:[%s668 + $0x10] sm:$0xff]
      %v2610 = vld [vmem:[%s668 + $0x18] sm:$0xff]
      %v2611 = vld [vmem:[%s668 + $0x20] sm:$0xff]
      %v2612 = vld [vmem:[%s668 + $0x28] sm:$0xff]
      %v2613 = vld [vmem:[%s668 + $0x30] sm:$0xff]
      %v2614 = vld [vmem:[%s668 + $0x38] sm:$0xff]
      %v2615 = vld [vmem:[%s668 + $0x40] sm:$0xff]
      %v2616 = vld [vmem:[%s668 + $0x48] sm:$0xff]
      %v2617 = vld [vmem:[%s668 + $0x50] sm:$0xff]
      %v2618 = vld [vmem:[%s668 + $0x58] sm:$0xff]
      %v2619 = vld [vmem:[%s668 + $0x60] sm:$0xff]
      %v2620 = vld [vmem:[%s668 + $0x68] sm:$0xff]
      %v2621 = vld [vmem:[%s668 + $0x70] sm:$0xff]
      %v2622 = vld [vmem:[%s668 + $0x78] sm:$0xff]
      %v2623 = vld [vmem:[%s668 + $0x80] sm:$0xff]
      %v2624 = vld [vmem:[%s668 + $0x88] sm:$0xff]
      %v2625 = vld [vmem:[%s668 + $0x90] sm:$0xff]
      %v2626 = vld [vmem:[%s668 + $0x98] sm:$0xff]
      %v2627 = vld [vmem:[%s668 + $0xa0] sm:$0xff]
      %v2628 = vld [vmem:[%s668 + $0xa8] sm:$0xff]
      %v2629 = vld [vmem:[%s668 + $0xb0] sm:$0xff]
      %v2630 = vld [vmem:[%s668 + $0xb8] sm:$0xff]
      %v2631 = vld [vmem:[%s668 + $0xc0] sm:$0xff]
      %v2632 = vld [vmem:[%s668 + $0xc8] sm:$0xff]
      %v2633 = vld [vmem:[%s668 + $0xd0] sm:$0xff]
      %v2634 = vld [vmem:[%s668 + $0xd8] sm:$0xff]
      %v2635 = vld [vmem:[%s668 + $0xe0] sm:$0xff]
      %v2636 = vld [vmem:[%s668 + $0xe8] sm:$0xff]
      %v2637 = vld [vmem:[%s668 + $0xf0] sm:$0xff]
      %v2638 = vld [vmem:[%s668 + $0xf8] sm:$0xff]
      %v2639 = vld [vmem:[%s672] sm:$0xf]
      %v2641 = vlaneseq
      %v2642 = vshrl.u32 %v2641, 7
      %v2643 = vsub.s32 0, %v2642
      %v2644 = vrot.slane %v2639, %v2643
      %v2645 = vlaneseq
      %v2646 = vshrl.u32 %v2645, 7
      %v2647 = vsub.s32 1, %v2646
      %v2648 = vrot.slane %v2639, %v2647
      %v2649 = vlaneseq
      %v2650 = vshrl.u32 %v2649, 7
      %v2651 = vsub.s32 2, %v2650
      %v2652 = vrot.slane %v2639, %v2651
      %v2653 = vlaneseq
      %v2654 = vshrl.u32 %v2653, 7
      %v2655 = vsub.s32 3, %v2654
      %v2656 = vrot.slane %v2639, %v2655
      %v2693 = vunpack.c.l.b16 %v2607
      %v2694 = vunpack.c.h.b16 %v2607
      %v2695 = vunpack.c.l.b16 %v2608
      %v2696 = vunpack.c.h.b16 %v2608
      %v2697 = vunpack.c.l.b16 %v2609
      %v2698 = vunpack.c.h.b16 %v2609
      %v2699 = vunpack.c.l.b16 %v2610
      %v2700 = vunpack.c.h.b16 %v2610
      %v2701 = vunpack.c.l.b16 %v2611
      %v2702 = vunpack.c.h.b16 %v2611
      %v2703 = vunpack.c.l.b16 %v2612
      %v2704 = vunpack.c.h.b16 %v2612
      %v2705 = vunpack.c.l.b16 %v2613
      %v2706 = vunpack.c.h.b16 %v2613
      %v2707 = vunpack.c.l.b16 %v2614
      %v2708 = vunpack.c.h.b16 %v2614
      %v2709 = vunpack.c.l.b16 %v2615
      %v2710 = vunpack.c.h.b16 %v2615
      %v2711 = vunpack.c.l.b16 %v2616
      %v2712 = vunpack.c.h.b16 %v2616
      %v2713 = vunpack.c.l.b16 %v2617
      %v2714 = vunpack.c.h.b16 %v2617
      %v2715 = vunpack.c.l.b16 %v2618
      %v2716 = vunpack.c.h.b16 %v2618
      %v2717 = vunpack.c.l.b16 %v2619
      %v2718 = vunpack.c.h.b16 %v2619
      %v2719 = vunpack.c.l.b16 %v2620
      %v2720 = vunpack.c.h.b16 %v2620
      %v2721 = vunpack.c.l.b16 %v2621
      %v2722 = vunpack.c.h.b16 %v2621
      %v2723 = vunpack.c.l.b16 %v2622
      %v2724 = vunpack.c.h.b16 %v2622
      %v2725 = vunpack.c.l.b16 %v2623
      %v2726 = vunpack.c.h.b16 %v2623
      %v2727 = vunpack.c.l.b16 %v2624
      %v2728 = vunpack.c.h.b16 %v2624
      %v2729 = vunpack.c.l.b16 %v2625
      %v2730 = vunpack.c.h.b16 %v2625
      %v2731 = vunpack.c.l.b16 %v2626
      %v2732 = vunpack.c.h.b16 %v2626
      %v2733 = vunpack.c.l.b16 %v2627
      %v2734 = vunpack.c.h.b16 %v2627
      %v2735 = vunpack.c.l.b16 %v2628
      %v2736 = vunpack.c.h.b16 %v2628
      %v2737 = vunpack.c.l.b16 %v2629
      %v2738 = vunpack.c.h.b16 %v2629
      %v2739 = vunpack.c.l.b16 %v2630
      %v2740 = vunpack.c.h.b16 %v2630
      %v2741 = vunpack.c.l.b16 %v2631
      %v2742 = vunpack.c.h.b16 %v2631
      %v2743 = vunpack.c.l.b16 %v2632
      %v2744 = vunpack.c.h.b16 %v2632
      %v2745 = vunpack.c.l.b16 %v2633
      %v2746 = vunpack.c.h.b16 %v2633
      %v2747 = vunpack.c.l.b16 %v2634
      %v2748 = vunpack.c.h.b16 %v2634
      %v2749 = vunpack.c.l.b16 %v2635
      %v2750 = vunpack.c.h.b16 %v2635
      %v2751 = vunpack.c.l.b16 %v2636
      %v2752 = vunpack.c.h.b16 %v2636
      %v2753 = vunpack.c.l.b16 %v2637
      %v2754 = vunpack.c.h.b16 %v2637
      %v2755 = vunpack.c.l.b16 %v2638
      %v2756 = vunpack.c.h.b16 %v2638
      %v2757 = vpack.c.b16 %v2697, %v2693
      %v2758 = vpack.c.b16 %v2698, %v2694
      %v2759 = vpack.c.b16 %v2699, %v2695
      %v2760 = vpack.c.b16 %v2700, %v2696
      %v2761 = vpack.c.b16 %v2705, %v2701
      %v2762 = vpack.c.b16 %v2706, %v2702
      %v2763 = vpack.c.b16 %v2707, %v2703
      %v2764 = vpack.c.b16 %v2708, %v2704
      %v2765 = vpack.c.b16 %v2713, %v2709
      %v2766 = vpack.c.b16 %v2714, %v2710
      %v2767 = vpack.c.b16 %v2715, %v2711
      %v2768 = vpack.c.b16 %v2716, %v2712
      %v2769 = vpack.c.b16 %v2721, %v2717
      %v2770 = vpack.c.b16 %v2722, %v2718
      %v2771 = vpack.c.b16 %v2723, %v2719
      %v2772 = vpack.c.b16 %v2724, %v2720
      %v2773 = vpack.c.b16 %v2729, %v2725
      %v2774 = vpack.c.b16 %v2730, %v2726
      %v2775 = vpack.c.b16 %v2731, %v2727
      %v2776 = vpack.c.b16 %v2732, %v2728
      %v2777 = vpack.c.b16 %v2737, %v2733
      %v2778 = vpack.c.b16 %v2738, %v2734
      %v2779 = vpack.c.b16 %v2739, %v2735
      %v2780 = vpack.c.b16 %v2740, %v2736
      %v2781 = vpack.c.b16 %v2745, %v2741
      %v2782 = vpack.c.b16 %v2746, %v2742
      %v2783 = vpack.c.b16 %v2747, %v2743
      %v2784 = vpack.c.b16 %v2748, %v2744
      %v2785 = vpack.c.b16 %v2753, %v2749
      %v2786 = vpack.c.b16 %v2754, %v2750
      %v2787 = vpack.c.b16 %v2755, %v2751
      %v2788 = vpack.c.b16 %v2756, %v2752
      %2821 = vmatprep.subr.bf16.mxu0 %v2786
      %2822 = vmatpush1.bf16.msra.mxu0 %v2785
      %2823 = vmatprep.subr.bf16.mxu0 %v2782
      %2824 = vmatpush1.bf16.msra.mxu0 %v2781
      %2825 = vmatprep.subr.bf16.mxu0 %v2778
      %2826 = vmatpush1.bf16.msra.mxu0 %v2777
      %2827 = vmatprep.subr.bf16.mxu0 %v2774
      %2828 = vmatpush1.bf16.msra.mxu0 %v2773
      %2829 = vmatprep.subr.bf16.mxu0 %v2770
      %2830 = vmatpush1.bf16.msra.mxu0 %v2769
      %2831 = vmatprep.subr.bf16.mxu0 %v2766
      %2832 = vmatpush1.bf16.msra.mxu0 %v2765
      %2833 = vmatprep.subr.bf16.mxu0 %v2762
      %2834 = vmatpush1.bf16.msra.mxu0 %v2761
      %2835 = vmatprep.subr.bf16.mxu0 %v2758
      %2836 = vmatpush1.bf16.msra.mxu0 %v2757
      %2837 = vmatprep.subr.bf16.mxu0 0
      %2838 = vmatpush2.bf16.msra.mxu0 0
      %2839 = vmatprep.subr.bf16.mxu0 0
      %2840 = vmatpush2.bf16.msra.mxu0 0
      %2841 = vmatprep.subr.bf16.mxu0 0
      %2842 = vmatpush2.bf16.msra.mxu0 0
      %2843 = vmatprep.subr.bf16.mxu0 0
      %2844 = vmatpush2.bf16.msra.mxu0 0
      %2845 = vmatprep.subr.bf16.mxu0 0
      %2846 = vmatpush2.bf16.msra.mxu0 0
      %2847 = vmatprep.subr.bf16.mxu0 0
      %2848 = vmatpush2.bf16.msra.mxu0 0
      %2849 = vmatprep.subr.bf16.mxu0 0
      %2850 = vmatpush2.bf16.msra.mxu0 0
      %2851 = vmatprep.subr.bf16.mxu0 0
      %2852 = vmatpush2.bf16.msra.mxu0 0
      %2853 = vmatprep.mubr.bf16.mxu0 0
      %2854 = vmatmul.mubr.bf16.gmra.mxu0 %v2599
      %v2855 = vpop.f32.mrf.mxu0
      %v2856 = vadd.f32 %v2644, %v2855
      %v2857 = vpop.f32.mrf.mxu0
      %v2858 = vadd.f32 %v2648, %v2857
      %v2859 = vpop.f32.mrf.mxu0
      %v2860 = vadd.f32 %v2644, %v2859
      %v2861 = vpop.f32.mrf.mxu0
      %v2862 = vadd.f32 %v2648, %v2861
      %2863 = vmatprep.mubr.bf16.mxu0 0
      %2864 = vmatmul.mubr.bf16.gmra.mxu0 %v2600
      %v2865 = vpop.f32.mrf.mxu0
      %v2866 = vadd.f32 %v2644, %v2865
      %v2867 = vpop.f32.mrf.mxu0
      %v2868 = vadd.f32 %v2648, %v2867
      %v2869 = vpop.f32.mrf.mxu0
      %v2870 = vadd.f32 %v2644, %v2869
      %v2871 = vpop.f32.mrf.mxu0
      %v2872 = vadd.f32 %v2648, %v2871
      %2873 = vmatprep.mubr.bf16.mxu0 0
      %2874 = vmatmul.mubr.bf16.gmra.mxu0 %v2601
      %v2875 = vpop.f32.mrf.mxu0
      %v2876 = vadd.f32 %v2644, %v2875
      %v2877 = vpop.f32.mrf.mxu0
      %v2878 = vadd.f32 %v2648, %v2877
      %v2879 = vpop.f32.mrf.mxu0
      %v2880 = vadd.f32 %v2644, %v2879
      %v2881 = vpop.f32.mrf.mxu0
      %v2882 = vadd.f32 %v2648, %v2881
      %2883 = vmatprep.mubr.bf16.mxu0 0
      %2884 = vmatmul.mubr.bf16.gmra.mxu0 %v2602
      %v2885 = vpop.f32.mrf.mxu0
      %v2886 = vadd.f32 %v2644, %v2885
      %v2887 = vpop.f32.mrf.mxu0
      %v2888 = vadd.f32 %v2648, %v2887
      %v2889 = vpop.f32.mrf.mxu0
      %v2890 = vadd.f32 %v2644, %v2889
      %v2891 = vpop.f32.mrf.mxu0
      %v2892 = vadd.f32 %v2648, %v2891
      %2893 = vmatprep.mubr.bf16.mxu0 0
      %2894 = vmatmul.mubr.bf16.gmra.mxu0 %v2603
      %v2895 = vpop.f32.mrf.mxu0
      %v2896 = vadd.f32 %v2644, %v2895
      %v2897 = vpop.f32.mrf.mxu0
      %v2898 = vadd.f32 %v2648, %v2897
      %v2899 = vpop.f32.mrf.mxu0
      %v2900 = vadd.f32 %v2644, %v2899
      %v2901 = vpop.f32.mrf.mxu0
      %v2902 = vadd.f32 %v2648, %v2901
      %2903 = vmatprep.mubr.bf16.mxu0 0
      %2904 = vmatmul.mubr.bf16.gmra.mxu0 %v2604
      %v2905 = vpop.f32.mrf.mxu0
      %v2906 = vadd.f32 %v2644, %v2905
      %v2907 = vpop.f32.mrf.mxu0
      %v2908 = vadd.f32 %v2648, %v2907
      %v2909 = vpop.f32.mrf.mxu0
      %v2910 = vadd.f32 %v2644, %v2909
      %v2911 = vpop.f32.mrf.mxu0
      %v2912 = vadd.f32 %v2648, %v2911
      %2913 = vmatprep.mubr.bf16.mxu0 0
      %2914 = vmatmul.mubr.bf16.gmra.mxu0 %v2605
      %v2915 = vpop.f32.mrf.mxu0
      %v2916 = vadd.f32 %v2644, %v2915
      %v2917 = vpop.f32.mrf.mxu0
      %v2918 = vadd.f32 %v2648, %v2917
      %v2919 = vpop.f32.mrf.mxu0
      %v2920 = vadd.f32 %v2644, %v2919
      %v2921 = vpop.f32.mrf.mxu0
      %v2922 = vadd.f32 %v2648, %v2921
      %2923 = vmatprep.mubr.bf16.mxu0 0
      %2924 = vmatmul.mubr.bf16.gmra.mxu0 %v2606
      %v2925 = vpop.f32.mrf.mxu0
      %v2926 = vadd.f32 %v2644, %v2925
      %v2927 = vpop.f32.mrf.mxu0
      %v2928 = vadd.f32 %v2648, %v2927
      %v2929 = vpop.f32.mrf.mxu0
      %v2930 = vadd.f32 %v2644, %v2929
      %v2931 = vpop.f32.mrf.mxu0
      %v2932 = vadd.f32 %v2648, %v2931
      %2933 = vdwg.mxu0
      %2934 = vmatprep.subr.bf16.mxu0 %v2788
      %2935 = vmatpush1.bf16.msra.mxu0 %v2787
      %2936 = vmatprep.subr.bf16.mxu0 %v2784
      %2937 = vmatpush1.bf16.msra.mxu0 %v2783
      %2938 = vmatprep.subr.bf16.mxu0 %v2780
      %2939 = vmatpush1.bf16.msra.mxu0 %v2779
      %2940 = vmatprep.subr.bf16.mxu0 %v2776
      %2941 = vmatpush1.bf16.msra.mxu0 %v2775
      %2942 = vmatprep.subr.bf16.mxu0 %v2772
      %2943 = vmatpush1.bf16.msra.mxu0 %v2771
      %2944 = vmatprep.subr.bf16.mxu0 %v2768
      %2945 = vmatpush1.bf16.msra.mxu0 %v2767
      %2946 = vmatprep.subr.bf16.mxu0 %v2764
      %2947 = vmatpush1.bf16.msra.mxu0 %v2763
      %2948 = vmatprep.subr.bf16.mxu0 %v2760
      %2949 = vmatpush1.bf16.msra.mxu0 %v2759
      %2950 = vmatprep.subr.bf16.mxu0 0
      %2951 = vmatpush2.bf16.msra.mxu0 0
      %2952 = vmatprep.subr.bf16.mxu0 0
      %2953 = vmatpush2.bf16.msra.mxu0 0
      %2954 = vmatprep.subr.bf16.mxu0 0
      %2955 = vmatpush2.bf16.msra.mxu0 0
      %2956 = vmatprep.subr.bf16.mxu0 0
      %2957 = vmatpush2.bf16.msra.mxu0 0
      %2958 = vmatprep.subr.bf16.mxu0 0
      %2959 = vmatpush2.bf16.msra.mxu0 0
      %2960 = vmatprep.subr.bf16.mxu0 0
      %2961 = vmatpush2.bf16.msra.mxu0 0
      %2962 = vmatprep.subr.bf16.mxu0 0
      %2963 = vmatpush2.bf16.msra.mxu0 0
      %2964 = vmatprep.subr.bf16.mxu0 0
      %2965 = vmatpush2.bf16.msra.mxu0 0
      %2966 = vmatprep.mubr.bf16.mxu0 0
      %2967 = vmatmul.mubr.bf16.gmra.mxu0 %v2599
      %v2968 = vpop.f32.mrf.mxu0
      %v2969 = vadd.f32 %v2652, %v2968
      %v2970 = vpop.f32.mrf.mxu0
      %v2971 = vadd.f32 %v2656, %v2970
      %v2972 = vpop.f32.mrf.mxu0
      %v2973 = vadd.f32 %v2652, %v2972
      %v2974 = vpop.f32.mrf.mxu0
      %v2975 = vadd.f32 %v2656, %v2974
      %2976 = vmatprep.mubr.bf16.mxu0 0
      %2977 = vmatmul.mubr.bf16.gmra.mxu0 %v2600
      %v2978 = vpop.f32.mrf.mxu0
      %v2979 = vadd.f32 %v2652, %v2978
      %v2980 = vpop.f32.mrf.mxu0
      %v2981 = vadd.f32 %v2656, %v2980
      %v2982 = vpop.f32.mrf.mxu0
      %v2983 = vadd.f32 %v2652, %v2982
      %v2984 = vpop.f32.mrf.mxu0
      %v2985 = vadd.f32 %v2656, %v2984
      %2986 = vmatprep.mubr.bf16.mxu0 0
      %2987 = vmatmul.mubr.bf16.gmra.mxu0 %v2601
      %v2988 = vpop.f32.mrf.mxu0
      %v2989 = vadd.f32 %v2652, %v2988
      %v2990 = vpop.f32.mrf.mxu0
      %v2991 = vadd.f32 %v2656, %v2990
      %v2992 = vpop.f32.mrf.mxu0
      %v2993 = vadd.f32 %v2652, %v2992
      %v2994 = vpop.f32.mrf.mxu0
      %v2995 = vadd.f32 %v2656, %v2994
      %2996 = vmatprep.mubr.bf16.mxu0 0
      %2997 = vmatmul.mubr.bf16.gmra.mxu0 %v2602
      %v2998 = vpop.f32.mrf.mxu0
      %v2999 = vadd.f32 %v2652, %v2998
      %v3000 = vpop.f32.mrf.mxu0
      %v3001 = vadd.f32 %v2656, %v3000
      %v3002 = vpop.f32.mrf.mxu0
      %v3003 = vadd.f32 %v2652, %v3002
      %v3004 = vpop.f32.mrf.mxu0
      %v3005 = vadd.f32 %v2656, %v3004
      %3006 = vmatprep.mubr.bf16.mxu0 0
      %3007 = vmatmul.mubr.bf16.gmra.mxu0 %v2603
      %v3008 = vpop.f32.mrf.mxu0
      %v3009 = vadd.f32 %v2652, %v3008
      %v3010 = vpop.f32.mrf.mxu0
      %v3011 = vadd.f32 %v2656, %v3010
      %v3012 = vpop.f32.mrf.mxu0
      %v3013 = vadd.f32 %v2652, %v3012
      %v3014 = vpop.f32.mrf.mxu0
      %v3015 = vadd.f32 %v2656, %v3014
      %3016 = vmatprep.mubr.bf16.mxu0 0
      %3017 = vmatmul.mubr.bf16.gmra.mxu0 %v2604
      %v3018 = vpop.f32.mrf.mxu0
      %v3019 = vadd.f32 %v2652, %v3018
      %v3020 = vpop.f32.mrf.mxu0
      %v3021 = vadd.f32 %v2656, %v3020
      %v3022 = vpop.f32.mrf.mxu0
      %v3023 = vadd.f32 %v2652, %v3022
      %v3024 = vpop.f32.mrf.mxu0
      %v3025 = vadd.f32 %v2656, %v3024
      %3026 = vmatprep.mubr.bf16.mxu0 0
      %3027 = vmatmul.mubr.bf16.gmra.mxu0 %v2605
      %v3028 = vpop.f32.mrf.mxu0
      %v3029 = vadd.f32 %v2652, %v3028
      %v3030 = vpop.f32.mrf.mxu0
      %v3031 = vadd.f32 %v2656, %v3030
      %v3032 = vpop.f32.mrf.mxu0
      %v3033 = vadd.f32 %v2652, %v3032
      %v3034 = vpop.f32.mrf.mxu0
      %v3035 = vadd.f32 %v2656, %v3034
      %3036 = vmatprep.mubr.bf16.mxu0 0
      %3037 = vmatmul.mubr.bf16.gmra.mxu0 %v2606
      %v3038 = vpop.f32.mrf.mxu0
      %v3039 = vadd.f32 %v2652, %v3038
      %v3040 = vpop.f32.mrf.mxu0
      %v3041 = vadd.f32 %v2656, %v3040
      %v3042 = vpop.f32.mrf.mxu0
      %v3043 = vadd.f32 %v2652, %v3042
      %v3044 = vpop.f32.mrf.mxu0
      %v3045 = vadd.f32 %v2656, %v3044
      %3046 = vdwg.mxu0
      %v3047 = vmul.f32 %v2856, 0.5
      %v3048 = vmul.f32 %v2858, 0.5
      %v3049 = vmul.f32 %v2969, 0.5
      %v3050 = vmul.f32 %v2971, 0.5
      %v3051 = vmul.f32 %v2860, 0.5
      %v3052 = vmul.f32 %v2862, 0.5
      %v3053 = vmul.f32 %v2973, 0.5
      %v3054 = vmul.f32 %v2975, 0.5
      %v3055 = vmul.f32 %v2866, 0.5
      %v3056 = vmul.f32 %v2868, 0.5
      %v3057 = vmul.f32 %v2979, 0.5
      %v3058 = vmul.f32 %v2981, 0.5
      %v3059 = vmul.f32 %v2870, 0.5
      %v3060 = vmul.f32 %v2872, 0.5
      %v3061 = vmul.f32 %v2983, 0.5
      %v3062 = vmul.f32 %v2985, 0.5
      %v3063 = vmul.f32 %v2876, 0.5
      %v3064 = vmul.f32 %v2878, 0.5
      %v3065 = vmul.f32 %v2989, 0.5
      %v3066 = vmul.f32 %v2991, 0.5
      %v3067 = vmul.f32 %v2880, 0.5
      %v3068 = vmul.f32 %v2882, 0.5
      %v3069 = vmul.f32 %v2993, 0.5
      %v3070 = vmul.f32 %v2995, 0.5
      %v3071 = vmul.f32 %v2886, 0.5
      %v3072 = vmul.f32 %v2888, 0.5
      %v3073 = vmul.f32 %v2999, 0.5
      %v3074 = vmul.f32 %v3001, 0.5
      %v3075 = vmul.f32 %v2890, 0.5
      %v3076 = vmul.f32 %v2892, 0.5
      %v3077 = vmul.f32 %v3003, 0.5
      %v3078 = vmul.f32 %v3005, 0.5
      %v3079 = vmul.f32 %v2896, 0.5
      %v3080 = vmul.f32 %v2898, 0.5
      %v3081 = vmul.f32 %v3009, 0.5
      %v3082 = vmul.f32 %v3011, 0.5
      %v3083 = vmul.f32 %v2900, 0.5
      %v3084 = vmul.f32 %v2902, 0.5
      %v3085 = vmul.f32 %v3013, 0.5
      %v3086 = vmul.f32 %v3015, 0.5
      %v3087 = vmul.f32 %v2906, 0.5
      %v3088 = vmul.f32 %v2908, 0.5
      %v3089 = vmul.f32 %v3019, 0.5
      %v3090 = vmul.f32 %v3021, 0.5
      %v3091 = vmul.f32 %v2910, 0.5
      %v3092 = vmul.f32 %v2912, 0.5
      %v3093 = vmul.f32 %v3023, 0.5
      %v3094 = vmul.f32 %v3025, 0.5
      %v3095 = vmul.f32 %v2916, 0.5
      %v3096 = vmul.f32 %v2918, 0.5
      %v3097 = vmul.f32 %v3029, 0.5
      %v3098 = vmul.f32 %v3031, 0.5
      %v3099 = vmul.f32 %v2920, 0.5
      %v3100 = vmul.f32 %v2922, 0.5
      %v3101 = vmul.f32 %v3033, 0.5
      %v3102 = vmul.f32 %v3035, 0.5
      %v3103 = vmul.f32 %v2926, 0.5
      %v3104 = vmul.f32 %v2928, 0.5
      %v3105 = vmul.f32 %v3039, 0.5
      %v3106 = vmul.f32 %v3041, 0.5
      %v3107 = vmul.f32 %v2930, 0.5
      %v3108 = vmul.f32 %v2932, 0.5
      %v3109 = vmul.f32 %v3043, 0.5
      %v3110 = vmul.f32 %v3045, 0.5
      %v3111 = vrcp.pop 1.4142135
      %v3112 = vmul.f32 %v2856, %v3111
      %v3113 = vmul.f32 %v2858, %v3111
      %v3114 = vmul.f32 %v2969, %v3111
      %v3115 = vmul.f32 %v2971, %v3111
      %v3116 = vmul.f32 %v2860, %v3111
      %v3117 = vmul.f32 %v2862, %v3111
      %v3118 = vmul.f32 %v2973, %v3111
      %v3119 = vmul.f32 %v2975, %v3111
      %v3120 = vmul.f32 %v2866, %v3111
      %v3121 = vmul.f32 %v2868, %v3111
      %v3122 = vmul.f32 %v2979, %v3111
      %v3123 = vmul.f32 %v2981, %v3111
      %v3124 = vmul.f32 %v2870, %v3111
      %v3125 = vmul.f32 %v2872, %v3111
      %v3126 = vmul.f32 %v2983, %v3111
      %v3127 = vmul.f32 %v2985, %v3111
      %v3128 = vmul.f32 %v2876, %v3111
      %v3129 = vmul.f32 %v2878, %v3111
      %v3130 = vmul.f32 %v2989, %v3111
      %v3131 = vmul.f32 %v2991, %v3111
      %v3132 = vmul.f32 %v2880, %v3111
      %v3133 = vmul.f32 %v2882, %v3111
      %v3134 = vmul.f32 %v2993, %v3111
      %v3135 = vmul.f32 %v2995, %v3111
      %v3136 = vmul.f32 %v2886, %v3111
      %v3137 = vmul.f32 %v2888, %v3111
      %v3138 = vmul.f32 %v2999, %v3111
      %v3139 = vmul.f32 %v3001, %v3111
      %v3140 = vmul.f32 %v2890, %v3111
      %v3141 = vmul.f32 %v2892, %v3111
      %v3142 = vmul.f32 %v3003, %v3111
      %v3143 = vmul.f32 %v3005, %v3111
      %v3144 = vmul.f32 %v2896, %v3111
      %v3145 = vmul.f32 %v2898, %v3111
      %v3146 = vmul.f32 %v3009, %v3111
      %v3147 = vmul.f32 %v3011, %v3111
      %v3148 = vmul.f32 %v2900, %v3111
      %v3149 = vmul.f32 %v2902, %v3111
      %v3150 = vmul.f32 %v3013, %v3111
      %v3151 = vmul.f32 %v3015, %v3111
      %v3152 = vmul.f32 %v2906, %v3111
      %v3153 = vmul.f32 %v2908, %v3111
      %v3154 = vmul.f32 %v3019, %v3111
      %v3155 = vmul.f32 %v3021, %v3111
      %v3156 = vmul.f32 %v2910, %v3111
      %v3157 = vmul.f32 %v2912, %v3111
      %v3158 = vmul.f32 %v3023, %v3111
      %v3159 = vmul.f32 %v3025, %v3111
      %v3160 = vmul.f32 %v2916, %v3111
      %v3161 = vmul.f32 %v2918, %v3111
      %v3162 = vmul.f32 %v3029, %v3111
      %v3163 = vmul.f32 %v3031, %v3111
      %v3164 = vmul.f32 %v2920, %v3111
      %v3165 = vmul.f32 %v2922, %v3111
      %v3166 = vmul.f32 %v3033, %v3111
      %v3167 = vmul.f32 %v3035, %v3111
      %v3168 = vmul.f32 %v2926, %v3111
      %v3169 = vmul.f32 %v2928, %v3111
      %v3170 = vmul.f32 %v3039, %v3111
      %v3171 = vmul.f32 %v3041, %v3111
      %v3172 = vmul.f32 %v2930, %v3111
      %v3173 = vmul.f32 %v2932, %v3111
      %v3174 = vmul.f32 %v3043, %v3111
      %v3175 = vmul.f32 %v3045, %v3111
      %v3176 = verf.f32.pop %v3112
      %v3177 = verf.f32.pop %v3113
      %v3178 = verf.f32.pop %v3114
      %v3179 = verf.f32.pop %v3115
      %v3180 = verf.f32.pop %v3116
      %v3181 = verf.f32.pop %v3117
      %v3182 = verf.f32.pop %v3118
      %v3183 = verf.f32.pop %v3119
      %v3184 = verf.f32.pop %v3120
      %v3185 = verf.f32.pop %v3121
      %v3186 = verf.f32.pop %v3122
      %v3187 = verf.f32.pop %v3123
      %v3188 = verf.f32.pop %v3124
      %v3189 = verf.f32.pop %v3125
      %v3190 = verf.f32.pop %v3126
      %v3191 = verf.f32.pop %v3127
      %v3192 = verf.f32.pop %v3128
      %v3193 = verf.f32.pop %v3129
      %v3194 = verf.f32.pop %v3130
      %v3195 = verf.f32.pop %v3131
      %v3196 = verf.f32.pop %v3132
      %v3197 = verf.f32.pop %v3133
      %v3198 = verf.f32.pop %v3134
      %v3199 = verf.f32.pop %v3135
      %v3200 = verf.f32.pop %v3136
      %v3201 = verf.f32.pop %v3137
      %v3202 = verf.f32.pop %v3138
      %v3203 = verf.f32.pop %v3139
      %v3204 = verf.f32.pop %v3140
      %v3205 = verf.f32.pop %v3141
      %v3206 = verf.f32.pop %v3142
      %v3207 = verf.f32.pop %v3143
      %v3208 = verf.f32.pop %v3144
      %v3209 = verf.f32.pop %v3145
      %v3210 = verf.f32.pop %v3146
      %v3211 = verf.f32.pop %v3147
      %v3212 = verf.f32.pop %v3148
      %v3213 = verf.f32.pop %v3149
      %v3214 = verf.f32.pop %v3150
      %v3215 = verf.f32.pop %v3151
      %v3216 = verf.f32.pop %v3152
      %v3217 = verf.f32.pop %v3153
      %v3218 = verf.f32.pop %v3154
      %v3219 = verf.f32.pop %v3155
      %v3220 = verf.f32.pop %v3156
      %v3221 = verf.f32.pop %v3157
      %v3222 = verf.f32.pop %v3158
      %v3223 = verf.f32.pop %v3159
      %v3224 = verf.f32.pop %v3160
      %v3225 = verf.f32.pop %v3161
      %v3226 = verf.f32.pop %v3162
      %v3227 = verf.f32.pop %v3163
      %v3228 = verf.f32.pop %v3164
      %v3229 = verf.f32.pop %v3165
      %v3230 = verf.f32.pop %v3166
      %v3231 = verf.f32.pop %v3167
      %v3232 = verf.f32.pop %v3168
      %v3233 = verf.f32.pop %v3169
      %v3234 = verf.f32.pop %v3170
      %v3235 = verf.f32.pop %v3171
      %v3236 = verf.f32.pop %v3172
      %v3237 = verf.f32.pop %v3173
      %v3238 = verf.f32.pop %v3174
      %v3239 = verf.f32.pop %v3175
      %v3240 = vadd.f32 %v3176, 1.0
      %v3241 = vadd.f32 %v3177, 1.0
      %v3242 = vadd.f32 %v3178, 1.0
      %v3243 = vadd.f32 %v3179, 1.0
      %v3244 = vadd.f32 %v3180, 1.0
      %v3245 = vadd.f32 %v3181, 1.0
      %v3246 = vadd.f32 %v3182, 1.0
      %v3247 = vadd.f32 %v3183, 1.0
      %v3248 = vadd.f32 %v3184, 1.0
      %v3249 = vadd.f32 %v3185, 1.0
      %v3250 = vadd.f32 %v3186, 1.0
      %v3251 = vadd.f32 %v3187, 1.0
      %v3252 = vadd.f32 %v3188, 1.0
      %v3253 = vadd.f32 %v3189, 1.0
      %v3254 = vadd.f32 %v3190, 1.0
      %v3255 = vadd.f32 %v3191, 1.0
      %v3256 = vadd.f32 %v3192, 1.0
      %v3257 = vadd.f32 %v3193, 1.0
      %v3258 = vadd.f32 %v3194, 1.0
      %v3259 = vadd.f32 %v3195, 1.0
      %v3260 = vadd.f32 %v3196, 1.0
      %v3261 = vadd.f32 %v3197, 1.0
      %v3262 = vadd.f32 %v3198, 1.0
      %v3263 = vadd.f32 %v3199, 1.0
      %v3264 = vadd.f32 %v3200, 1.0
      %v3265 = vadd.f32 %v3201, 1.0
      %v3266 = vadd.f32 %v3202, 1.0
      %v3267 = vadd.f32 %v3203, 1.0
      %v3268 = vadd.f32 %v3204, 1.0
      %v3269 = vadd.f32 %v3205, 1.0
      %v3270 = vadd.f32 %v3206, 1.0
      %v3271 = vadd.f32 %v3207, 1.0
      %v3272 = vadd.f32 %v3208, 1.0
      %v3273 = vadd.f32 %v3209, 1.0
      %v3274 = vadd.f32 %v3210, 1.0
      %v3275 = vadd.f32 %v3211, 1.0
      %v3276 = vadd.f32 %v3212, 1.0
      %v3277 = vadd.f32 %v3213, 1.0
      %v3278 = vadd.f32 %v3214, 1.0
      %v3279 = vadd.f32 %v3215, 1.0
      %v3280 = vadd.f32 %v3216, 1.0
      %v3281 = vadd.f32 %v3217, 1.0
      %v3282 = vadd.f32 %v3218, 1.0
      %v3283 = vadd.f32 %v3219, 1.0
      %v3284 = vadd.f32 %v3220, 1.0
      %v3285 = vadd.f32 %v3221, 1.0
      %v3286 = vadd.f32 %v3222, 1.0
      %v3287 = vadd.f32 %v3223, 1.0
      %v3288 = vadd.f32 %v3224, 1.0
      %v3289 = vadd.f32 %v3225, 1.0
      %v3290 = vadd.f32 %v3226, 1.0
      %v3291 = vadd.f32 %v3227, 1.0
      %v3292 = vadd.f32 %v3228, 1.0
      %v3293 = vadd.f32 %v3229, 1.0
      %v3294 = vadd.f32 %v3230, 1.0
      %v3295 = vadd.f32 %v3231, 1.0
      %v3296 = vadd.f32 %v3232, 1.0
      %v3297 = vadd.f32 %v3233, 1.0
      %v3298 = vadd.f32 %v3234, 1.0
      %v3299 = vadd.f32 %v3235, 1.0
      %v3300 = vadd.f32 %v3236, 1.0
      %v3301 = vadd.f32 %v3237, 1.0
      %v3302 = vadd.f32 %v3238, 1.0
      %v3303 = vadd.f32 %v3239, 1.0
      %v3304 = vmul.f32 %v3047, %v3240
      %v3305 = vmul.f32 %v3048, %v3241
      %v3306 = vmul.f32 %v3049, %v3242
      %v3307 = vmul.f32 %v3050, %v3243
      %v3308 = vmul.f32 %v3051, %v3244
      %v3309 = vmul.f32 %v3052, %v3245
      %v3310 = vmul.f32 %v3053, %v3246
      %v3311 = vmul.f32 %v3054, %v3247
      %v3312 = vmul.f32 %v3055, %v3248
      %v3313 = vmul.f32 %v3056, %v3249
      %v3314 = vmul.f32 %v3057, %v3250
      %v3315 = vmul.f32 %v3058, %v3251
      %v3316 = vmul.f32 %v3059, %v3252
      %v3317 = vmul.f32 %v3060, %v3253
      %v3318 = vmul.f32 %v3061, %v3254
      %v3319 = vmul.f32 %v3062, %v3255
      %v3320 = vmul.f32 %v3063, %v3256
      %v3321 = vmul.f32 %v3064, %v3257
      %v3322 = vmul.f32 %v3065, %v3258
      %v3323 = vmul.f32 %v3066, %v3259
      %v3324 = vmul.f32 %v3067, %v3260
      %v3325 = vmul.f32 %v3068, %v3261
      %v3326 = vmul.f32 %v3069, %v3262
      %v3327 = vmul.f32 %v3070, %v3263
      %v3328 = vmul.f32 %v3071, %v3264
      %v3329 = vmul.f32 %v3072, %v3265
      %v3330 = vmul.f32 %v3073, %v3266
      %v3331 = vmul.f32 %v3074, %v3267
      %v3332 = vmul.f32 %v3075, %v3268
      %v3333 = vmul.f32 %v3076, %v3269
      %v3334 = vmul.f32 %v3077, %v3270
      %v3335 = vmul.f32 %v3078, %v3271
      %v3336 = vmul.f32 %v3079, %v3272
      %v3337 = vmul.f32 %v3080, %v3273
      %v3338 = vmul.f32 %v3081, %v3274
      %v3339 = vmul.f32 %v3082, %v3275
      %v3340 = vmul.f32 %v3083, %v3276
      %v3341 = vmul.f32 %v3084, %v3277
      %v3342 = vmul.f32 %v3085, %v3278
      %v3343 = vmul.f32 %v3086, %v3279
      %v3344 = vmul.f32 %v3087, %v3280
      %v3345 = vmul.f32 %v3088, %v3281
      %v3346 = vmul.f32 %v3089, %v3282
      %v3347 = vmul.f32 %v3090, %v3283
      %v3348 = vmul.f32 %v3091, %v3284
      %v3349 = vmul.f32 %v3092, %v3285
      %v3350 = vmul.f32 %v3093, %v3286
      %v3351 = vmul.f32 %v3094, %v3287
      %v3352 = vmul.f32 %v3095, %v3288
      %v3353 = vmul.f32 %v3096, %v3289
      %v3354 = vmul.f32 %v3097, %v3290
      %v3355 = vmul.f32 %v3098, %v3291
      %v3356 = vmul.f32 %v3099, %v3292
      %v3357 = vmul.f32 %v3100, %v3293
      %v3358 = vmul.f32 %v3101, %v3294
      %v3359 = vmul.f32 %v3102, %v3295
      %v3360 = vmul.f32 %v3103, %v3296
      %v3361 = vmul.f32 %v3104, %v3297
      %v3362 = vmul.f32 %v3105, %v3298
      %v3363 = vmul.f32 %v3106, %v3299
      %v3364 = vmul.f32 %v3107, %v3300
      %v3365 = vmul.f32 %v3108, %v3301
      %v3366 = vmul.f32 %v3109, %v3302
      %v3367 = vmul.f32 %v3110, %v3303
      %v3368 = vpack.c.bf16 %v3308, %v3304
      %v3369 = vpack.c.bf16 %v3309, %v3305
      %v3370 = vpack.c.bf16 %v3310, %v3306
      %v3371 = vpack.c.bf16 %v3311, %v3307
      %v3372 = vpack.c.bf16 %v3316, %v3312
      %v3373 = vpack.c.bf16 %v3317, %v3313
      %v3374 = vpack.c.bf16 %v3318, %v3314
      %v3375 = vpack.c.bf16 %v3319, %v3315
      %v3376 = vpack.c.bf16 %v3324, %v3320
      %v3377 = vpack.c.bf16 %v3325, %v3321
      %v3378 = vpack.c.bf16 %v3326, %v3322
      %v3379 = vpack.c.bf16 %v3327, %v3323
      %v3380 = vpack.c.bf16 %v3332, %v3328
      %v3381 = vpack.c.bf16 %v3333, %v3329
      %v3382 = vpack.c.bf16 %v3334, %v3330
      %v3383 = vpack.c.bf16 %v3335, %v3331
      %v3384 = vpack.c.bf16 %v3340, %v3336
      %v3385 = vpack.c.bf16 %v3341, %v3337
      %v3386 = vpack.c.bf16 %v3342, %v3338
      %v3387 = vpack.c.bf16 %v3343, %v3339
      %v3388 = vpack.c.bf16 %v3348, %v3344
      %v3389 = vpack.c.bf16 %v3349, %v3345
      %v3390 = vpack.c.bf16 %v3350, %v3346
      %v3391 = vpack.c.bf16 %v3351, %v3347
      %v3392 = vpack.c.bf16 %v3356, %v3352
      %v3393 = vpack.c.bf16 %v3357, %v3353
      %v3394 = vpack.c.bf16 %v3358, %v3354
      %v3395 = vpack.c.bf16 %v3359, %v3355
      %v3396 = vpack.c.bf16 %v3364, %v3360
      %v3397 = vpack.c.bf16 %v3365, %v3361
      %v3398 = vpack.c.bf16 %v3366, %v3362
      %v3399 = vpack.c.bf16 %v3367, %v3363
      %v3400 = vld [vmem:[%s677] sm:$0xf]
      %v3401 = vld [vmem:[%s677 + $0x4] sm:$0xf]
      %v3402 = vld [vmem:[%s677 + $0x8] sm:$0xf]
      %v3403 = vld [vmem:[%s677 + $0xc] sm:$0xf]
      %v3404 = vld [vmem:[%s677 + $0x10] sm:$0xf]
      %v3405 = vld [vmem:[%s677 + $0x14] sm:$0xf]
      %v3406 = vld [vmem:[%s677 + $0x18] sm:$0xf]
      %v3407 = vld [vmem:[%s677 + $0x1c] sm:$0xf]
      %v3408 = vld [vmem:[%s677 + $0x20] sm:$0xf]
      %v3409 = vld [vmem:[%s677 + $0x24] sm:$0xf]
      %v3410 = vld [vmem:[%s677 + $0x28] sm:$0xf]
      %v3411 = vld [vmem:[%s677 + $0x2c] sm:$0xf]
      %v3412 = vld [vmem:[%s677 + $0x30] sm:$0xf]
      %v3413 = vld [vmem:[%s677 + $0x34] sm:$0xf]
      %v3414 = vld [vmem:[%s677 + $0x38] sm:$0xf]
      %v3415 = vld [vmem:[%s677 + $0x3c] sm:$0xf]
      %v3416 = vld [vmem:[%s677 + $0x40] sm:$0xf]
      %v3417 = vld [vmem:[%s677 + $0x44] sm:$0xf]
      %v3418 = vld [vmem:[%s677 + $0x48] sm:$0xf]
      %v3419 = vld [vmem:[%s677 + $0x4c] sm:$0xf]
      %v3420 = vld [vmem:[%s677 + $0x50] sm:$0xf]
      %v3421 = vld [vmem:[%s677 + $0x54] sm:$0xf]
      %v3422 = vld [vmem:[%s677 + $0x58] sm:$0xf]
      %v3423 = vld [vmem:[%s677 + $0x5c] sm:$0xf]
      %v3424 = vld [vmem:[%s677 + $0x60] sm:$0xf]
      %v3425 = vld [vmem:[%s677 + $0x64] sm:$0xf]
      %v3426 = vld [vmem:[%s677 + $0x68] sm:$0xf]
      %v3427 = vld [vmem:[%s677 + $0x6c] sm:$0xf]
      %v3428 = vld [vmem:[%s677 + $0x70] sm:$0xf]
      %v3429 = vld [vmem:[%s677 + $0x74] sm:$0xf]
      %v3430 = vld [vmem:[%s677 + $0x78] sm:$0xf]
      %v3431 = vld [vmem:[%s677 + $0x7c] sm:$0xf]
      %v3432 = vld [vmem:[%s677 + $0x80] sm:$0xf]
      %v3433 = vld [vmem:[%s677 + $0x84] sm:$0xf]
      %v3434 = vld [vmem:[%s677 + $0x88] sm:$0xf]
      %v3435 = vld [vmem:[%s677 + $0x8c] sm:$0xf]
      %v3436 = vld [vmem:[%s677 + $0x90] sm:$0xf]
      %v3437 = vld [vmem:[%s677 + $0x94] sm:$0xf]
      %v3438 = vld [vmem:[%s677 + $0x98] sm:$0xf]
      %v3439 = vld [vmem:[%s677 + $0x9c] sm:$0xf]
      %v3440 = vld [vmem:[%s677 + $0xa0] sm:$0xf]
      %v3441 = vld [vmem:[%s677 + $0xa4] sm:$0xf]
      %v3442 = vld [vmem:[%s677 + $0xa8] sm:$0xf]
      %v3443 = vld [vmem:[%s677 + $0xac] sm:$0xf]
      %v3444 = vld [vmem:[%s677 + $0xb0] sm:$0xf]
      %v3445 = vld [vmem:[%s677 + $0xb4] sm:$0xf]
      %v3446 = vld [vmem:[%s677 + $0xb8] sm:$0xf]
      %v3447 = vld [vmem:[%s677 + $0xbc] sm:$0xf]
      %v3448 = vld [vmem:[%s677 + $0xc0] sm:$0xf]
      %v3449 = vld [vmem:[%s677 + $0xc4] sm:$0xf]
      %v3450 = vld [vmem:[%s677 + $0xc8] sm:$0xf]
      %v3451 = vld [vmem:[%s677 + $0xcc] sm:$0xf]
      %v3452 = vld [vmem:[%s677 + $0xd0] sm:$0xf]
      %v3453 = vld [vmem:[%s677 + $0xd4] sm:$0xf]
      %v3454 = vld [vmem:[%s677 + $0xd8] sm:$0xf]
      %v3455 = vld [vmem:[%s677 + $0xdc] sm:$0xf]
      %v3456 = vld [vmem:[%s677 + $0xe0] sm:$0xf]
      %v3457 = vld [vmem:[%s677 + $0xe4] sm:$0xf]
      %v3458 = vld [vmem:[%s677 + $0xe8] sm:$0xf]
      %v3459 = vld [vmem:[%s677 + $0xec] sm:$0xf]
      %v3460 = vld [vmem:[%s677 + $0xf0] sm:$0xf]
      %v3461 = vld [vmem:[%s677 + $0xf4] sm:$0xf]
      %v3462 = vld [vmem:[%s677 + $0xf8] sm:$0xf]
      %v3463 = vld [vmem:[%s677 + $0xfc] sm:$0xf]
      %v3464 = vld [vmem:[%s680] sm:$0x1]
      %v3466 = vlaneseq
      %v3467 = vshrl.u32 %v3466, 7
      %v3468 = vsub.s32 0, %v3467
      %v3469 = vrot.slane %v3464, %v3468
      %v3535 = vunpack.c.l.b16 %v3400
      %v3536 = vunpack.c.l.b16 %v3401
      %v3537 = vunpack.c.l.b16 %v3402
      %v3538 = vunpack.c.l.b16 %v3403
      %v3539 = vunpack.c.l.b16 %v3404
      %v3540 = vunpack.c.l.b16 %v3405
      %v3541 = vunpack.c.l.b16 %v3406
      %v3542 = vunpack.c.l.b16 %v3407
      %v3543 = vunpack.c.l.b16 %v3408
      %v3544 = vunpack.c.l.b16 %v3409
      %v3545 = vunpack.c.l.b16 %v3410
      %v3546 = vunpack.c.l.b16 %v3411
      %v3547 = vunpack.c.l.b16 %v3412
      %v3548 = vunpack.c.l.b16 %v3413
      %v3549 = vunpack.c.l.b16 %v3414
      %v3550 = vunpack.c.l.b16 %v3415
      %v3551 = vunpack.c.l.b16 %v3416
      %v3552 = vunpack.c.l.b16 %v3417
      %v3553 = vunpack.c.l.b16 %v3418
      %v3554 = vunpack.c.l.b16 %v3419
      %v3555 = vunpack.c.l.b16 %v3420
      %v3556 = vunpack.c.l.b16 %v3421
      %v3557 = vunpack.c.l.b16 %v3422
      %v3558 = vunpack.c.l.b16 %v3423
      %v3559 = vunpack.c.l.b16 %v3424
      %v3560 = vunpack.c.l.b16 %v3425
      %v3561 = vunpack.c.l.b16 %v3426
      %v3562 = vunpack.c.l.b16 %v3427
      %v3563 = vunpack.c.l.b16 %v3428
      %v3564 = vunpack.c.l.b16 %v3429
      %v3565 = vunpack.c.l.b16 %v3430
      %v3566 = vunpack.c.l.b16 %v3431
      %v3567 = vunpack.c.l.b16 %v3432
      %v3568 = vunpack.c.l.b16 %v3433
      %v3569 = vunpack.c.l.b16 %v3434
      %v3570 = vunpack.c.l.b16 %v3435
      %v3571 = vunpack.c.l.b16 %v3436
      %v3572 = vunpack.c.l.b16 %v3437
      %v3573 = vunpack.c.l.b16 %v3438
      %v3574 = vunpack.c.l.b16 %v3439
      %v3575 = vunpack.c.l.b16 %v3440
      %v3576 = vunpack.c.l.b16 %v3441
      %v3577 = vunpack.c.l.b16 %v3442
      %v3578 = vunpack.c.l.b16 %v3443
      %v3579 = vunpack.c.l.b16 %v3444
      %v3580 = vunpack.c.l.b16 %v3445
      %v3581 = vunpack.c.l.b16 %v3446
      %v3582 = vunpack.c.l.b16 %v3447
      %v3583 = vunpack.c.l.b16 %v3448
      %v3584 = vunpack.c.l.b16 %v3449
      %v3585 = vunpack.c.l.b16 %v3450
      %v3586 = vunpack.c.l.b16 %v3451
      %v3587 = vunpack.c.l.b16 %v3452
      %v3588 = vunpack.c.l.b16 %v3453
      %v3589 = vunpack.c.l.b16 %v3454
      %v3590 = vunpack.c.l.b16 %v3455
      %v3591 = vunpack.c.l.b16 %v3456
      %v3592 = vunpack.c.l.b16 %v3457
      %v3593 = vunpack.c.l.b16 %v3458
      %v3594 = vunpack.c.l.b16 %v3459
      %v3595 = vunpack.c.l.b16 %v3460
      %v3596 = vunpack.c.l.b16 %v3461
      %v3597 = vunpack.c.l.b16 %v3462
      %v3598 = vunpack.c.l.b16 %v3463
      %v3599 = vpack.c.b16 %v3536, %v3535
      %v3600 = vpack.c.b16 %v3538, %v3537
      %v3601 = vpack.c.b16 %v3540, %v3539
      %v3602 = vpack.c.b16 %v3542, %v3541
      %v3603 = vpack.c.b16 %v3544, %v3543
      %v3604 = vpack.c.b16 %v3546, %v3545
      %v3605 = vpack.c.b16 %v3548, %v3547
      %v3606 = vpack.c.b16 %v3550, %v3549
      %v3607 = vpack.c.b16 %v3552, %v3551
      %v3608 = vpack.c.b16 %v3554, %v3553
      %v3609 = vpack.c.b16 %v3556, %v3555
      %v3610 = vpack.c.b16 %v3558, %v3557
      %v3611 = vpack.c.b16 %v3560, %v3559
      %v3612 = vpack.c.b16 %v3562, %v3561
      %v3613 = vpack.c.b16 %v3564, %v3563
      %v3614 = vpack.c.b16 %v3566, %v3565
      %v3615 = vpack.c.b16 %v3568, %v3567
      %v3616 = vpack.c.b16 %v3570, %v3569
      %v3617 = vpack.c.b16 %v3572, %v3571
      %v3618 = vpack.c.b16 %v3574, %v3573
      %v3619 = vpack.c.b16 %v3576, %v3575
      %v3620 = vpack.c.b16 %v3578, %v3577
      %v3621 = vpack.c.b16 %v3580, %v3579
      %v3622 = vpack.c.b16 %v3582, %v3581
      %v3623 = vpack.c.b16 %v3584, %v3583
      %v3624 = vpack.c.b16 %v3586, %v3585
      %v3625 = vpack.c.b16 %v3588, %v3587
      %v3626 = vpack.c.b16 %v3590, %v3589
      %v3627 = vpack.c.b16 %v3592, %v3591
      %v3628 = vpack.c.b16 %v3594, %v3593
      %v3629 = vpack.c.b16 %v3596, %v3595
      %v3630 = vpack.c.b16 %v3598, %v3597
      %3663 = vmatprep.subr.bf16.mxu0 0
      %3664 = vmatpush1.bf16.msra.mxu0 %v3606
      %3665 = vmatprep.subr.bf16.mxu0 0
      %3666 = vmatpush1.bf16.msra.mxu0 %v3605
      %3667 = vmatprep.subr.bf16.mxu0 0
      %3668 = vmatpush1.bf16.msra.mxu0 %v3604
      %3669 = vmatprep.subr.bf16.mxu0 0
      %3670 = vmatpush1.bf16.msra.mxu0 %v3603
      %3671 = vmatprep.subr.bf16.mxu0 0
      %3672 = vmatpush1.bf16.msra.mxu0 %v3602
      %3673 = vmatprep.subr.bf16.mxu0 0
      %3674 = vmatpush1.bf16.msra.mxu0 %v3601
      %3675 = vmatprep.subr.bf16.mxu0 0
      %3676 = vmatpush1.bf16.msra.mxu0 %v3600
      %3677 = vmatprep.subr.bf16.mxu0 0
      %3678 = vmatpush1.bf16.msra.mxu0 %v3599
      %3679 = vmatprep.subr.bf16.mxu0 0
      %3680 = vmatpush2.bf16.msra.mxu0 %v3614
      %3681 = vmatprep.subr.bf16.mxu0 0
      %3682 = vmatpush2.bf16.msra.mxu0 %v3613
      %3683 = vmatprep.subr.bf16.mxu0 0
      %3684 = vmatpush2.bf16.msra.mxu0 %v3612
      %3685 = vmatprep.subr.bf16.mxu0 0
      %3686 = vmatpush2.bf16.msra.mxu0 %v3611
      %3687 = vmatprep.subr.bf16.mxu0 0
      %3688 = vmatpush2.bf16.msra.mxu0 %v3610
      %3689 = vmatprep.subr.bf16.mxu0 0
      %3690 = vmatpush2.bf16.msra.mxu0 %v3609
      %3691 = vmatprep.subr.bf16.mxu0 0
      %3692 = vmatpush2.bf16.msra.mxu0 %v3608
      %3693 = vmatprep.subr.bf16.mxu0 0
      %3694 = vmatpush2.bf16.msra.mxu0 %v3607
      %3695 = vmatprep.mubr.bf16.mxu0 %v3369
      %3696 = vmatmul.mubr.bf16.gmra.mxu0 %v3368
      %v3697 = vpop.f32.mrf.mxu0
      %v3698 = vadd.f32 %v3469, %v3697
      %v3699 = vpop.f32.mrf.mxu0
      %v3700 = vpop.f32.mrf.mxu0
      %v3701 = vadd.f32 %v3469, %v3700
      %v3702 = vpop.f32.mrf.mxu0
      %3703 = vmatprep.mubr.bf16.mxu0 %v3373
      %3704 = vmatmul.mubr.bf16.gmra.mxu0 %v3372
      %v3705 = vpop.f32.mrf.mxu0
      %v3706 = vadd.f32 %v3469, %v3705
      %v3707 = vpop.f32.mrf.mxu0
      %v3708 = vpop.f32.mrf.mxu0
      %v3709 = vadd.f32 %v3469, %v3708
      %v3710 = vpop.f32.mrf.mxu0
      %3711 = vmatprep.mubr.bf16.mxu0 %v3377
      %3712 = vmatmul.mubr.bf16.gmra.mxu0 %v3376
      %v3713 = vpop.f32.mrf.mxu0
      %v3714 = vadd.f32 %v3469, %v3713
      %v3715 = vpop.f32.mrf.mxu0
      %v3716 = vpop.f32.mrf.mxu0
      %v3717 = vadd.f32 %v3469, %v3716
      %v3718 = vpop.f32.mrf.mxu0
      %3719 = vmatprep.mubr.bf16.mxu0 %v3381
      %3720 = vmatmul.mubr.bf16.gmra.mxu0 %v3380
      %v3721 = vpop.f32.mrf.mxu0
      %v3722 = vadd.f32 %v3469, %v3721
      %v3723 = vpop.f32.mrf.mxu0
      %v3724 = vpop.f32.mrf.mxu0
      %v3725 = vadd.f32 %v3469, %v3724
      %v3726 = vpop.f32.mrf.mxu0
      %3727 = vmatprep.mubr.bf16.mxu0 %v3385
      %3728 = vmatmul.mubr.bf16.gmra.mxu0 %v3384
      %v3729 = vpop.f32.mrf.mxu0
      %v3730 = vadd.f32 %v3469, %v3729
      %v3731 = vpop.f32.mrf.mxu0
      %v3732 = vpop.f32.mrf.mxu0
      %v3733 = vadd.f32 %v3469, %v3732
      %v3734 = vpop.f32.mrf.mxu0
      %3735 = vmatprep.mubr.bf16.mxu0 %v3389
      %3736 = vmatmul.mubr.bf16.gmra.mxu0 %v3388
      %v3737 = vpop.f32.mrf.mxu0
      %v3738 = vadd.f32 %v3469, %v3737
      %v3739 = vpop.f32.mrf.mxu0
      %v3740 = vpop.f32.mrf.mxu0
      %v3741 = vadd.f32 %v3469, %v3740
      %v3742 = vpop.f32.mrf.mxu0
      %3743 = vmatprep.mubr.bf16.mxu0 %v3393
      %3744 = vmatmul.mubr.bf16.gmra.mxu0 %v3392
      %v3745 = vpop.f32.mrf.mxu0
      %v3746 = vadd.f32 %v3469, %v3745
      %v3747 = vpop.f32.mrf.mxu0
      %v3748 = vpop.f32.mrf.mxu0
      %v3749 = vadd.f32 %v3469, %v3748
      %v3750 = vpop.f32.mrf.mxu0
      %3751 = vmatprep.mubr.bf16.mxu0 %v3397
      %3752 = vmatmul.mubr.bf16.gmra.mxu0 %v3396
      %v3753 = vpop.f32.mrf.mxu0
      %v3754 = vadd.f32 %v3469, %v3753
      %v3755 = vpop.f32.mrf.mxu0
      %v3756 = vpop.f32.mrf.mxu0
      %v3757 = vadd.f32 %v3469, %v3756
      %v3758 = vpop.f32.mrf.mxu0
      %3759 = vdwg.mxu0
      %3760 = vmatprep.subr.bf16.mxu0 0
      %3761 = vmatpush1.bf16.msra.mxu0 %v3622
      %3762 = vmatprep.subr.bf16.mxu0 0
      %3763 = vmatpush1.bf16.msra.mxu0 %v3621
      %3764 = vmatprep.subr.bf16.mxu0 0
      %3765 = vmatpush1.bf16.msra.mxu0 %v3620
      %3766 = vmatprep.subr.bf16.mxu0 0
      %3767 = vmatpush1.bf16.msra.mxu0 %v3619
      %3768 = vmatprep.subr.bf16.mxu0 0
      %3769 = vmatpush1.bf16.msra.mxu0 %v3618
      %3770 = vmatprep.subr.bf16.mxu0 0
      %3771 = vmatpush1.bf16.msra.mxu0 %v3617
      %3772 = vmatprep.subr.bf16.mxu0 0
      %3773 = vmatpush1.bf16.msra.mxu0 %v3616
      %3774 = vmatprep.subr.bf16.mxu0 0
      %3775 = vmatpush1.bf16.msra.mxu0 %v3615
      %3776 = vmatprep.subr.bf16.mxu0 0
      %3777 = vmatpush2.bf16.msra.mxu0 %v3630
      %3778 = vmatprep.subr.bf16.mxu0 0
      %3779 = vmatpush2.bf16.msra.mxu0 %v3629
      %3780 = vmatprep.subr.bf16.mxu0 0
      %3781 = vmatpush2.bf16.msra.mxu0 %v3628
      %3782 = vmatprep.subr.bf16.mxu0 0
      %3783 = vmatpush2.bf16.msra.mxu0 %v3627
      %3784 = vmatprep.subr.bf16.mxu0 0
      %3785 = vmatpush2.bf16.msra.mxu0 %v3626
      %3786 = vmatprep.subr.bf16.mxu0 0
      %3787 = vmatpush2.bf16.msra.mxu0 %v3625
      %3788 = vmatprep.subr.bf16.mxu0 0
      %3789 = vmatpush2.bf16.msra.mxu0 %v3624
      %3790 = vmatprep.subr.bf16.mxu0 0
      %3791 = vmatpush2.bf16.msra.mxu0 %v3623
      %3792 = vmatprep.mubr.bf16.mxu0 %v3371
      %3793 = vmatmul.mubr.bf16.gmra.mxu0 %v3370
      %v3794 = vpop.f32.mrf.mxu0
      %v3795 = vadd.f32 %v3698, %v3794
      %v3796 = vpop.f32.mrf.mxu0
      %v3797 = vpop.f32.mrf.mxu0
      %v3798 = vadd.f32 %v3701, %v3797
      %v3799 = vpop.f32.mrf.mxu0
      %3800 = vmatprep.mubr.bf16.mxu0 %v3375
      %3801 = vmatmul.mubr.bf16.gmra.mxu0 %v3374
      %v3802 = vpop.f32.mrf.mxu0
      %v3803 = vadd.f32 %v3706, %v3802
      %v3804 = vpop.f32.mrf.mxu0
      %v3805 = vpop.f32.mrf.mxu0
      %v3806 = vadd.f32 %v3709, %v3805
      %v3807 = vpop.f32.mrf.mxu0
      %3808 = vmatprep.mubr.bf16.mxu0 %v3379
      %3809 = vmatmul.mubr.bf16.gmra.mxu0 %v3378
      %v3810 = vpop.f32.mrf.mxu0
      %v3811 = vadd.f32 %v3714, %v3810
      %v3812 = vpop.f32.mrf.mxu0
      %v3813 = vpop.f32.mrf.mxu0
      %v3814 = vadd.f32 %v3717, %v3813
      %v3815 = vpop.f32.mrf.mxu0
      %3816 = vmatprep.mubr.bf16.mxu0 %v3383
      %3817 = vmatmul.mubr.bf16.gmra.mxu0 %v3382
      %v3818 = vpop.f32.mrf.mxu0
      %v3819 = vadd.f32 %v3722, %v3818
      %v3820 = vpop.f32.mrf.mxu0
      %v3821 = vpop.f32.mrf.mxu0
      %v3822 = vadd.f32 %v3725, %v3821
      %v3823 = vpop.f32.mrf.mxu0
      %3824 = vmatprep.mubr.bf16.mxu0 %v3387
      %3825 = vmatmul.mubr.bf16.gmra.mxu0 %v3386
      %v3826 = vpop.f32.mrf.mxu0
      %v3827 = vadd.f32 %v3730, %v3826
      %v3828 = vpop.f32.mrf.mxu0
      %v3829 = vpop.f32.mrf.mxu0
      %v3830 = vadd.f32 %v3733, %v3829
      %v3831 = vpop.f32.mrf.mxu0
      %3832 = vmatprep.mubr.bf16.mxu0 %v3391
      %3833 = vmatmul.mubr.bf16.gmra.mxu0 %v3390
      %v3834 = vpop.f32.mrf.mxu0
      %v3835 = vadd.f32 %v3738, %v3834
      %v3836 = vpop.f32.mrf.mxu0
      %v3837 = vpop.f32.mrf.mxu0
      %v3838 = vadd.f32 %v3741, %v3837
      %v3839 = vpop.f32.mrf.mxu0
      %3840 = vmatprep.mubr.bf16.mxu0 %v3395
      %3841 = vmatmul.mubr.bf16.gmra.mxu0 %v3394
      %v3842 = vpop.f32.mrf.mxu0
      %v3843 = vadd.f32 %v3746, %v3842
      %v3844 = vpop.f32.mrf.mxu0
      %v3845 = vpop.f32.mrf.mxu0
      %v3846 = vadd.f32 %v3749, %v3845
      %v3847 = vpop.f32.mrf.mxu0
      %3848 = vmatprep.mubr.bf16.mxu0 %v3399
      %3849 = vmatmul.mubr.bf16.gmra.mxu0 %v3398
      %v3850 = vpop.f32.mrf.mxu0
      %v3851 = vadd.f32 %v3754, %v3850
      %v3852 = vpop.f32.mrf.mxu0
      %v3853 = vpop.f32.mrf.mxu0
      %v3854 = vadd.f32 %v3757, %v3853
      %v3855 = vpop.f32.mrf.mxu0
      %3856 = vdwg.mxu0
      %v3857 = vadd.f32 %v3795, %v2583
      %v3858 = vadd.f32 %v3798, %v2584
      %v3859 = vadd.f32 %v3803, %v2585
      %v3860 = vadd.f32 %v3806, %v2586
      %v3861 = vadd.f32 %v3811, %v2587
      %v3862 = vadd.f32 %v3814, %v2588
      %v3863 = vadd.f32 %v3819, %v2589
      %v3864 = vadd.f32 %v3822, %v2590
      %v3865 = vadd.f32 %v3827, %v2591
      %v3866 = vadd.f32 %v3830, %v2592
      %v3867 = vadd.f32 %v3835, %v2593
      %v3868 = vadd.f32 %v3838, %v2594
      %v3869 = vadd.f32 %v3843, %v2595
      %v3870 = vadd.f32 %v3846, %v2596
      %v3871 = vadd.f32 %v3851, %v2597
      %v3872 = vadd.f32 %v3854, %v2598
      %v3873 = vld [vmem:[%s683] sm:$0x1]
      %v3874 = vld [vmem:[%s686] sm:$0x1]
      %3875 = vadd.xlane.f32.xlu0 %v3857
      %v3876 = vpop.xlane.xlu0 %3875
      %3877 = vadd.xlane.f32.xlu0 %v3858
      %v3878 = vpop.xlane.xlu0 %3877
      %3879 = vadd.xlane.f32.xlu0 %v3859
      %v3880 = vpop.xlane.xlu0 %3879
      %3881 = vadd.xlane.f32.xlu0 %v3860
      %v3882 = vpop.xlane.xlu0 %3881
      %3883 = vadd.xlane.f32.xlu0 %v3861
      %v3884 = vpop.xlane.xlu0 %3883
      %3885 = vadd.xlane.f32.xlu0 %v3862
      %v3886 = vpop.xlane.xlu0 %3885
      %3887 = vadd.xlane.f32.xlu0 %v3863
      %v3888 = vpop.xlane.xlu0 %3887
      %3889 = vadd.xlane.f32.xlu0 %v3864
      %v3890 = vpop.xlane.xlu0 %3889
      %3891 = vadd.xlane.f32.xlu0 %v3865
      %v3892 = vpop.xlane.xlu0 %3891
      %3893 = vadd.xlane.f32.xlu0 %v3866
      %v3894 = vpop.xlane.xlu0 %3893
      %3895 = vadd.xlane.f32.xlu0 %v3867
      %v3896 = vpop.xlane.xlu0 %3895
      %3897 = vadd.xlane.f32.xlu0 %v3868
      %v3898 = vpop.xlane.xlu0 %3897
      %3899 = vadd.xlane.f32.xlu0 %v3869
      %v3900 = vpop.xlane.xlu0 %3899
      %3901 = vadd.xlane.f32.xlu0 %v3870
      %v3902 = vpop.xlane.xlu0 %3901
      %3903 = vadd.xlane.f32.xlu0 %v3871
      %v3904 = vpop.xlane.xlu0 %3903
      %3905 = vadd.xlane.f32.xlu0 %v3872
      %v3906 = vpop.xlane.xlu0 %3905
      %v3907 = vmul.f32 %v3876, %v2410
      %v3908 = vmul.f32 %v3878, %v2410
      %v3909 = vmul.f32 %v3880, %v2410
      %v3910 = vmul.f32 %v3882, %v2410
      %v3911 = vmul.f32 %v3884, %v2410
      %v3912 = vmul.f32 %v3886, %v2410
      %v3913 = vmul.f32 %v3888, %v2410
      %v3914 = vmul.f32 %v3890, %v2410
      %v3915 = vmul.f32 %v3892, %v2410
      %v3916 = vmul.f32 %v3894, %v2410
      %v3917 = vmul.f32 %v3896, %v2410
      %v3918 = vmul.f32 %v3898, %v2410
      %v3919 = vmul.f32 %v3900, %v2410
      %v3920 = vmul.f32 %v3902, %v2410
      %v3921 = vmul.f32 %v3904, %v2410
      %v3922 = vmul.f32 %v3906, %v2410
      %v3923 = vsub.f32 %v3857, %v3907
      %v3924 = vsub.f32 %v3858, %v3908
      %v3925 = vsub.f32 %v3859, %v3909
      %v3926 = vsub.f32 %v3860, %v3910
      %v3927 = vsub.f32 %v3861, %v3911
      %v3928 = vsub.f32 %v3862, %v3912
      %v3929 = vsub.f32 %v3863, %v3913
      %v3930 = vsub.f32 %v3864, %v3914
      %v3931 = vsub.f32 %v3865, %v3915
      %v3932 = vsub.f32 %v3866, %v3916
      %v3933 = vsub.f32 %v3867, %v3917
      %v3934 = vsub.f32 %v3868, %v3918
      %v3935 = vsub.f32 %v3869, %v3919
      %v3936 = vsub.f32 %v3870, %v3920
      %v3937 = vsub.f32 %v3871, %v3921
      %v3938 = vsub.f32 %v3872, %v3922
      %v3939 = vmul.f32 %v3923, %v3923
      %v3940 = vmul.f32 %v3924, %v3924
      %v3941 = vmul.f32 %v3925, %v3925
      %v3942 = vmul.f32 %v3926, %v3926
      %v3943 = vmul.f32 %v3927, %v3927
      %v3944 = vmul.f32 %v3928, %v3928
      %v3945 = vmul.f32 %v3929, %v3929
      %v3946 = vmul.f32 %v3930, %v3930
      %v3947 = vmul.f32 %v3931, %v3931
      %v3948 = vmul.f32 %v3932, %v3932
      %v3949 = vmul.f32 %v3933, %v3933
      %v3950 = vmul.f32 %v3934, %v3934
      %v3951 = vmul.f32 %v3935, %v3935
      %v3952 = vmul.f32 %v3936, %v3936
      %v3953 = vmul.f32 %v3937, %v3937
      %v3954 = vmul.f32 %v3938, %v3938
      %3955 = vadd.xlane.f32.xlu0 %v3939
      %v3956 = vpop.xlane.xlu0 %3955
      %3957 = vadd.xlane.f32.xlu0 %v3940
      %v3958 = vpop.xlane.xlu0 %3957
      %3959 = vadd.xlane.f32.xlu0 %v3941
      %v3960 = vpop.xlane.xlu0 %3959
      %3961 = vadd.xlane.f32.xlu0 %v3942
      %v3962 = vpop.xlane.xlu0 %3961
      %3963 = vadd.xlane.f32.xlu0 %v3943
      %v3964 = vpop.xlane.xlu0 %3963
      %3965 = vadd.xlane.f32.xlu0 %v3944
      %v3966 = vpop.xlane.xlu0 %3965
      %3967 = vadd.xlane.f32.xlu0 %v3945
      %v3968 = vpop.xlane.xlu0 %3967
      %3969 = vadd.xlane.f32.xlu0 %v3946
      %v3970 = vpop.xlane.xlu0 %3969
      %3971 = vadd.xlane.f32.xlu0 %v3947
      %v3972 = vpop.xlane.xlu0 %3971
      %3973 = vadd.xlane.f32.xlu0 %v3948
      %v3974 = vpop.xlane.xlu0 %3973
      %3975 = vadd.xlane.f32.xlu0 %v3949
      %v3976 = vpop.xlane.xlu0 %3975
      %3977 = vadd.xlane.f32.xlu0 %v3950
      %v3978 = vpop.xlane.xlu0 %3977
      %3979 = vadd.xlane.f32.xlu0 %v3951
      %v3980 = vpop.xlane.xlu0 %3979
      %3981 = vadd.xlane.f32.xlu0 %v3952
      %v3982 = vpop.xlane.xlu0 %3981
      %3983 = vadd.xlane.f32.xlu0 %v3953
      %v3984 = vpop.xlane.xlu0 %3983
      %3985 = vadd.xlane.f32.xlu0 %v3954
      %v3986 = vpop.xlane.xlu0 %3985
      %v3987 = vmul.f32 %v3956, %v2410
      %v3988 = vmul.f32 %v3958, %v2410
      %v3989 = vmul.f32 %v3960, %v2410
      %v3990 = vmul.f32 %v3962, %v2410
      %v3991 = vmul.f32 %v3964, %v2410
      %v3992 = vmul.f32 %v3966, %v2410
      %v3993 = vmul.f32 %v3968, %v2410
      %v3994 = vmul.f32 %v3970, %v2410
      %v3995 = vmul.f32 %v3972, %v2410
      %v3996 = vmul.f32 %v3974, %v2410
      %v3997 = vmul.f32 %v3976, %v2410
      %v3998 = vmul.f32 %v3978, %v2410
      %v3999 = vmul.f32 %v3980, %v2410
      %v4000 = vmul.f32 %v3982, %v2410
      %v4001 = vmul.f32 %v3984, %v2410
      %v4002 = vmul.f32 %v3986, %v2410
      %v4003 = vadd.f32 %v3987, 1e-12
      %v4004 = vadd.f32 %v3988, 1e-12
      %v4005 = vadd.f32 %v3989, 1e-12
      %v4006 = vadd.f32 %v3990, 1e-12
      %v4007 = vadd.f32 %v3991, 1e-12
      %v4008 = vadd.f32 %v3992, 1e-12
      %v4009 = vadd.f32 %v3993, 1e-12
      %v4010 = vadd.f32 %v3994, 1e-12
      %v4011 = vadd.f32 %v3995, 1e-12
      %v4012 = vadd.f32 %v3996, 1e-12
      %v4013 = vadd.f32 %v3997, 1e-12
      %v4014 = vadd.f32 %v3998, 1e-12
      %v4015 = vadd.f32 %v3999, 1e-12
      %v4016 = vadd.f32 %v4000, 1e-12
      %v4017 = vadd.f32 %v4001, 1e-12
      %v4018 = vadd.f32 %v4002, 1e-12
      %v4019 = vrsqrt.pop %v4003
      %v4020 = vrsqrt.pop %v4004
      %v4021 = vrsqrt.pop %v4005
      %v4022 = vrsqrt.pop %v4006
      %v4023 = vrsqrt.pop %v4007
      %v4024 = vrsqrt.pop %v4008
      %v4025 = vrsqrt.pop %v4009
      %v4026 = vrsqrt.pop %v4010
      %v4027 = vrsqrt.pop %v4011
      %v4028 = vrsqrt.pop %v4012
      %v4029 = vrsqrt.pop %v4013
      %v4030 = vrsqrt.pop %v4014
      %v4031 = vrsqrt.pop %v4015
      %v4032 = vrsqrt.pop %v4016
      %v4033 = vrsqrt.pop %v4017
      %v4034 = vrsqrt.pop %v4018
      %v4035 = vmul.f32 %v3923, %v4019
      %v4036 = vmul.f32 %v3924, %v4020
      %v4037 = vmul.f32 %v3925, %v4021
      %v4038 = vmul.f32 %v3926, %v4022
      %v4039 = vmul.f32 %v3927, %v4023
      %v4040 = vmul.f32 %v3928, %v4024
      %v4041 = vmul.f32 %v3929, %v4025
      %v4042 = vmul.f32 %v3930, %v4026
      %v4043 = vmul.f32 %v3931, %v4027
      %v4044 = vmul.f32 %v3932, %v4028
      %v4045 = vmul.f32 %v3933, %v4029
      %v4046 = vmul.f32 %v3934, %v4030
      %v4047 = vmul.f32 %v3935, %v4031
      %v4048 = vmul.f32 %v3936, %v4032
      %v4049 = vmul.f32 %v3937, %v4033
      %v4050 = vmul.f32 %v3938, %v4034
      %v4052 = vlaneseq
      %v4053 = vshrl.u32 %v4052, 7
      %v4054 = vsub.s32 0, %v4053
      %v4055 = vrot.slane %v3873, %v4054
      %v4057 = vmul.f32 %v4035, %v4055
      %v4058 = vmul.f32 %v4036, %v4055
      %v4059 = vmul.f32 %v4037, %v4055
      %v4060 = vmul.f32 %v4038, %v4055
      %v4061 = vmul.f32 %v4039, %v4055
      %v4062 = vmul.f32 %v4040, %v4055
      %v4063 = vmul.f32 %v4041, %v4055
      %v4064 = vmul.f32 %v4042, %v4055
      %v4065 = vmul.f32 %v4043, %v4055
      %v4066 = vmul.f32 %v4044, %v4055
      %v4067 = vmul.f32 %v4045, %v4055
      %v4068 = vmul.f32 %v4046, %v4055
      %v4069 = vmul.f32 %v4047, %v4055
      %v4070 = vmul.f32 %v4048, %v4055
      %v4071 = vmul.f32 %v4049, %v4055
      %v4072 = vmul.f32 %v4050, %v4055
      %v4074 = vlaneseq
      %v4075 = vshrl.u32 %v4074, 7
      %v4076 = vsub.s32 0, %v4075
      %v4077 = vrot.slane %v3874, %v4076
      %v4079 = vadd.f32 %v4057, %v4077
      %v4080 = vadd.f32 %v4058, %v4077
      %v4081 = vadd.f32 %v4059, %v4077
      %v4082 = vadd.f32 %v4060, %v4077
      %v4083 = vadd.f32 %v4061, %v4077
      %v4084 = vadd.f32 %v4062, %v4077
      %v4085 = vadd.f32 %v4063, %v4077
      %v4086 = vadd.f32 %v4064, %v4077
      %v4087 = vadd.f32 %v4065, %v4077
      %v4088 = vadd.f32 %v4066, %v4077
      %v4089 = vadd.f32 %v4067, %v4077
      %v4090 = vadd.f32 %v4068, %v4077
      %v4091 = vadd.f32 %v4069, %v4077
      %v4092 = vadd.f32 %v4070, %v4077
      %v4093 = vadd.f32 %v4071, %v4077
      %v4094 = vadd.f32 %v4072, %v4077
      %4095 = vst [vmem:[#allocation2] sm:$0xff] %v4079
      %4096 = vst [vmem:[#allocation2 + $0x8] sm:$0xff] %v4080
      %4097 = vst [vmem:[#allocation2 + $0x10] sm:$0xff] %v4081
      %4098 = vst [vmem:[#allocation2 + $0x18] sm:$0xff] %v4082
      %4099 = vst [vmem:[#allocation2 + $0x20] sm:$0xff] %v4083
      %4100 = vst [vmem:[#allocation2 + $0x28] sm:$0xff] %v4084
      %4101 = vst [vmem:[#allocation2 + $0x30] sm:$0xff] %v4085
      %4102 = vst [vmem:[#allocation2 + $0x38] sm:$0xff] %v4086
      %4103 = vst [vmem:[#allocation2 + $0x40] sm:$0xff] %v4087
      %4104 = vst [vmem:[#allocation2 + $0x48] sm:$0xff] %v4088
      %4105 = vst [vmem:[#allocation2 + $0x50] sm:$0xff] %v4089
      %4106 = vst [vmem:[#allocation2 + $0x58] sm:$0xff] %v4090
      %4107 = vst [vmem:[#allocation2 + $0x60] sm:$0xff] %v4091
      %4108 = vst [vmem:[#allocation2 + $0x68] sm:$0xff] %v4092
      %4109 = vst [vmem:[#allocation2 + $0x70] sm:$0xff] %v4093
      %4110 = vst [vmem:[#allocation2 + $0x78] sm:$0xff] %v4094
      %p4111 = scmp.eq.s32.totalorder %s30, 1
      // Predicated region
      $region81: #{forward_huffpost.4} parent=75 // pred_check
        %p4112 = pneg %p4111
      $region82: #{forward_huffpost.4} parent=75 // pred_check_branch
        %4114 = sbr.rel (%p4112) target = $region84
      $region83: #{forward_huffpost.4} parent=75 // pred_region
        %4115 = vst [vmem:[%s691] sm:$0xff] %v4079
        %4116 = vst [vmem:[%s691 + $0x8] sm:$0xff] %v4080
        %4117 = vst [vmem:[%s691 + $0x10] sm:$0xff] %v4081
        %4118 = vst [vmem:[%s691 + $0x18] sm:$0xff] %v4082
        %4119 = vst [vmem:[%s691 + $0x20] sm:$0xff] %v4083
        %4120 = vst [vmem:[%s691 + $0x28] sm:$0xff] %v4084
        %4121 = vst [vmem:[%s691 + $0x30] sm:$0xff] %v4085
        %4122 = vst [vmem:[%s691 + $0x38] sm:$0xff] %v4086
        %4123 = vst [vmem:[%s691 + $0x40] sm:$0xff] %v4087
        %4124 = vst [vmem:[%s691 + $0x48] sm:$0xff] %v4088
        %4125 = vst [vmem:[%s691 + $0x50] sm:$0xff] %v4089
        %4126 = vst [vmem:[%s691 + $0x58] sm:$0xff] %v4090
        %4127 = vst [vmem:[%s691 + $0x60] sm:$0xff] %v4091
        %4128 = vst [vmem:[%s691 + $0x68] sm:$0xff] %v4092
        %4129 = vst [vmem:[%s691 + $0x70] sm:$0xff] %v4093
        %4130 = vst [vmem:[%s691 + $0x78] sm:$0xff] %v4094
      $region84: #{forward_huffpost.4} parent=75 // pred_fallthru
        _
      %p4131 = scmp.lt.s32.totalorder %s29, 1
      %s4132 = scalar_select %p4131, %s29, 1
      %s4133 = smul.addr %s4132, 16
      %s4134 = smul.addr %s4133, 8
      %s4135 = scalar_lea.vmem %s14, %s4134
      // Predicated region
      $region85: #{forward_huffpost.4} parent=75 // pred_check
        %p4136 = pneg %p419
      $region86: #{forward_huffpost.4} parent=75 // pred_check_branch
        %4138 = sbr.rel (%p4136) target = $region88
      $region87: #{forward_huffpost.4} parent=75 // pred_region
        _
      $region88: #{forward_huffpost.4} parent=75 // pred_fallthru
        _
    $region76: #{forward_huffpost.4} parent=5 // pred_fallthru
      _
    %p4139 = scmp.le.s32.totalorder 2, %s20
    // Predicated region
    $region89: #{forward_huffpost.4} parent=5 // pred_check
      %p4140 = pneg %p4139
    $region90: #{forward_huffpost.4} parent=5 // pred_check_branch
      %4142 = sbr.rel (%p4140) target = $region92
    $region91: #{forward_huffpost.4} parent=5 // pred_region
      %s4143 = ssub.s32 %s20, 2
      // Predicated region
      $region93: #{forward_huffpost.4} parent=91 // pred_check
        %p4144 = pneg %p425
      $region94: #{forward_huffpost.4} parent=91 // pred_check_branch
        %4146 = sbr.rel (%p4144) target = $region96
      $region95: #{forward_huffpost.4} parent=91 // pred_region
        %p4147 = scmp.lt.s32.totalorder %s31, 1
        %s4148 = scalar_select %p4147, %s31, 1
        %s4149 = smul.addr %s4148, 16
        %s4150 = smul.addr %s4149, 8
        %s4151 = scalar_lea.vmem %s14, %s4150
      $region96: #{forward_huffpost.4} parent=91 // pred_fallthru
        _
    $region92: #{forward_huffpost.4} parent=5 // pred_fallthru
      _
  $region6: #{forward_huffpost.4} parent=0 // loop_footer
    %s24 = sadd.s32 1, %s20
  $region7: #{forward_huffpost.4} parent=0 // loop_footer_branch
    %19 = sbr.rel target = $region3
  $region8: #{forward_huffpost.4} parent=0 // loop_exit
    _

</llo_original>
